<compile_context>
chip_gen: v7x
topology: tpu7x:2x2x1
jax: 0.10.0
libtpu: 0.0.40
codegen_flags: <defaults>
</compile_context>

<pallas_src>
import functools
import math

import jax
import jax.numpy as jnp
from jax.experimental import pallas as pl
from jax.experimental.pallas import tpu as pltpu

LN_EPS = 1e-12


def _layernorm(x, g, b):
    mu = jnp.mean(x, axis=-1, keepdims=True)
    var = jnp.mean(jnp.square(x - mu), axis=-1, keepdims=True)
    return (x - mu) * jax.lax.rsqrt(var + LN_EPS) * g + b


def _gelu(x):
    # exact (erf) GELU, as in HF DistilBERT
    return 0.5 * x * (1.0 + jax.lax.erf(x / math.sqrt(2.0)))


# --------------------- fused transformer-encoder kernel ----------------------
# grid=(n_layers,): one grid step == one full transformer layer.  The output
# block index is constant across the grid, so `h_ref` stays resident in VMEM
# and acts as the running activation / residual stream.
def _encoder_kernel(x_ref, mask_ref, emb_g_ref, emb_b_ref,
                    qkv_w_ref, qkv_b_ref, o_w_ref, o_b_ref,
                    sa_g_ref, sa_b_ref,
                    w1_ref, b1_ref, w2_ref, b2_ref,
                    og_ref, ob_ref,
                    h_ref, *, B, S, H, Dh, dim):
    layer = pl.program_id(0)

    @pl.when(layer == 0)
    def _():
        # DistilBERT embedding LayerNorm (dropout = identity).
        h_ref[...] = _layernorm(x_ref[...], emb_g_ref[...], emb_b_ref[...])

    h = h_ref[...]                                                 # (B*S, dim)

    # --- fused Q/K/V projection: one packed matmul --------------------------
    qkv = jnp.dot(h, qkv_w_ref[0], preferred_element_type=jnp.float32) + qkv_b_ref[0]
    qkv = qkv.reshape(B, S, 3 * dim)                               # (B, S, 3*dim)

    # --- multi-head self-attention (heads looped in-kernel, all VMEM) -------
    mask = mask_ref[...]                                           # (B, 1, S) float 0/1
    neg = jnp.finfo(jnp.float32).min
    scale = 1.0 / math.sqrt(Dh)
    ctx_heads = []
    for hh in range(H):                                            # H small, unrolled
        q = qkv[:, :, hh * Dh:(hh + 1) * Dh]                       # (B, S, Dh)
        k = qkv[:, :, dim + hh * Dh:dim + (hh + 1) * Dh]
        v = qkv[:, :, 2 * dim + hh * Dh:2 * dim + (hh + 1) * Dh]
        s = jnp.einsum("bqd,bkd->bqk", q * scale, k,
                       preferred_element_type=jnp.float32)         # (B, S, S)
        s = jnp.where(mask == 0.0, neg, s)                         # key-side mask
        m = jnp.max(s, axis=-1, keepdims=True)
        p = jnp.exp(s - m)
        p = p / jnp.sum(p, axis=-1, keepdims=True)
        ctx_heads.append(jnp.einsum("bqk,bkd->bqd", p, v,
                                    preferred_element_type=jnp.float32))
    ctx = jnp.concatenate(ctx_heads, axis=-1).reshape(B * S, dim)  # merge heads

    # --- output projection + residual + LayerNorm (fused epilogue) ----------
    attn_out = jnp.dot(ctx, o_w_ref[0], preferred_element_type=jnp.float32) + o_b_ref[0]
    h = _layernorm(h + attn_out, sa_g_ref[0], sa_b_ref[0])

    # --- feed-forward (GELU) + residual + LayerNorm --------------------------
    ff = _gelu(jnp.dot(h, w1_ref[0], preferred_element_type=jnp.float32) + b1_ref[0])
    ff = jnp.dot(ff, w2_ref[0], preferred_element_type=jnp.float32) + b2_ref[0]
    h_ref[...] = _layernorm(h + ff, og_ref[0], ob_ref[0])


def encoder(x_emb, mask_b1s, params, *, n_heads):
    BS, dim = x_emb.shape
    B, _, S = mask_b1s.shape
    L = params["qkv_w"].shape[0]
    ffn = params["ffn_w1"].shape[-1]
    Dh = dim // n_heads

    def c2(shape):   # constant across layers (2-D)
        return pl.BlockSpec(shape, lambda l: (0, 0))

    def c3(shape):   # constant across layers (3-D)
        return pl.BlockSpec(shape, lambda l: (0, 0, 0))

    def pw(shape):   # per-layer stacked weight, indexed by grid
        return pl.BlockSpec(shape, lambda l: (l, 0, 0))

    kernel = functools.partial(_encoder_kernel, B=B, S=S, H=n_heads, Dh=Dh, dim=dim)
    return pl.pallas_call(
        kernel,
        out_shape=jax.ShapeDtypeStruct((BS, dim), jnp.float32),
        grid=(L,),
        in_specs=[
            c2((BS, dim)),                                  # embeddings
            c3((B, 1, S)),                                  # attention mask
            c2((1, dim)), c2((1, dim)),                     # emb LN gamma/beta
            pw((1, dim, 3 * dim)), pw((1, 1, 3 * dim)),     # packed qkv
            pw((1, dim, dim)), pw((1, 1, dim)),             # attn out proj
            pw((1, 1, dim)), pw((1, 1, dim)),               # sa LN gamma/beta
            pw((1, dim, ffn)), pw((1, 1, ffn)),             # ffn lin1
            pw((1, ffn, dim)), pw((1, 1, dim)),             # ffn lin2
            pw((1, 1, dim)), pw((1, 1, dim)),               # out LN gamma/beta
        ],
        out_specs=pl.BlockSpec((BS, dim), lambda l: (0, 0)),  # resident accumulator
        compiler_params=pltpu.CompilerParams(dimension_semantics=("arbitrary",)),
    )(x_emb, mask_b1s,
      params["emb_ln_g"], params["emb_ln_b"],
      params["qkv_w"], params["qkv_b"], params["o_w"], params["o_b"],
      params["sa_ln_g"], params["sa_ln_b"],
      params["ffn_w1"], params["ffn_b1"], params["ffn_w2"], params["ffn_b2"],
      params["out_ln_g"], params["out_ln_b"])


# ----------------------- fused classification-head kernel --------------------
def _head_kernel(cls_ref, feat_ref, pre_w_ref, pre_b_ref, clf_w_ref, clf_b_ref,
                 l2wl_ref, l2wf_ref, l2b_ref, o_ref):
    # pre_classifier + ReLU
    pooled = jnp.dot(cls_ref[...], pre_w_ref[...],
                     preferred_element_type=jnp.float32) + pre_b_ref[...]
    pooled = jnp.maximum(pooled, 0.0)
    # classifier -> logits
    logits = jnp.dot(pooled, clf_w_ref[...],
                     preferred_element_type=jnp.float32) + clf_b_ref[...]
    # concat(logits, features) @ l2_w  ==  logits @ l2_w[:2] + features @ l2_w[2:]
    z = (jnp.dot(logits, l2wl_ref[...], preferred_element_type=jnp.float32)
         + jnp.dot(feat_ref[...], l2wf_ref[...], preferred_element_type=jnp.float32)
         + l2b_ref[...])
    o_ref[...] = jax.nn.sigmoid(z)


def classification_head(cls, features, params):
    B = cls.shape[0]
    num_labels = params["l2_b"].shape[-1]
    vm = lambda: pl.BlockSpec(memory_space=pltpu.MemorySpace.VMEM)
    return pl.pallas_call(
        _head_kernel,
        out_shape=jax.ShapeDtypeStruct((B, num_labels), jnp.float32),
        in_specs=[vm() for _ in range(9)],
        out_specs=vm(),
    )(cls, features, params["pre_w"], params["pre_b"],
      params["clf_w"], params["clf_b"],
      params["l2_w_logits"], params["l2_w_feat"], params["l2_b"])


# ------------------------------ parameter init --------------------------------
def init_params(key, *, vocab, max_pos, dim, n_heads, n_layers, ffn_dim,
                num_features, num_labels=2):
    del n_heads  # head count only affects the forward split, not the shapes
    keys = jax.random.split(key, 9)

    def w(k, shape, scale=0.02):
        return jax.random.normal(k, shape, jnp.float32) * scale

    l2_w = w(keys[8], (num_labels + num_features, num_labels))
    return {
        "word_emb": w(keys[0], (vocab, dim)),
        "pos_emb": w(keys[1], (max_pos, dim)),
        "emb_ln_g": jnp.ones((1, dim), jnp.float32),
        "emb_ln_b": jnp.zeros((1, dim), jnp.float32),
        # per-layer weights stacked on a leading layer axis; q/k/v packed.
        "qkv_w": w(keys[2], (n_layers, dim, 3 * dim)),
        "qkv_b": jnp.zeros((n_layers, 1, 3 * dim), jnp.float32),
        "o_w": w(keys[3], (n_layers, dim, dim)),
        "o_b": jnp.zeros((n_layers, 1, dim), jnp.float32),
        "sa_ln_g": jnp.ones((n_layers, 1, dim), jnp.float32),
        "sa_ln_b": jnp.zeros((n_layers, 1, dim), jnp.float32),
        "ffn_w1": w(keys[4], (n_layers, dim, ffn_dim)),
        "ffn_b1": jnp.zeros((n_layers, 1, ffn_dim), jnp.float32),
        "ffn_w2": w(keys[5], (n_layers, ffn_dim, dim)),
        "ffn_b2": jnp.zeros((n_layers, 1, dim), jnp.float32),
        "out_ln_g": jnp.ones((n_layers, 1, dim), jnp.float32),
        "out_ln_b": jnp.zeros((n_layers, 1, dim), jnp.float32),
        # classification head
        "pre_w": w(keys[6], (dim, dim)),
        "pre_b": jnp.zeros((1, dim), jnp.float32),
        "clf_w": w(keys[7], (dim, num_labels)),
        "clf_b": jnp.zeros((1, num_labels), jnp.float32),
        "l2_w_logits": l2_w[:num_labels],
        "l2_w_feat": l2_w[num_labels:],
        "l2_b": jnp.zeros((1, num_labels), jnp.float32),
    }


# --------------------------------- forward ------------------------------------
def full_bert_forward(params, ids, mask, features, *, n_heads):
    B, S = ids.shape
    dim = params["word_emb"].shape[1]

    # Embedding gather (word + position) is JAX glue; everything else is Pallas.
    x = params["word_emb"][ids] + params["pos_emb"][:S][None, :, :]
    x = x.reshape(B * S, dim)
    mask_b1s = mask.astype(jnp.float32).reshape(B, 1, S)

    h = encoder(x, mask_b1s, params, n_heads=n_heads)       # (B*S, dim)
    cls = h[0::S, :]                                         # [CLS] rows (XLA strided slice)
    return classification_head(cls, features, params)       # (B, 2) sigmoid probs


# ----------------------------------- main --------------------------------------
if __name__ == "__main__":
    B, S = 2, 8
    VOCAB, MAX_POS = 100, 16
    DIM, HEADS, LAYERS, FFN = 32, 4, 2, 128
    NUM_FEATURES = 4

    key = jax.random.PRNGKey(0)
    k_param, k_ids, k_feat = jax.random.split(key, 3)

    params = init_params(k_param, vocab=VOCAB, max_pos=MAX_POS, dim=DIM,
                         n_heads=HEADS, n_layers=LAYERS, ffn_dim=FFN,
                         num_features=NUM_FEATURES, num_labels=2)

    ids = jax.random.randint(k_ids, (B, S), 0, VOCAB, dtype=jnp.int32)
    mask = jnp.ones((B, S), dtype=jnp.int32).at[1, 6:].set(0)  # pad last 2 tokens of row 1
    features = jax.random.normal(k_feat, (B, NUM_FEATURES), jnp.float32)

    fwd = jax.jit(functools.partial(full_bert_forward, n_heads=HEADS))
    out = jax.block_until_ready(fwd(params, ids, mask, features))

    assert out.shape == (B, 2)
    assert bool(jnp.all(jnp.isfinite(out)))
    assert bool(jnp.all((out >= 0.0) & (out <= 1.0)))  # sigmoid output range
    print("KERNEL_OK")
</pallas_src>

<mosaic_0001>
module attributes {stable_mosaic.version = 11 : i64} {
  func.func @_encoder_kernel(%arg0: i32, %arg1: memref<16x32xf32, #tpu.memory_space<vmem>>, %arg2: memref<2x1x8xf32, #tpu.memory_space<vmem>>, %arg3: memref<1x32xf32, #tpu.memory_space<vmem>>, %arg4: memref<1x32xf32, #tpu.memory_space<vmem>>, %arg5: memref<1x32x96xf32, #tpu.memory_space<vmem>>, %arg6: memref<1x1x96xf32, #tpu.memory_space<vmem>>, %arg7: memref<1x32x32xf32, #tpu.memory_space<vmem>>, %arg8: memref<1x1x32xf32, #tpu.memory_space<vmem>>, %arg9: memref<1x1x32xf32, #tpu.memory_space<vmem>>, %arg10: memref<1x1x32xf32, #tpu.memory_space<vmem>>, %arg11: memref<1x32x128xf32, #tpu.memory_space<vmem>>, %arg12: memref<1x1x128xf32, #tpu.memory_space<vmem>>, %arg13: memref<1x128x32xf32, #tpu.memory_space<vmem>>, %arg14: memref<1x1x32xf32, #tpu.memory_space<vmem>>, %arg15: memref<1x1x32xf32, #tpu.memory_space<vmem>>, %arg16: memref<1x1x32xf32, #tpu.memory_space<vmem>>, %arg17: memref<16x32xf32, #tpu.memory_space<vmem>>) attributes {dimension_semantics = [#tpu.dimension_semantics<arbitrary>], iteration_bounds = array<i64: 2>, scalar_prefetch = 0 : i64, scratch_operands = 0 : i64, tpu.core_type = #tpu.core_type<tc>, window_params = [{pipeline_mode = #tpu.pipeline_mode<synchronous>, transform_indices = @transform_0, window_bounds = array<i64: 16, 32>}, {pipeline_mode = #tpu.pipeline_mode<synchronous>, transform_indices = @transform_1, window_bounds = array<i64: 2, 1, 8>}, {pipeline_mode = #tpu.pipeline_mode<synchronous>, transform_indices = @transform_2, window_bounds = array<i64: 1, 32>}, {pipeline_mode = #tpu.pipeline_mode<synchronous>, transform_indices = @transform_3, window_bounds = array<i64: 1, 32>}, {transform_indices = @transform_4, window_bounds = array<i64: 1, 32, 96>}, {transform_indices = @transform_5, window_bounds = array<i64: 1, 1, 96>}, {transform_indices = @transform_6, window_bounds = array<i64: 1, 32, 32>}, {transform_indices = @transform_7, window_bounds = array<i64: 1, 1, 32>}, {transform_indices = @transform_8, window_bounds = array<i64: 1, 1, 32>}, {transform_indices = @transform_9, window_bounds = array<i64: 1, 1, 32>}, {transform_indices = @transform_10, window_bounds = array<i64: 1, 32, 128>}, {transform_indices = @transform_11, window_bounds = array<i64: 1, 1, 128>}, {transform_indices = @transform_12, window_bounds = array<i64: 1, 128, 32>}, {transform_indices = @transform_13, window_bounds = array<i64: 1, 1, 32>}, {transform_indices = @transform_14, window_bounds = array<i64: 1, 1, 32>}, {transform_indices = @transform_15, window_bounds = array<i64: 1, 1, 32>}, {pipeline_mode = #tpu.pipeline_mode<synchronous>, transform_indices = @transform_16, window_bounds = array<i64: 16, 32>}]} {
    %c0_i32 = arith.constant 0 : i32
    %0 = arith.cmpi eq, %arg0, %c0_i32 : i32
    %1 = arith.extui %0 : i1 to i32
    %c0_i32_0 = arith.constant 0 : i32
    %2 = arith.cmpi ne, %1, %c0_i32_0 : i32
    scf.if %2 {
      %c0_87 = arith.constant 0 : index
      %c0_88 = arith.constant 0 : index
      %187 = vector.load %arg1[%c0_87, %c0_88] : memref<16x32xf32, #tpu.memory_space<vmem>>, vector<16x32xf32>
      %c0_89 = arith.constant 0 : index
      %c0_90 = arith.constant 0 : index
      %188 = vector.load %arg3[%c0_89, %c0_90] : memref<1x32xf32, #tpu.memory_space<vmem>>, vector<1x32xf32>
      %c0_91 = arith.constant 0 : index
      %c0_92 = arith.constant 0 : index
      %189 = vector.load %arg4[%c0_91, %c0_92] : memref<1x32xf32, #tpu.memory_space<vmem>>, vector<1x32xf32>
      %cst_93 = arith.constant dense<0.000000e+00> : vector<16xf32>
      %190 = vector.multi_reduction <add>, %187, %cst_93 [1] : vector<16x32xf32> to vector<16xf32>
      %191 = vector.shape_cast %190 : vector<16xf32> to vector<16x1xf32>
      %cst_94 = arith.constant 3.200000e+01 : f32
      %192 = vector.broadcast %cst_94 : f32 to vector<16x1xf32>
      %193 = arith.divf %191, %192 : vector<16x1xf32>
      %194 = vector.broadcast %193 : vector<16x1xf32> to vector<16x32xf32>
      %195 = arith.subf %187, %194 : vector<16x32xf32>
      %196 = arith.mulf %195, %195 : vector<16x32xf32>
      %cst_95 = arith.constant dense<0.000000e+00> : vector<16xf32>
      %197 = vector.multi_reduction <add>, %196, %cst_95 [1] : vector<16x32xf32> to vector<16xf32>
      %198 = vector.shape_cast %197 : vector<16xf32> to vector<16x1xf32>
      %cst_96 = arith.constant 3.200000e+01 : f32
      %199 = vector.broadcast %cst_96 : f32 to vector<16x1xf32>
      %200 = arith.divf %198, %199 : vector<16x1xf32>
      %201 = vector.broadcast %193 : vector<16x1xf32> to vector<16x32xf32>
      %202 = arith.subf %187, %201 : vector<16x32xf32>
      %cst_97 = arith.constant 9.99999996E-13 : f32
      %203 = vector.broadcast %cst_97 : f32 to vector<16x1xf32>
      %204 = arith.addf %200, %203 : vector<16x1xf32>
      %205 = math.rsqrt %204 : vector<16x1xf32>
      %206 = vector.broadcast %205 : vector<16x1xf32> to vector<16x32xf32>
      %207 = arith.mulf %202, %206 : vector<16x32xf32>
      %208 = vector.broadcast %188 : vector<1x32xf32> to vector<16x32xf32>
      %209 = arith.mulf %207, %208 : vector<16x32xf32>
      %210 = vector.broadcast %189 : vector<1x32xf32> to vector<16x32xf32>
      %211 = arith.addf %209, %210 : vector<16x32xf32>
      %c0_98 = arith.constant 0 : index
      %c0_99 = arith.constant 0 : index
      %212 = vector.load %arg17[%c0_98, %c0_99] : memref<16x32xf32, #tpu.memory_space<vmem>>, vector<16x32xf32>
      tpu.vector_store %arg17[%c0_98, %c0_99], %211 {strides = array<i32>} : memref<16x32xf32, #tpu.memory_space<vmem>>, vector<16x32xf32>,
    } else {
    }
    %c0 = arith.constant 0 : index
    %c0_1 = arith.constant 0 : index
    %3 = vector.load %arg17[%c0, %c0_1] : memref<16x32xf32, #tpu.memory_space<vmem>>, vector<16x32xf32>
    %c0_2 = arith.constant 0 : index
    %c0_3 = arith.constant 0 : index
    %c0_4 = arith.constant 0 : index
    %4 = vector.load %arg5[%c0_2, %c0_3, %c0_4] : memref<1x32x96xf32, #tpu.memory_space<vmem>>, vector<1x32x96xf32>
    %5 = vector.shape_cast %4 : vector<1x32x96xf32> to vector<32x96xf32>
    %cst = arith.constant dense<0.000000e+00> : vector<16x96xf32>
    %6 = tpu.matmul %3, %5, %cst {dimension_numbers = #tpu.dot_dimension_numbers<[1], [0], [0], [1], [0, 0, 1, 1], [], []>} : vector<16x32xf32>, vector<32x96xf32>, vector<16x96xf32> -> vector<16x96xf32>
    %c0_5 = arith.constant 0 : index
    %c0_6 = arith.constant 0 : index
    %c0_7 = arith.constant 0 : index
    %7 = vector.load %arg6[%c0_5, %c0_6, %c0_7] : memref<1x1x96xf32, #tpu.memory_space<vmem>>, vector<1x1x96xf32>
    %8 = vector.shape_cast %7 : vector<1x1x96xf32> to vector<1x96xf32>
    %9 = vector.broadcast %8 : vector<1x96xf32> to vector<16x96xf32>
    %10 = arith.addf %6, %9 : vector<16x96xf32>
    %11 = vector.shape_cast %10 : vector<16x96xf32> to vector<2x8x96xf32>
    %c0_8 = arith.constant 0 : index
    %c0_9 = arith.constant 0 : index
    %c0_10 = arith.constant 0 : index
    %12 = vector.load %arg2[%c0_8, %c0_9, %c0_10] : memref<2x1x8xf32, #tpu.memory_space<vmem>>, vector<2x1x8xf32>
    %13 = vector.extract_strided_slice %11 {offsets = [0, 0, 0], sizes = [2, 8, 8], strides = [1, 1, 1]} : vector<2x8x96xf32> to vector<2x8x8xf32>
    %14 = vector.extract_strided_slice %11 {offsets = [0, 0, 32], sizes = [2, 8, 8], strides = [1, 1, 1]} : vector<2x8x96xf32> to vector<2x8x8xf32>
    %15 = vector.extract_strided_slice %11 {offsets = [0, 0, 64], sizes = [2, 8, 8], strides = [1, 1, 1]} : vector<2x8x96xf32> to vector<2x8x8xf32>
    %cst_11 = arith.constant 0.353553385 : f32
    %16 = vector.broadcast %cst_11 : f32 to vector<2x8x8xf32>
    %17 = arith.mulf %13, %16 : vector<2x8x8xf32>
    "tpu.trace_start"() <{level = 10 : i32, message = "bqd,bkd->bqk"}> : () -> ()
    %cst_12 = arith.constant dense<0.000000e+00> : vector<2x8x8xf32>
    %18 = tpu.matmul %17, %14, %cst_12 {dimension_numbers = #tpu.dot_dimension_numbers<[2], [2], [1], [1], [0, 0, 0, 1, 1, 1], [0], [0]>} : vector<2x8x8xf32>, vector<2x8x8xf32>, vector<2x8x8xf32> -> vector<2x8x8xf32>
    %cst_13 = arith.constant 0.000000e+00 : f32
    "tpu.trace_stop"() : () -> ()
    %19 = vector.broadcast %cst_13 : f32 to vector<2x1x8xf32>
    %20 = arith.cmpf oeq, %12, %19 : vector<2x1x8xf32>
    %cst_14 = arith.constant -3.40282347E+38 : f32
    %21 = vector.shape_cast %20 : vector<2x1x8xi1> to vector<2x1x8xi1>
    %22 = vector.broadcast %21 : vector<2x1x8xi1> to vector<2x8x8xi1>
    %23 = vector.broadcast %cst_14 : f32 to vector<2x8x8xf32>
    %24 = arith.select %22, %23, %18 : vector<2x8x8xi1>, vector<2x8x8xf32>
    %cst_15 = arith.constant dense<0xFF800000> : vector<2x8xf32>
    %25 = vector.multi_reduction <maximumf>, %24, %cst_15 [2] : vector<2x8x8xf32> to vector<2x8xf32>
    %26 = vector.shape_cast %25 : vector<2x8xf32> to vector<2x8x1xf32>
    %27 = vector.broadcast %26 : vector<2x8x1xf32> to vector<2x8x8xf32>
    %28 = arith.subf %24, %27 : vector<2x8x8xf32>
    %29 = math.exp %28 : vector<2x8x8xf32>
    %cst_16 = arith.constant dense<0.000000e+00> : vector<2x8xf32>
    %30 = vector.multi_reduction <add>, %29, %cst_16 [2] : vector<2x8x8xf32> to vector<2x8xf32>
    %31 = vector.shape_cast %30 : vector<2x8xf32> to vector<2x8x1xf32>
    %32 = vector.broadcast %31 : vector<2x8x1xf32> to vector<2x8x8xf32>
    %33 = arith.divf %29, %32 : vector<2x8x8xf32>
    "tpu.trace_start"() <{level = 10 : i32, message = "bqk,bkd->bqd"}> : () -> ()
    %cst_17 = arith.constant dense<0.000000e+00> : vector<2x8x8xf32>
    %34 = tpu.matmul %33, %15, %cst_17 {dimension_numbers = #tpu.dot_dimension_numbers<[2], [1], [1], [2], [0, 0, 0, 1, 1, 2], [0], [0]>} : vector<2x8x8xf32>, vector<2x8x8xf32>, vector<2x8x8xf32> -> vector<2x8x8xf32>
    "tpu.trace_stop"() : () -> ()
    %35 = vector.extract_strided_slice %11 {offsets = [0, 0, 8], sizes = [2, 8, 8], strides = [1, 1, 1]} : vector<2x8x96xf32> to vector<2x8x8xf32>
    %36 = vector.extract_strided_slice %11 {offsets = [0, 0, 40], sizes = [2, 8, 8], strides = [1, 1, 1]} : vector<2x8x96xf32> to vector<2x8x8xf32>
    %37 = vector.extract_strided_slice %11 {offsets = [0, 0, 72], sizes = [2, 8, 8], strides = [1, 1, 1]} : vector<2x8x96xf32> to vector<2x8x8xf32>
    %cst_18 = arith.constant 0.353553385 : f32
    %38 = vector.broadcast %cst_18 : f32 to vector<2x8x8xf32>
    %39 = arith.mulf %35, %38 : vector<2x8x8xf32>
    "tpu.trace_start"() <{level = 10 : i32, message = "bqd,bkd->bqk"}> : () -> ()
    %cst_19 = arith.constant dense<0.000000e+00> : vector<2x8x8xf32>
    %40 = tpu.matmul %39, %36, %cst_19 {dimension_numbers = #tpu.dot_dimension_numbers<[2], [2], [1], [1], [0, 0, 0, 1, 1, 1], [0], [0]>} : vector<2x8x8xf32>, vector<2x8x8xf32>, vector<2x8x8xf32> -> vector<2x8x8xf32>
    %cst_20 = arith.constant 0.000000e+00 : f32
    "tpu.trace_stop"() : () -> ()
    %41 = vector.broadcast %cst_20 : f32 to vector<2x1x8xf32>
    %42 = arith.cmpf oeq, %12, %41 : vector<2x1x8xf32>
    %cst_21 = arith.constant -3.40282347E+38 : f32
    %43 = vector.shape_cast %42 : vector<2x1x8xi1> to vector<2x1x8xi1>
    %44 = vector.broadcast %43 : vector<2x1x8xi1> to vector<2x8x8xi1>
    %45 = vector.broadcast %cst_21 : f32 to vector<2x8x8xf32>
    %46 = arith.select %44, %45, %40 : vector<2x8x8xi1>, vector<2x8x8xf32>
    %cst_22 = arith.constant dense<0xFF800000> : vector<2x8xf32>
    %47 = vector.multi_reduction <maximumf>, %46, %cst_22 [2] : vector<2x8x8xf32> to vector<2x8xf32>
    %48 = vector.shape_cast %47 : vector<2x8xf32> to vector<2x8x1xf32>
    %49 = vector.broadcast %48 : vector<2x8x1xf32> to vector<2x8x8xf32>
    %50 = arith.subf %46, %49 : vector<2x8x8xf32>
    %51 = math.exp %50 : vector<2x8x8xf32>
    %cst_23 = arith.constant dense<0.000000e+00> : vector<2x8xf32>
    %52 = vector.multi_reduction <add>, %51, %cst_23 [2] : vector<2x8x8xf32> to vector<2x8xf32>
    %53 = vector.shape_cast %52 : vector<2x8xf32> to vector<2x8x1xf32>
    %54 = vector.broadcast %53 : vector<2x8x1xf32> to vector<2x8x8xf32>
    %55 = arith.divf %51, %54 : vector<2x8x8xf32>
    "tpu.trace_start"() <{level = 10 : i32, message = "bqk,bkd->bqd"}> : () -> ()
    %cst_24 = arith.constant dense<0.000000e+00> : vector<2x8x8xf32>
    %56 = tpu.matmul %55, %37, %cst_24 {dimension_numbers = #tpu.dot_dimension_numbers<[2], [1], [1], [2], [0, 0, 0, 1, 1, 2], [0], [0]>} : vector<2x8x8xf32>, vector<2x8x8xf32>, vector<2x8x8xf32> -> vector<2x8x8xf32>
    "tpu.trace_stop"() : () -> ()
    %57 = vector.extract_strided_slice %11 {offsets = [0, 0, 16], sizes = [2, 8, 8], strides = [1, 1, 1]} : vector<2x8x96xf32> to vector<2x8x8xf32>
    %58 = vector.extract_strided_slice %11 {offsets = [0, 0, 48], sizes = [2, 8, 8], strides = [1, 1, 1]} : vector<2x8x96xf32> to vector<2x8x8xf32>
    %59 = vector.extract_strided_slice %11 {offsets = [0, 0, 80], sizes = [2, 8, 8], strides = [1, 1, 1]} : vector<2x8x96xf32> to vector<2x8x8xf32>
    %cst_25 = arith.constant 0.353553385 : f32
    %60 = vector.broadcast %cst_25 : f32 to vector<2x8x8xf32>
    %61 = arith.mulf %57, %60 : vector<2x8x8xf32>
    "tpu.trace_start"() <{level = 10 : i32, message = "bqd,bkd->bqk"}> : () -> ()
    %cst_26 = arith.constant dense<0.000000e+00> : vector<2x8x8xf32>
    %62 = tpu.matmul %61, %58, %cst_26 {dimension_numbers = #tpu.dot_dimension_numbers<[2], [2], [1], [1], [0, 0, 0, 1, 1, 1], [0], [0]>} : vector<2x8x8xf32>, vector<2x8x8xf32>, vector<2x8x8xf32> -> vector<2x8x8xf32>
    %cst_27 = arith.constant 0.000000e+00 : f32
    "tpu.trace_stop"() : () -> ()
    %63 = vector.broadcast %cst_27 : f32 to vector<2x1x8xf32>
    %64 = arith.cmpf oeq, %12, %63 : vector<2x1x8xf32>
    %cst_28 = arith.constant -3.40282347E+38 : f32
    %65 = vector.shape_cast %64 : vector<2x1x8xi1> to vector<2x1x8xi1>
    %66 = vector.broadcast %65 : vector<2x1x8xi1> to vector<2x8x8xi1>
    %67 = vector.broadcast %cst_28 : f32 to vector<2x8x8xf32>
    %68 = arith.select %66, %67, %62 : vector<2x8x8xi1>, vector<2x8x8xf32>
    %cst_29 = arith.constant dense<0xFF800000> : vector<2x8xf32>
    %69 = vector.multi_reduction <maximumf>, %68, %cst_29 [2] : vector<2x8x8xf32> to vector<2x8xf32>
    %70 = vector.shape_cast %69 : vector<2x8xf32> to vector<2x8x1xf32>
    %71 = vector.broadcast %70 : vector<2x8x1xf32> to vector<2x8x8xf32>
    %72 = arith.subf %68, %71 : vector<2x8x8xf32>
    %73 = math.exp %72 : vector<2x8x8xf32>
    %cst_30 = arith.constant dense<0.000000e+00> : vector<2x8xf32>
    %74 = vector.multi_reduction <add>, %73, %cst_30 [2] : vector<2x8x8xf32> to vector<2x8xf32>
    %75 = vector.shape_cast %74 : vector<2x8xf32> to vector<2x8x1xf32>
    %76 = vector.broadcast %75 : vector<2x8x1xf32> to vector<2x8x8xf32>
    %77 = arith.divf %73, %76 : vector<2x8x8xf32>
    "tpu.trace_start"() <{level = 10 : i32, message = "bqk,bkd->bqd"}> : () -> ()
    %cst_31 = arith.constant dense<0.000000e+00> : vector<2x8x8xf32>
    %78 = tpu.matmul %77, %59, %cst_31 {dimension_numbers = #tpu.dot_dimension_numbers<[2], [1], [1], [2], [0, 0, 0, 1, 1, 2], [0], [0]>} : vector<2x8x8xf32>, vector<2x8x8xf32>, vector<2x8x8xf32> -> vector<2x8x8xf32>
    "tpu.trace_stop"() : () -> ()
    %79 = vector.extract_strided_slice %11 {offsets = [0, 0, 24], sizes = [2, 8, 8], strides = [1, 1, 1]} : vector<2x8x96xf32> to vector<2x8x8xf32>
    %80 = vector.extract_strided_slice %11 {offsets = [0, 0, 56], sizes = [2, 8, 8], strides = [1, 1, 1]} : vector<2x8x96xf32> to vector<2x8x8xf32>
    %81 = vector.extract_strided_slice %11 {offsets = [0, 0, 88], sizes = [2, 8, 8], strides = [1, 1, 1]} : vector<2x8x96xf32> to vector<2x8x8xf32>
    %cst_32 = arith.constant 0.353553385 : f32
    %82 = vector.broadcast %cst_32 : f32 to vector<2x8x8xf32>
    %83 = arith.mulf %79, %82 : vector<2x8x8xf32>
    "tpu.trace_start"() <{level = 10 : i32, message = "bqd,bkd->bqk"}> : () -> ()
    %cst_33 = arith.constant dense<0.000000e+00> : vector<2x8x8xf32>
    %84 = tpu.matmul %83, %80, %cst_33 {dimension_numbers = #tpu.dot_dimension_numbers<[2], [2], [1], [1], [0, 0, 0, 1, 1, 1], [0], [0]>} : vector<2x8x8xf32>, vector<2x8x8xf32>, vector<2x8x8xf32> -> vector<2x8x8xf32>
    %cst_34 = arith.constant 0.000000e+00 : f32
    "tpu.trace_stop"() : () -> ()
    %85 = vector.broadcast %cst_34 : f32 to vector<2x1x8xf32>
    %86 = arith.cmpf oeq, %12, %85 : vector<2x1x8xf32>
    %cst_35 = arith.constant -3.40282347E+38 : f32
    %87 = vector.shape_cast %86 : vector<2x1x8xi1> to vector<2x1x8xi1>
    %88 = vector.broadcast %87 : vector<2x1x8xi1> to vector<2x8x8xi1>
    %89 = vector.broadcast %cst_35 : f32 to vector<2x8x8xf32>
    %90 = arith.select %88, %89, %84 : vector<2x8x8xi1>, vector<2x8x8xf32>
    %cst_36 = arith.constant dense<0xFF800000> : vector<2x8xf32>
    %91 = vector.multi_reduction <maximumf>, %90, %cst_36 [2] : vector<2x8x8xf32> to vector<2x8xf32>
    %92 = vector.shape_cast %91 : vector<2x8xf32> to vector<2x8x1xf32>
    %93 = vector.broadcast %92 : vector<2x8x1xf32> to vector<2x8x8xf32>
    %94 = arith.subf %90, %93 : vector<2x8x8xf32>
    %95 = math.exp %94 : vector<2x8x8xf32>
    %cst_37 = arith.constant dense<0.000000e+00> : vector<2x8xf32>
    %96 = vector.multi_reduction <add>, %95, %cst_37 [2] : vector<2x8x8xf32> to vector<2x8xf32>
    %97 = vector.shape_cast %96 : vector<2x8xf32> to vector<2x8x1xf32>
    %98 = vector.broadcast %97 : vector<2x8x1xf32> to vector<2x8x8xf32>
    %99 = arith.divf %95, %98 : vector<2x8x8xf32>
    "tpu.trace_start"() <{level = 10 : i32, message = "bqk,bkd->bqd"}> : () -> ()
    %cst_38 = arith.constant dense<0.000000e+00> : vector<2x8x8xf32>
    %100 = tpu.matmul %99, %81, %cst_38 {dimension_numbers = #tpu.dot_dimension_numbers<[2], [1], [1], [2], [0, 0, 0, 1, 1, 2], [0], [0]>} : vector<2x8x8xf32>, vector<2x8x8xf32>, vector<2x8x8xf32> -> vector<2x8x8xf32>
    "tpu.trace_stop"() : () -> ()
    %101 = tpu.concatenate %34, %56, %78, %100 in 2 : vector<2x8x8xf32>, vector<2x8x8xf32>, vector<2x8x8xf32>, vector<2x8x8xf32> -> vector<2x8x32xf32>
    %102 = vector.shape_cast %101 : vector<2x8x32xf32> to vector<16x32xf32>
    %c0_39 = arith.constant 0 : index
    %c0_40 = arith.constant 0 : index
    %c0_41 = arith.constant 0 : index
    %103 = vector.load %arg7[%c0_39, %c0_40, %c0_41] : memref<1x32x32xf32, #tpu.memory_space<vmem>>, vector<1x32x32xf32>
    %104 = vector.shape_cast %103 : vector<1x32x32xf32> to vector<32x32xf32>
    %cst_42 = arith.constant dense<0.000000e+00> : vector<16x32xf32>
    %105 = tpu.matmul %102, %104, %cst_42 {dimension_numbers = #tpu.dot_dimension_numbers<[1], [0], [0], [1], [0, 0, 1, 1], [], []>} : vector<16x32xf32>, vector<32x32xf32>, vector<16x32xf32> -> vector<16x32xf32>
    %c0_43 = arith.constant 0 : index
    %c0_44 = arith.constant 0 : index
    %c0_45 = arith.constant 0 : index
    %106 = vector.load %arg8[%c0_43, %c0_44, %c0_45] : memref<1x1x32xf32, #tpu.memory_space<vmem>>, vector<1x1x32xf32>
    %107 = vector.shape_cast %106 : vector<1x1x32xf32> to vector<1x32xf32>
    %108 = vector.broadcast %107 : vector<1x32xf32> to vector<16x32xf32>
    %109 = arith.addf %105, %108 : vector<16x32xf32>
    %110 = arith.addf %3, %109 : vector<16x32xf32>
    %c0_46 = arith.constant 0 : index
    %c0_47 = arith.constant 0 : index
    %c0_48 = arith.constant 0 : index
    %111 = vector.load %arg9[%c0_46, %c0_47, %c0_48] : memref<1x1x32xf32, #tpu.memory_space<vmem>>, vector<1x1x32xf32>
    %112 = vector.shape_cast %111 : vector<1x1x32xf32> to vector<1x32xf32>
    %c0_49 = arith.constant 0 : index
    %c0_50 = arith.constant 0 : index
    %c0_51 = arith.constant 0 : index
    %113 = vector.load %arg10[%c0_49, %c0_50, %c0_51] : memref<1x1x32xf32, #tpu.memory_space<vmem>>, vector<1x1x32xf32>
    %114 = vector.shape_cast %113 : vector<1x1x32xf32> to vector<1x32xf32>
    %cst_52 = arith.constant dense<0.000000e+00> : vector<16xf32>
    %115 = vector.multi_reduction <add>, %110, %cst_52 [1] : vector<16x32xf32> to vector<16xf32>
    %116 = vector.shape_cast %115 : vector<16xf32> to vector<16x1xf32>
    %cst_53 = arith.constant 3.200000e+01 : f32
    %117 = vector.broadcast %cst_53 : f32 to vector<16x1xf32>
    %118 = arith.divf %116, %117 : vector<16x1xf32>
    %119 = vector.broadcast %118 : vector<16x1xf32> to vector<16x32xf32>
    %120 = arith.subf %110, %119 : vector<16x32xf32>
    %121 = arith.mulf %120, %120 : vector<16x32xf32>
    %cst_54 = arith.constant dense<0.000000e+00> : vector<16xf32>
    %122 = vector.multi_reduction <add>, %121, %cst_54 [1] : vector<16x32xf32> to vector<16xf32>
    %123 = vector.shape_cast %122 : vector<16xf32> to vector<16x1xf32>
    %cst_55 = arith.constant 3.200000e+01 : f32
    %124 = vector.broadcast %cst_55 : f32 to vector<16x1xf32>
    %125 = arith.divf %123, %124 : vector<16x1xf32>
    %126 = vector.broadcast %118 : vector<16x1xf32> to vector<16x32xf32>
    %127 = arith.subf %110, %126 : vector<16x32xf32>
    %cst_56 = arith.constant 9.99999996E-13 : f32
    %128 = vector.broadcast %cst_56 : f32 to vector<16x1xf32>
    %129 = arith.addf %125, %128 : vector<16x1xf32>
    %130 = math.rsqrt %129 : vector<16x1xf32>
    %131 = vector.broadcast %130 : vector<16x1xf32> to vector<16x32xf32>
    %132 = arith.mulf %127, %131 : vector<16x32xf32>
    %133 = vector.broadcast %112 : vector<1x32xf32> to vector<16x32xf32>
    %134 = arith.mulf %132, %133 : vector<16x32xf32>
    %135 = vector.broadcast %114 : vector<1x32xf32> to vector<16x32xf32>
    %136 = arith.addf %134, %135 : vector<16x32xf32>
    %c0_57 = arith.constant 0 : index
    %c0_58 = arith.constant 0 : index
    %c0_59 = arith.constant 0 : index
    %137 = vector.load %arg11[%c0_57, %c0_58, %c0_59] : memref<1x32x128xf32, #tpu.memory_space<vmem>>, vector<1x32x128xf32>
    %138 = vector.shape_cast %137 : vector<1x32x128xf32> to vector<32x128xf32>
    %cst_60 = arith.constant dense<0.000000e+00> : vector<16x128xf32>
    %139 = tpu.matmul %136, %138, %cst_60 {dimension_numbers = #tpu.dot_dimension_numbers<[1], [0], [0], [1], [0, 0, 1, 1], [], []>} : vector<16x32xf32>, vector<32x128xf32>, vector<16x128xf32> -> vector<16x128xf32>
    %c0_61 = arith.constant 0 : index
    %c0_62 = arith.constant 0 : index
    %c0_63 = arith.constant 0 : index
    %140 = vector.load %arg12[%c0_61, %c0_62, %c0_63] : memref<1x1x128xf32, #tpu.memory_space<vmem>>, vector<1x1x128xf32>
    %141 = vector.shape_cast %140 : vector<1x1x128xf32> to vector<1x128xf32>
    %142 = vector.broadcast %141 : vector<1x128xf32> to vector<16x128xf32>
    %143 = arith.addf %139, %142 : vector<16x128xf32>
    %cst_64 = arith.constant 5.000000e-01 : f32
    %144 = vector.broadcast %cst_64 : f32 to vector<16x128xf32>
    %145 = arith.mulf %144, %143 : vector<16x128xf32>
    %cst_65 = arith.constant 1.41421354 : f32
    %146 = vector.broadcast %cst_65 : f32 to vector<16x128xf32>
    %147 = arith.divf %143, %146 : vector<16x128xf32>
    %148 = math.erf %147 : vector<16x128xf32>
    %cst_66 = arith.constant 1.000000e+00 : f32
    %149 = vector.broadcast %cst_66 : f32 to vector<16x128xf32>
    %150 = arith.addf %149, %148 : vector<16x128xf32>
    %151 = arith.mulf %145, %150 : vector<16x128xf32>
    %c0_67 = arith.constant 0 : index
    %c0_68 = arith.constant 0 : index
    %c0_69 = arith.constant 0 : index
    %152 = vector.load %arg13[%c0_67, %c0_68, %c0_69] : memref<1x128x32xf32, #tpu.memory_space<vmem>>, vector<1x128x32xf32>
    %153 = vector.shape_cast %152 : vector<1x128x32xf32> to vector<128x32xf32>
    %cst_70 = arith.constant dense<0.000000e+00> : vector<16x32xf32>
    %154 = tpu.matmul %151, %153, %cst_70 {dimension_numbers = #tpu.dot_dimension_numbers<[1], [0], [0], [1], [0, 0, 1, 1], [], []>} : vector<16x128xf32>, vector<128x32xf32>, vector<16x32xf32> -> vector<16x32xf32>
    %c0_71 = arith.constant 0 : index
    %c0_72 = arith.constant 0 : index
    %c0_73 = arith.constant 0 : index
    %155 = vector.load %arg14[%c0_71, %c0_72, %c0_73] : memref<1x1x32xf32, #tpu.memory_space<vmem>>, vector<1x1x32xf32>
    %156 = vector.shape_cast %155 : vector<1x1x32xf32> to vector<1x32xf32>
    %157 = vector.broadcast %156 : vector<1x32xf32> to vector<16x32xf32>
    %158 = arith.addf %154, %157 : vector<16x32xf32>
    %159 = arith.addf %136, %158 : vector<16x32xf32>
    %c0_74 = arith.constant 0 : index
    %c0_75 = arith.constant 0 : index
    %c0_76 = arith.constant 0 : index
    %160 = vector.load %arg15[%c0_74, %c0_75, %c0_76] : memref<1x1x32xf32, #tpu.memory_space<vmem>>, vector<1x1x32xf32>
    %161 = vector.shape_cast %160 : vector<1x1x32xf32> to vector<1x32xf32>
    %c0_77 = arith.constant 0 : index
    %c0_78 = arith.constant 0 : index
    %c0_79 = arith.constant 0 : index
    %162 = vector.load %arg16[%c0_77, %c0_78, %c0_79] : memref<1x1x32xf32, #tpu.memory_space<vmem>>, vector<1x1x32xf32>
    %163 = vector.shape_cast %162 : vector<1x1x32xf32> to vector<1x32xf32>
    %cst_80 = arith.constant dense<0.000000e+00> : vector<16xf32>
    %164 = vector.multi_reduction <add>, %159, %cst_80 [1] : vector<16x32xf32> to vector<16xf32>
    %165 = vector.shape_cast %164 : vector<16xf32> to vector<16x1xf32>
    %cst_81 = arith.constant 3.200000e+01 : f32
    %166 = vector.broadcast %cst_81 : f32 to vector<16x1xf32>
    %167 = arith.divf %165, %166 : vector<16x1xf32>
    %168 = vector.broadcast %167 : vector<16x1xf32> to vector<16x32xf32>
    %169 = arith.subf %159, %168 : vector<16x32xf32>
    %170 = arith.mulf %169, %169 : vector<16x32xf32>
    %cst_82 = arith.constant dense<0.000000e+00> : vector<16xf32>
    %171 = vector.multi_reduction <add>, %170, %cst_82 [1] : vector<16x32xf32> to vector<16xf32>
    %172 = vector.shape_cast %171 : vector<16xf32> to vector<16x1xf32>
    %cst_83 = arith.constant 3.200000e+01 : f32
    %173 = vector.broadcast %cst_83 : f32 to vector<16x1xf32>
    %174 = arith.divf %172, %173 : vector<16x1xf32>
    %175 = vector.broadcast %167 : vector<16x1xf32> to vector<16x32xf32>
    %176 = arith.subf %159, %175 : vector<16x32xf32>
    %cst_84 = arith.constant 9.99999996E-13 : f32
    %177 = vector.broadcast %cst_84 : f32 to vector<16x1xf32>
    %178 = arith.addf %174, %177 : vector<16x1xf32>
    %179 = math.rsqrt %178 : vector<16x1xf32>
    %180 = vector.broadcast %179 : vector<16x1xf32> to vector<16x32xf32>
    %181 = arith.mulf %176, %180 : vector<16x32xf32>
    %182 = vector.broadcast %161 : vector<1x32xf32> to vector<16x32xf32>
    %183 = arith.mulf %181, %182 : vector<16x32xf32>
    %184 = vector.broadcast %163 : vector<1x32xf32> to vector<16x32xf32>
    %185 = arith.addf %183, %184 : vector<16x32xf32>
    %c0_85 = arith.constant 0 : index
    %c0_86 = arith.constant 0 : index
    %186 = vector.load %arg17[%c0_85, %c0_86] : memref<16x32xf32, #tpu.memory_space<vmem>>, vector<16x32xf32>
    tpu.vector_store %arg17[%c0_85, %c0_86], %185 {strides = array<i32>} : memref<16x32xf32, #tpu.memory_space<vmem>>, vector<16x32xf32>,
    return
  }
  func.func @transform_0(%arg0: i32) -> (i32, i32) {
    %c0_i32 = arith.constant 0 : i32
    %c0_i32_0 = arith.constant 0 : i32
    %c0_i32_1 = arith.constant 0 : i32
    return %c0_i32, %c0_i32_0 : i32, i32
  }
  func.func @transform_1(%arg0: i32) -> (i32, i32, i32) {
    %c0_i32 = arith.constant 0 : i32
    %c0_i32_0 = arith.constant 0 : i32
    %c0_i32_1 = arith.constant 0 : i32
    %c0_i32_2 = arith.constant 0 : i32
    return %c0_i32, %c0_i32_0, %c0_i32_1 : i32, i32, i32
  }
  func.func @transform_2(%arg0: i32) -> (i32, i32) {
    %c0_i32 = arith.constant 0 : i32
    %c0_i32_0 = arith.constant 0 : i32
    %c0_i32_1 = arith.constant 0 : i32
    return %c0_i32, %c0_i32_0 : i32, i32
  }
  func.func @transform_3(%arg0: i32) -> (i32, i32) {
    %c0_i32 = arith.constant 0 : i32
    %c0_i32_0 = arith.constant 0 : i32
    %c0_i32_1 = arith.constant 0 : i32
    return %c0_i32, %c0_i32_0 : i32, i32
  }
  func.func @transform_4(%arg0: i32) -> (i32, i32, i32) {
    %c0_i32 = arith.constant 0 : i32
    %c0_i32_0 = arith.constant 0 : i32
    %c0_i32_1 = arith.constant 0 : i32
    return %arg0, %c0_i32, %c0_i32_0 : i32, i32, i32
  }
  func.func @transform_5(%arg0: i32) -> (i32, i32, i32) {
    %c0_i32 = arith.constant 0 : i32
    %c0_i32_0 = arith.constant 0 : i32
    %c0_i32_1 = arith.constant 0 : i32
    return %arg0, %c0_i32, %c0_i32_0 : i32, i32, i32
  }
  func.func @transform_6(%arg0: i32) -> (i32, i32, i32) {
    %c0_i32 = arith.constant 0 : i32
    %c0_i32_0 = arith.constant 0 : i32
    %c0_i32_1 = arith.constant 0 : i32
    return %arg0, %c0_i32, %c0_i32_0 : i32, i32, i32
  }
  func.func @transform_7(%arg0: i32) -> (i32, i32, i32) {
    %c0_i32 = arith.constant 0 : i32
    %c0_i32_0 = arith.constant 0 : i32
    %c0_i32_1 = arith.constant 0 : i32
    return %arg0, %c0_i32, %c0_i32_0 : i32, i32, i32
  }
  func.func @transform_8(%arg0: i32) -> (i32, i32, i32) {
    %c0_i32 = arith.constant 0 : i32
    %c0_i32_0 = arith.constant 0 : i32
    %c0_i32_1 = arith.constant 0 : i32
    return %arg0, %c0_i32, %c0_i32_0 : i32, i32, i32
  }
  func.func @transform_9(%arg0: i32) -> (i32, i32, i32) {
    %c0_i32 = arith.constant 0 : i32
    %c0_i32_0 = arith.constant 0 : i32
    %c0_i32_1 = arith.constant 0 : i32
    return %arg0, %c0_i32, %c0_i32_0 : i32, i32, i32
  }
  func.func @transform_10(%arg0: i32) -> (i32, i32, i32) {
    %c0_i32 = arith.constant 0 : i32
    %c0_i32_0 = arith.constant 0 : i32
    %c0_i32_1 = arith.constant 0 : i32
    return %arg0, %c0_i32, %c0_i32_0 : i32, i32, i32
  }
  func.func @transform_11(%arg0: i32) -> (i32, i32, i32) {
    %c0_i32 = arith.constant 0 : i32
    %c0_i32_0 = arith.constant 0 : i32
    %c0_i32_1 = arith.constant 0 : i32
    return %arg0, %c0_i32, %c0_i32_0 : i32, i32, i32
  }
  func.func @transform_12(%arg0: i32) -> (i32, i32, i32) {
    %c0_i32 = arith.constant 0 : i32
    %c0_i32_0 = arith.constant 0 : i32
    %c0_i32_1 = arith.constant 0 : i32
    return %arg0, %c0_i32, %c0_i32_0 : i32, i32, i32
  }
  func.func @transform_13(%arg0: i32) -> (i32, i32, i32) {
    %c0_i32 = arith.constant 0 : i32
    %c0_i32_0 = arith.constant 0 : i32
    %c0_i32_1 = arith.constant 0 : i32
    return %arg0, %c0_i32, %c0_i32_0 : i32, i32, i32
  }
  func.func @transform_14(%arg0: i32) -> (i32, i32, i32) {
    %c0_i32 = arith.constant 0 : i32
    %c0_i32_0 = arith.constant 0 : i32
    %c0_i32_1 = arith.constant 0 : i32
    return %arg0, %c0_i32, %c0_i32_0 : i32, i32, i32
  }
  func.func @transform_15(%arg0: i32) -> (i32, i32, i32) {
    %c0_i32 = arith.constant 0 : i32
    %c0_i32_0 = arith.constant 0 : i32
    %c0_i32_1 = arith.constant 0 : i32
    return %arg0, %c0_i32, %c0_i32_0 : i32, i32, i32
  }
  func.func @transform_16(%arg0: i32) -> (i32, i32) {
    %c0_i32 = arith.constant 0 : i32
    %c0_i32_0 = arith.constant 0 : i32
    %c0_i32_1 = arith.constant 0 : i32
    return %c0_i32, %c0_i32_0 : i32, i32
  }
}

module attributes {stable_mosaic.version = 11 : i64} {
  func.func @_head_kernel(%arg0: memref<2x32xf32, #tpu.memory_space<vmem>>, %arg1: memref<2x4xf32, #tpu.memory_space<vmem>>, %arg2: memref<32x32xf32, #tpu.memory_space<vmem>>, %arg3: memref<1x32xf32, #tpu.memory_space<vmem>>, %arg4: memref<32x2xf32, #tpu.memory_space<vmem>>, %arg5: memref<1x2xf32, #tpu.memory_space<vmem>>, %arg6: memref<2x2xf32, #tpu.memory_space<vmem>>, %arg7: memref<4x2xf32, #tpu.memory_space<vmem>>, %arg8: memref<1x2xf32, #tpu.memory_space<vmem>>, %arg9: memref<2x2xf32, #tpu.memory_space<vmem>>) attributes {dimension_semantics = [], scalar_prefetch = 0 : i64, scratch_operands = 0 : i64, tpu.core_type = #tpu.core_type<tc>} {
    %c0 = arith.constant 0 : index
    %c0_0 = arith.constant 0 : index
    %0 = vector.load %arg0[%c0, %c0_0] : memref<2x32xf32, #tpu.memory_space<vmem>>, vector<2x32xf32>
    %c0_1 = arith.constant 0 : index
    %c0_2 = arith.constant 0 : index
    %1 = vector.load %arg2[%c0_1, %c0_2] : memref<32x32xf32, #tpu.memory_space<vmem>>, vector<32x32xf32>
    %cst = arith.constant dense<0.000000e+00> : vector<2x32xf32>
    %2 = tpu.matmul %0, %1, %cst {dimension_numbers = #tpu.dot_dimension_numbers<[1], [0], [0], [1], [0, 0, 1, 1], [], []>} : vector<2x32xf32>, vector<32x32xf32>, vector<2x32xf32> -> vector<2x32xf32>
    %c0_3 = arith.constant 0 : index
    %c0_4 = arith.constant 0 : index
    %3 = vector.load %arg3[%c0_3, %c0_4] : memref<1x32xf32, #tpu.memory_space<vmem>>, vector<1x32xf32>
    %4 = vector.broadcast %3 : vector<1x32xf32> to vector<2x32xf32>
    %5 = arith.addf %2, %4 : vector<2x32xf32>
    %cst_5 = arith.constant 0.000000e+00 : f32
    %6 = vector.broadcast %cst_5 : f32 to vector<2x32xf32>
    %7 = arith.maximumf %5, %6 : vector<2x32xf32>
    %c0_6 = arith.constant 0 : index
    %c0_7 = arith.constant 0 : index
    %8 = vector.load %arg4[%c0_6, %c0_7] : memref<32x2xf32, #tpu.memory_space<vmem>>, vector<32x2xf32>
    %cst_8 = arith.constant dense<0.000000e+00> : vector<2x2xf32>
    %9 = tpu.matmul %7, %8, %cst_8 {dimension_numbers = #tpu.dot_dimension_numbers<[1], [0], [0], [1], [0, 0, 1, 1], [], []>} : vector<2x32xf32>, vector<32x2xf32>, vector<2x2xf32> -> vector<2x2xf32>
    %c0_9 = arith.constant 0 : index
    %c0_10 = arith.constant 0 : index
    %10 = vector.load %arg5[%c0_9, %c0_10] : memref<1x2xf32, #tpu.memory_space<vmem>>, vector<1x2xf32>
    %11 = vector.broadcast %10 : vector<1x2xf32> to vector<2x2xf32>
    %12 = arith.addf %9, %11 : vector<2x2xf32>
    %c0_11 = arith.constant 0 : index
    %c0_12 = arith.constant 0 : index
    %13 = vector.load %arg6[%c0_11, %c0_12] : memref<2x2xf32, #tpu.memory_space<vmem>>, vector<2x2xf32>
    %cst_13 = arith.constant dense<0.000000e+00> : vector<2x2xf32>
    %14 = tpu.matmul %12, %13, %cst_13 {dimension_numbers = #tpu.dot_dimension_numbers<[1], [0], [0], [1], [0, 0, 1, 1], [], []>} : vector<2x2xf32>, vector<2x2xf32>, vector<2x2xf32> -> vector<2x2xf32>
    %c0_14 = arith.constant 0 : index
    %c0_15 = arith.constant 0 : index
    %15 = vector.load %arg1[%c0_14, %c0_15] : memref<2x4xf32, #tpu.memory_space<vmem>>, vector<2x4xf32>
    %c0_16 = arith.constant 0 : index
    %c0_17 = arith.constant 0 : index
    %16 = vector.load %arg7[%c0_16, %c0_17] : memref<4x2xf32, #tpu.memory_space<vmem>>, vector<4x2xf32>
    %cst_18 = arith.constant dense<0.000000e+00> : vector<2x2xf32>
    %17 = tpu.matmul %15, %16, %cst_18 {dimension_numbers = #tpu.dot_dimension_numbers<[1], [0], [0], [1], [0, 0, 1, 1], [], []>} : vector<2x4xf32>, vector<4x2xf32>, vector<2x2xf32> -> vector<2x2xf32>
    %18 = arith.addf %14, %17 : vector<2x2xf32>
    %c0_19 = arith.constant 0 : index
    %c0_20 = arith.constant 0 : index
    %19 = vector.load %arg8[%c0_19, %c0_20] : memref<1x2xf32, #tpu.memory_space<vmem>>, vector<1x2xf32>
    %20 = vector.broadcast %19 : vector<1x2xf32> to vector<2x2xf32>
    %21 = arith.addf %18, %20 : vector<2x2xf32>
    %22 = arith.negf %21 : vector<2x2xf32>
    %23 = math.exp %22 : vector<2x2xf32>
    %cst_21 = arith.constant 1.000000e+00 : f32
    %24 = vector.broadcast %cst_21 : f32 to vector<2x2xf32>
    %25 = arith.addf %24, %23 : vector<2x2xf32>
    %26 = arith.divf %24, %25 : vector<2x2xf32>
    %c0_22 = arith.constant 0 : index
    %c0_23 = arith.constant 0 : index
    %27 = vector.load %arg9[%c0_22, %c0_23] : memref<2x2xf32, #tpu.memory_space<vmem>>, vector<2x2xf32>
    tpu.vector_store %arg9[%c0_22, %c0_23], %26 {strides = array<i32>} : memref<2x2xf32, #tpu.memory_space<vmem>>, vector<2x2xf32>,
    return
  }
}

</mosaic_0001>

<llo_original>
// kernel: full_bert_forward.3
$region0: #{full_bert_forward.3}
  #allocation0 [shape = 'u32[]', space=smem, size = 0x4, offset = 0x4, fixed_abs, tag = 'smem constant byte address 0x4 - core index']
  #allocation1 [shape = 'u32[144,128]{1,0:T(1,128)}', space=vmem, size = 0x12000, scoped, tag = 'internal scratch']
  %s0 = inlined_call_operand.vmem [shape: f32[2,32], index: 0, kind: input, shape index: {}]
  %s1 = inlined_call_operand.vmem [shape: f32[2,4], index: 1, kind: input, shape index: {}]
  %s2 = inlined_call_operand.vmem [shape: f32[32,32], index: 2, kind: input, shape index: {}]
  %s3 = inlined_call_operand.vmem [shape: f32[1,32], index: 3, kind: input, shape index: {}]
  %s4 = inlined_call_operand.vmem [shape: f32[32,2], index: 4, kind: input, shape index: {}]
  %s5 = inlined_call_operand.vmem [shape: f32[1,2], index: 5, kind: input, shape index: {}]
  %s6 = inlined_call_operand.vmem [shape: f32[2,2], index: 6, kind: input, shape index: {}]
  %s7 = inlined_call_operand.vmem [shape: f32[4,2], index: 7, kind: input, shape index: {}]
  %s8 = inlined_call_operand.vmem [shape: f32[1,2], index: 8, kind: input, shape index: {}]
  %s9 = inlined_call_operand.hbm [shape: f32[2,2], index: 9, kind: output, shape index: {}]
  %s10 = sld [smem:[#allocation0]]
  $region46: #{full_bert_forward.3} parent=0
    _
  %s12 = ssub.s32 1, %s10
  %s13 = scalar_select 0, %s12, %s10
  $region1: #{full_bert_forward.3} parent=0
    #allocation2 [shape = 'u8[1024]{0}', space=vmem, size = 0x400, scoped, tag = 'output window, operand 0, single buffered']
    #allocation3 [shape = 's32[1]{0}', space=sflag, size = 0x4, scoped, tag = 'scoped memory for full_bert_forward.3']
    %14 = vsyncpa [#allocation3], 0
    // Predicated region
    $region2: #{full_bert_forward.3} parent=1 // pred_check
      _
    $region3: #{full_bert_forward.3} parent=1 // pred_check_branch
      %16 = sbr.rel (0) target = $region5
    $region4: #{full_bert_forward.3} parent=1 // pred_region
      _
    $region5: #{full_bert_forward.3} parent=1 // pred_fallthru
      _
    // Predicated region
    $region6: #{full_bert_forward.3} parent=1 // pred_check
      _
    $region7: #{full_bert_forward.3} parent=1 // pred_check_branch
      %18 = sbr.rel (0) target = $region9
    $region8: #{full_bert_forward.3} parent=1 // pred_region
      _
    $region9: #{full_bert_forward.3} parent=1 // pred_fallthru
      _
    // Predicated region
    $region10: #{full_bert_forward.3} parent=1 // pred_check
      _
    $region11: #{full_bert_forward.3} parent=1 // pred_check_branch
      %20 = sbr.rel (0) target = $region13
    $region12: #{full_bert_forward.3} parent=1 // pred_region
      _
    $region13: #{full_bert_forward.3} parent=1 // pred_fallthru
      _
    // Predicated region
    $region14: #{full_bert_forward.3} parent=1 // pred_check
      _
    $region15: #{full_bert_forward.3} parent=1 // pred_check_branch
      %22 = sbr.rel (0) target = $region17
    $region16: #{full_bert_forward.3} parent=1 // pred_region
      _
    $region17: #{full_bert_forward.3} parent=1 // pred_fallthru
      _
    // Predicated region
    $region18: #{full_bert_forward.3} parent=1 // pred_check
      _
    $region19: #{full_bert_forward.3} parent=1 // pred_check_branch
      %24 = sbr.rel (0) target = $region21
    $region20: #{full_bert_forward.3} parent=1 // pred_region
      _
    $region21: #{full_bert_forward.3} parent=1 // pred_fallthru
      _
    // Predicated region
    $region22: #{full_bert_forward.3} parent=1 // pred_check
      _
    $region23: #{full_bert_forward.3} parent=1 // pred_check_branch
      %26 = sbr.rel (0) target = $region25
    $region24: #{full_bert_forward.3} parent=1 // pred_region
      _
    $region25: #{full_bert_forward.3} parent=1 // pred_fallthru
      _
    // Predicated region
    $region26: #{full_bert_forward.3} parent=1 // pred_check
      _
    $region27: #{full_bert_forward.3} parent=1 // pred_check_branch
      %28 = sbr.rel (0) target = $region29
    $region28: #{full_bert_forward.3} parent=1 // pred_region
      _
    $region29: #{full_bert_forward.3} parent=1 // pred_fallthru
      _
    // Predicated region
    $region30: #{full_bert_forward.3} parent=1 // pred_check
      _
    $region31: #{full_bert_forward.3} parent=1 // pred_check_branch
      %30 = sbr.rel (0) target = $region33
    $region32: #{full_bert_forward.3} parent=1 // pred_region
      _
    $region33: #{full_bert_forward.3} parent=1 // pred_fallthru
      _
    // Predicated region
    $region34: #{full_bert_forward.3} parent=1 // pred_check
      _
    $region35: #{full_bert_forward.3} parent=1 // pred_check_branch
      %32 = sbr.rel (0) target = $region37
    $region36: #{full_bert_forward.3} parent=1 // pred_region
      _
    $region37: #{full_bert_forward.3} parent=1 // pred_fallthru
      _
    %v33 = vld [vmem:[%s0] sm:$0x3]
    %v34 = vld [vmem:[%s2] sm:$0xff]
    %v35 = vld [vmem:[%s2 + $0x8] sm:$0xff]
    %v36 = vld [vmem:[%s2 + $0x10] sm:$0xff]
    %v37 = vld [vmem:[%s2 + $0x18] sm:$0xff]
    %v38 = vld [vmem:[%s3] sm:$0x1]
    %v40 = vlaneseq
    %v41 = vshrl.u32 %v40, 7
    %v42 = vsub.s32 0, %v41
    %v43 = vrot.slane %v38, %v42
    %vm45 = vcmask 261120
    %v47 = vsel %vm45, %v33, 0
    %49 = vmatprep.subr.mxu0 0.0
    %50 = vmatpush1.msra.mxu0 %v34
    %51 = vmatprep.subr.mxu0 0.0
    %52 = vmatpush1.msra.mxu0 %v35
    %53 = vmatprep.subr.mxu0 0.0
    %54 = vmatpush1.msra.mxu0 %v36
    %55 = vmatprep.subr.mxu0 0.0
    %56 = vmatpush1.msra.mxu0 %v37
    %57 = vmatprep.subr.mxu0 0.0
    %58 = vmatpush1.msra.mxu0 0.0
    %59 = vmatprep.subr.mxu0 0.0
    %60 = vmatpush1.msra.mxu0 0.0
    %61 = vmatprep.subr.mxu0 0.0
    %62 = vmatpush1.msra.mxu0 0.0
    %63 = vmatprep.subr.mxu0 0.0
    %64 = vmatpush1.msra.mxu0 0.0
    %65 = vmatprep.subr.mxu0 0.0
    %66 = vmatpush1.msra.mxu0 0.0
    %67 = vmatprep.subr.mxu0 0.0
    %68 = vmatpush1.msra.mxu0 0.0
    %69 = vmatprep.subr.mxu0 0.0
    %70 = vmatpush1.msra.mxu0 0.0
    %71 = vmatprep.subr.mxu0 0.0
    %72 = vmatpush1.msra.mxu0 0.0
    %73 = vmatprep.subr.mxu0 0.0
    %74 = vmatpush1.msra.mxu0 0.0
    %75 = vmatprep.subr.mxu0 0.0
    %76 = vmatpush1.msra.mxu0 0.0
    %77 = vmatprep.subr.mxu0 0.0
    %78 = vmatpush1.msra.mxu0 0.0
    %79 = vmatprep.subr.mxu0 0.0
    %80 = vmatpush1.msra.mxu0 0.0
    %81 = vmatprep.subr.mxu0 0.0
    %82 = vmatpush1.msra.mxu0 0.0
    %83 = vmatprep.subr.mxu0 0.0
    %84 = vmatpush1.msra.mxu0 0.0
    %85 = vmatprep.subr.mxu0 0.0
    %86 = vmatpush1.msra.mxu0 0.0
    %87 = vmatprep.subr.mxu0 0.0
    %88 = vmatpush1.msra.mxu0 0.0
    %89 = vmatprep.subr.mxu0 0.0
    %90 = vmatpush1.msra.mxu0 0.0
    %91 = vmatprep.subr.mxu0 0.0
    %92 = vmatpush1.msra.mxu0 0.0
    %93 = vmatprep.subr.mxu0 0.0
    %94 = vmatpush1.msra.mxu0 0.0
    %95 = vmatprep.subr.mxu0 0.0
    %96 = vmatpush1.msra.mxu0 0.0
    %97 = vmatprep.subr.mxu0 0.0
    %98 = vmatpush1.msra.mxu0 0.0
    %99 = vmatprep.subr.mxu0 0.0
    %100 = vmatpush1.msra.mxu0 0.0
    %101 = vmatprep.subr.mxu0 0.0
    %102 = vmatpush1.msra.mxu0 0.0
    %103 = vmatprep.subr.mxu0 0.0
    %104 = vmatpush1.msra.mxu0 0.0
    %105 = vmatprep.subr.mxu0 0.0
    %106 = vmatpush1.msra.mxu0 0.0
    %107 = vmatprep.subr.mxu0 0.0
    %108 = vmatpush1.msra.mxu0 0.0
    %109 = vmatprep.subr.mxu0 0.0
    %110 = vmatpush1.msra.mxu0 0.0
    %111 = vmatprep.subr.mxu0 0.0
    %112 = vmatpush1.msra.mxu0 0.0
    %113 = vmatprep.mubr.f32.mxu0 0.0
    %114 = vmatmul.mubr.f32.gmra.mrb[0].mxu0 %v47
    %v115 = vpop.f32.mrb[0].mxu0
    %v116 = vadd.f32 %v43, %v115
    %v117 = vpop.f32.mrb[0].mxu0
    %118 = vdwg.mxu0
    %v119 = vmax.f32 %v116, 0.0
    %v120 = vld [vmem:[%s4] sm:$0xff]
    %v121 = vld [vmem:[%s4 + $0x8] sm:$0xff]
    %v122 = vld [vmem:[%s4 + $0x10] sm:$0xff]
    %v123 = vld [vmem:[%s4 + $0x18] sm:$0xff]
    %v124 = vld [vmem:[%s5] sm:$0x1]
    %v126 = vlaneseq
    %v127 = vshrl.u32 %v126, 7
    %v128 = vsub.s32 0, %v127
    %v129 = vrot.slane %v124, %v128
    %v132 = vsel %vm45, %v119, 0
    %134 = vmatprep.subr.mxu0 0.0
    %135 = vmatpush1.msra.mxu0 %v120
    %136 = vmatprep.subr.mxu0 0.0
    %137 = vmatpush1.msra.mxu0 %v121
    %138 = vmatprep.subr.mxu0 0.0
    %139 = vmatpush1.msra.mxu0 %v122
    %140 = vmatprep.subr.mxu0 0.0
    %141 = vmatpush1.msra.mxu0 %v123
    %142 = vmatprep.subr.mxu0 0.0
    %143 = vmatpush1.msra.mxu0 0.0
    %144 = vmatprep.subr.mxu0 0.0
    %145 = vmatpush1.msra.mxu0 0.0
    %146 = vmatprep.subr.mxu0 0.0
    %147 = vmatpush1.msra.mxu0 0.0
    %148 = vmatprep.subr.mxu0 0.0
    %149 = vmatpush1.msra.mxu0 0.0
    %150 = vmatprep.subr.mxu0 0.0
    %151 = vmatpush1.msra.mxu0 0.0
    %152 = vmatprep.subr.mxu0 0.0
    %153 = vmatpush1.msra.mxu0 0.0
    %154 = vmatprep.subr.mxu0 0.0
    %155 = vmatpush1.msra.mxu0 0.0
    %156 = vmatprep.subr.mxu0 0.0
    %157 = vmatpush1.msra.mxu0 0.0
    %158 = vmatprep.subr.mxu0 0.0
    %159 = vmatpush1.msra.mxu0 0.0
    %160 = vmatprep.subr.mxu0 0.0
    %161 = vmatpush1.msra.mxu0 0.0
    %162 = vmatprep.subr.mxu0 0.0
    %163 = vmatpush1.msra.mxu0 0.0
    %164 = vmatprep.subr.mxu0 0.0
    %165 = vmatpush1.msra.mxu0 0.0
    %166 = vmatprep.subr.mxu0 0.0
    %167 = vmatpush1.msra.mxu0 0.0
    %168 = vmatprep.subr.mxu0 0.0
    %169 = vmatpush1.msra.mxu0 0.0
    %170 = vmatprep.subr.mxu0 0.0
    %171 = vmatpush1.msra.mxu0 0.0
    %172 = vmatprep.subr.mxu0 0.0
    %173 = vmatpush1.msra.mxu0 0.0
    %174 = vmatprep.subr.mxu0 0.0
    %175 = vmatpush1.msra.mxu0 0.0
    %176 = vmatprep.subr.mxu0 0.0
    %177 = vmatpush1.msra.mxu0 0.0
    %178 = vmatprep.subr.mxu0 0.0
    %179 = vmatpush1.msra.mxu0 0.0
    %180 = vmatprep.subr.mxu0 0.0
    %181 = vmatpush1.msra.mxu0 0.0
    %182 = vmatprep.subr.mxu0 0.0
    %183 = vmatpush1.msra.mxu0 0.0
    %184 = vmatprep.subr.mxu0 0.0
    %185 = vmatpush1.msra.mxu0 0.0
    %186 = vmatprep.subr.mxu0 0.0
    %187 = vmatpush1.msra.mxu0 0.0
    %188 = vmatprep.subr.mxu0 0.0
    %189 = vmatpush1.msra.mxu0 0.0
    %190 = vmatprep.subr.mxu0 0.0
    %191 = vmatpush1.msra.mxu0 0.0
    %192 = vmatprep.subr.mxu0 0.0
    %193 = vmatpush1.msra.mxu0 0.0
    %194 = vmatprep.subr.mxu0 0.0
    %195 = vmatpush1.msra.mxu0 0.0
    %196 = vmatprep.subr.mxu0 0.0
    %197 = vmatpush1.msra.mxu0 0.0
    %198 = vmatprep.mubr.f32.mxu0 0.0
    %199 = vmatmul.mubr.f32.gmra.mrb[0].mxu0 %v132
    %v200 = vpop.f32.mrb[0].mxu0
    %v201 = vadd.f32 %v129, %v200
    %v202 = vpop.f32.mrb[0].mxu0
    %203 = vdwg.mxu0
    %v204 = vld [vmem:[%s6] sm:$0x3]
    %v205 = vld [vmem:[%s1] sm:$0x3]
    %v206 = vld [vmem:[%s7] sm:$0xf]
    %vm207 = vcmask 31744
    %v209 = vsel %vm207, %v205, 0
    %vm211 = vcmask 1043456
    %v213 = vsel %vm211, %v206, 0
    %215 = vmatprep.subr.mxu0 0.0
    %216 = vmatpush1.msra.mxu0 %v213
    %217 = vmatprep.subr.mxu0 0.0
    %218 = vmatpush1.msra.mxu0 0.0
    %219 = vmatprep.subr.mxu0 0.0
    %220 = vmatpush1.msra.mxu0 0.0
    %221 = vmatprep.subr.mxu0 0.0
    %222 = vmatpush1.msra.mxu0 0.0
    %223 = vmatprep.subr.mxu0 0.0
    %224 = vmatpush1.msra.mxu0 0.0
    %225 = vmatprep.subr.mxu0 0.0
    %226 = vmatpush1.msra.mxu0 0.0
    %227 = vmatprep.subr.mxu0 0.0
    %228 = vmatpush1.msra.mxu0 0.0
    %229 = vmatprep.subr.mxu0 0.0
    %230 = vmatpush1.msra.mxu0 0.0
    %231 = vmatprep.subr.mxu0 0.0
    %232 = vmatpush1.msra.mxu0 0.0
    %233 = vmatprep.subr.mxu0 0.0
    %234 = vmatpush1.msra.mxu0 0.0
    %235 = vmatprep.subr.mxu0 0.0
    %236 = vmatpush1.msra.mxu0 0.0
    %237 = vmatprep.subr.mxu0 0.0
    %238 = vmatpush1.msra.mxu0 0.0
    %239 = vmatprep.subr.mxu0 0.0
    %240 = vmatpush1.msra.mxu0 0.0
    %241 = vmatprep.subr.mxu0 0.0
    %242 = vmatpush1.msra.mxu0 0.0
    %243 = vmatprep.subr.mxu0 0.0
    %244 = vmatpush1.msra.mxu0 0.0
    %245 = vmatprep.subr.mxu0 0.0
    %246 = vmatpush1.msra.mxu0 0.0
    %247 = vmatprep.subr.mxu0 0.0
    %248 = vmatpush1.msra.mxu0 0.0
    %249 = vmatprep.subr.mxu0 0.0
    %250 = vmatpush1.msra.mxu0 0.0
    %251 = vmatprep.subr.mxu0 0.0
    %252 = vmatpush1.msra.mxu0 0.0
    %253 = vmatprep.subr.mxu0 0.0
    %254 = vmatpush1.msra.mxu0 0.0
    %255 = vmatprep.subr.mxu0 0.0
    %256 = vmatpush1.msra.mxu0 0.0
    %257 = vmatprep.subr.mxu0 0.0
    %258 = vmatpush1.msra.mxu0 0.0
    %259 = vmatprep.subr.mxu0 0.0
    %260 = vmatpush1.msra.mxu0 0.0
    %261 = vmatprep.subr.mxu0 0.0
    %262 = vmatpush1.msra.mxu0 0.0
    %263 = vmatprep.subr.mxu0 0.0
    %264 = vmatpush1.msra.mxu0 0.0
    %265 = vmatprep.subr.mxu0 0.0
    %266 = vmatpush1.msra.mxu0 0.0
    %267 = vmatprep.subr.mxu0 0.0
    %268 = vmatpush1.msra.mxu0 0.0
    %269 = vmatprep.subr.mxu0 0.0
    %270 = vmatpush1.msra.mxu0 0.0
    %271 = vmatprep.subr.mxu0 0.0
    %272 = vmatpush1.msra.mxu0 0.0
    %273 = vmatprep.subr.mxu0 0.0
    %274 = vmatpush1.msra.mxu0 0.0
    %275 = vmatprep.subr.mxu0 0.0
    %276 = vmatpush1.msra.mxu0 0.0
    %277 = vmatprep.subr.mxu0 0.0
    %278 = vmatpush1.msra.mxu0 0.0
    %279 = vmatprep.mubr.f32.mxu0 0.0
    %280 = vmatmul.mubr.f32.gmra.mrb[0].mxu0 %v209
    %v281 = vpop.f32.mrb[0].mxu0
    %v282 = vadd.f32 0.0, %v281
    %v283 = vpop.f32.mrb[0].mxu0
    %284 = vdwg.mxu0
    %vm285 = vcmask 15360
    %v287 = vsel %vm285, %v201, 0
    %vm289 = vcmask 1041408
    %v291 = vsel %vm289, %v204, 0
    %293 = vmatprep.subr.mxu0 0.0
    %294 = vmatpush1.msra.mxu0 %v291
    %295 = vmatprep.subr.mxu0 0.0
    %296 = vmatpush1.msra.mxu0 0.0
    %297 = vmatprep.subr.mxu0 0.0
    %298 = vmatpush1.msra.mxu0 0.0
    %299 = vmatprep.subr.mxu0 0.0
    %300 = vmatpush1.msra.mxu0 0.0
    %301 = vmatprep.subr.mxu0 0.0
    %302 = vmatpush1.msra.mxu0 0.0
    %303 = vmatprep.subr.mxu0 0.0
    %304 = vmatpush1.msra.mxu0 0.0
    %305 = vmatprep.subr.mxu0 0.0
    %306 = vmatpush1.msra.mxu0 0.0
    %307 = vmatprep.subr.mxu0 0.0
    %308 = vmatpush1.msra.mxu0 0.0
    %309 = vmatprep.subr.mxu0 0.0
    %310 = vmatpush1.msra.mxu0 0.0
    %311 = vmatprep.subr.mxu0 0.0
    %312 = vmatpush1.msra.mxu0 0.0
    %313 = vmatprep.subr.mxu0 0.0
    %314 = vmatpush1.msra.mxu0 0.0
    %315 = vmatprep.subr.mxu0 0.0
    %316 = vmatpush1.msra.mxu0 0.0
    %317 = vmatprep.subr.mxu0 0.0
    %318 = vmatpush1.msra.mxu0 0.0
    %319 = vmatprep.subr.mxu0 0.0
    %320 = vmatpush1.msra.mxu0 0.0
    %321 = vmatprep.subr.mxu0 0.0
    %322 = vmatpush1.msra.mxu0 0.0
    %323 = vmatprep.subr.mxu0 0.0
    %324 = vmatpush1.msra.mxu0 0.0
    %325 = vmatprep.subr.mxu0 0.0
    %326 = vmatpush1.msra.mxu0 0.0
    %327 = vmatprep.subr.mxu0 0.0
    %328 = vmatpush1.msra.mxu0 0.0
    %329 = vmatprep.subr.mxu0 0.0
    %330 = vmatpush1.msra.mxu0 0.0
    %331 = vmatprep.subr.mxu0 0.0
    %332 = vmatpush1.msra.mxu0 0.0
    %333 = vmatprep.subr.mxu0 0.0
    %334 = vmatpush1.msra.mxu0 0.0
    %335 = vmatprep.subr.mxu0 0.0
    %336 = vmatpush1.msra.mxu0 0.0
    %337 = vmatprep.subr.mxu0 0.0
    %338 = vmatpush1.msra.mxu0 0.0
    %339 = vmatprep.subr.mxu0 0.0
    %340 = vmatpush1.msra.mxu0 0.0
    %341 = vmatprep.subr.mxu0 0.0
    %342 = vmatpush1.msra.mxu0 0.0
    %343 = vmatprep.subr.mxu0 0.0
    %344 = vmatpush1.msra.mxu0 0.0
    %345 = vmatprep.subr.mxu0 0.0
    %346 = vmatpush1.msra.mxu0 0.0
    %347 = vmatprep.subr.mxu0 0.0
    %348 = vmatpush1.msra.mxu0 0.0
    %349 = vmatprep.subr.mxu0 0.0
    %350 = vmatpush1.msra.mxu0 0.0
    %351 = vmatprep.subr.mxu0 0.0
    %352 = vmatpush1.msra.mxu0 0.0
    %353 = vmatprep.subr.mxu0 0.0
    %354 = vmatpush1.msra.mxu0 0.0
    %355 = vmatprep.subr.mxu0 0.0
    %356 = vmatpush1.msra.mxu0 0.0
    %357 = vmatprep.mubr.f32.mxu0 0.0
    %358 = vmatmul.mubr.f32.gmra.mrb[0].mxu0 %v287
    %v359 = vpop.f32.mrb[0].mxu0
    %v360 = vadd.f32 %v282, %v359
    %v361 = vpop.f32.mrb[0].mxu0
    %362 = vdwg.mxu0
    %v363 = vld [vmem:[%s8] sm:$0x1]
    %v365 = vlaneseq
    %v366 = vshrl.u32 %v365, 7
    %v367 = vsub.s32 0, %v366
    %v368 = vrot.slane %v363, %v367
    %v370 = vadd.f32 %v360, %v368
    %v371 = vxor.u32 %v370, 2147483648
    %v372 = vmul.f32 %v371, 1.442695
    %v373 = vpow.pop %v372
    %v374 = vadd.f32 %v373, 1.0
    %v375 = vrcp.pop %v374
    %v376 = vmul.f32 1.0, %v375
    %vm377 = vcmask 9216
    %378 = vst.msk [vmem:[#allocation2] sm:$0x3] %vm377, %v376
    // Predicated region
    $region38: #{full_bert_forward.3} parent=1 // pred_check
      _
    $region39: #{full_bert_forward.3} parent=1 // pred_check_branch
      %380 = sbr.rel (0) target = $region41
    $region40: #{full_bert_forward.3} parent=1 // pred_region
      %s382 = ssub.s32 32, 32
      %383 = vsyncadd [#allocation3], %s382
      %s385 = sshll.u32 [#allocation2], 4
      %s386 = int_to_ptr.vmem [resolvable:$true] %s385
      %388 = dma.vmem_to_hbm [thread:$0]  %s386, 32, %s9, [#allocation3]
    $region41: #{full_bert_forward.3} parent=1 // pred_fallthru
      _
    // Predicated region
    $region42: #{full_bert_forward.3} parent=1 // pred_check
      _
    $region43: #{full_bert_forward.3} parent=1 // pred_check_branch
      %390 = sbr.rel (0) target = $region45
    $region44: #{full_bert_forward.3} parent=1 // pred_region
      %391 = dma.done [#allocation3], 32
    $region45: #{full_bert_forward.3} parent=1 // pred_fallthru
      _
    %392 = vsyncpa [#allocation3], 1

// kernel: full_bert_forward.2
$region0: #{full_bert_forward.2}
  #allocation0 [shape = 'u32[]', space=smem, size = 0x4, offset = 0x4, fixed_abs, tag = 'smem constant byte address 0x4 - core index']
  #allocation1 [shape = 'u32[144,128]{1,0:T(1,128)}', space=vmem, size = 0x12000, scoped, tag = 'internal scratch']
  %s0 = inlined_call_operand.vmem [shape: f32[16,32], index: 0, kind: input, shape index: {}]
  %s1 = inlined_call_operand.vmem [shape: f32[2,1,8], index: 1, kind: input, shape index: {}]
  %s2 = inlined_call_operand.vmem [shape: f32[1,32], index: 2, kind: input, shape index: {}]
  %s3 = inlined_call_operand.vmem [shape: f32[1,32], index: 3, kind: input, shape index: {}]
  %s4 = inlined_call_operand.vmem [shape: f32[2,32,96], index: 4, kind: input, shape index: {}]
  %s5 = inlined_call_operand.vmem [shape: f32[2,1,96], index: 5, kind: input, shape index: {}]
  %s6 = inlined_call_operand.vmem [shape: f32[2,32,32], index: 6, kind: input, shape index: {}]
  %s7 = inlined_call_operand.vmem [shape: f32[2,1,32], index: 7, kind: input, shape index: {}]
  %s8 = inlined_call_operand.vmem [shape: f32[2,1,32], index: 8, kind: input, shape index: {}]
  %s9 = inlined_call_operand.vmem [shape: f32[2,1,32], index: 9, kind: input, shape index: {}]
  %s10 = inlined_call_operand.vmem [shape: f32[2,32,128], index: 10, kind: input, shape index: {}]
  %s11 = inlined_call_operand.vmem [shape: f32[2,1,128], index: 11, kind: input, shape index: {}]
  %s12 = inlined_call_operand.vmem [shape: f32[2,128,32], index: 12, kind: input, shape index: {}]
  %s13 = inlined_call_operand.vmem [shape: f32[2,1,32], index: 13, kind: input, shape index: {}]
  %s14 = inlined_call_operand.vmem [shape: f32[2,1,32], index: 14, kind: input, shape index: {}]
  %s15 = inlined_call_operand.vmem [shape: f32[2,1,32], index: 15, kind: input, shape index: {}]
  %s16 = inlined_call_operand.vmem [shape: f32[16,32], index: 16, kind: output, shape index: {}]
  %s17 = sld [smem:[#allocation0]]
  $region101: #{full_bert_forward.2} parent=0
    _
  %s19 = ssub.s32 1, %s17
  %s20 = scalar_select 0, %s19, %s17
  loop: start=0, step=1, limit=4
  $region2: #{full_bert_forward.2} parent=0 // loop_pre_header
    _
  $region3: #{full_bert_forward.2} parent=0 // loop_header
    %s22 = sphi 0, %s26
    %p23 = scmp.ge.s32.totalorder %s22, 4
    %s30 = sphi 0, %s30
    %s32 = sphi 0, %s30
    %s33 = sphi 0, %s32
    %s47 = sphi 0, %s33
    %s51 = sphi 0, %s51
    %s53 = sphi 0, %s51
    %s54 = sphi 0, %s53
    %s68 = sphi 0, %s54
    %s72 = sphi 0, %s72
    %s74 = sphi 0, %s72
    %s75 = sphi 0, %s74
    %s89 = sphi 0, %s75
    %s93 = sphi 0, %s93
    %s95 = sphi 0, %s93
    %s96 = sphi 0, %s95
    %s110 = sphi 0, %s96
    %s116 = sphi 0, %s118
    %s119 = sphi 0, %s116
    %s120 = sphi 0, %s119
    %s136 = sphi 0, %s120
    %s142 = sphi 0, %s144
    %s145 = sphi 0, %s142
    %s146 = sphi 0, %s145
    %s162 = sphi 0, %s146
    %s168 = sphi 0, %s170
    %s171 = sphi 0, %s168
    %s172 = sphi 0, %s171
    %s188 = sphi 0, %s172
    %s194 = sphi 0, %s196
    %s197 = sphi 0, %s194
    %s198 = sphi 0, %s197
    %s214 = sphi 0, %s198
    %s220 = sphi 0, %s222
    %s223 = sphi 0, %s220
    %s224 = sphi 0, %s223
    %s240 = sphi 0, %s224
    %s246 = sphi 0, %s248
    %s249 = sphi 0, %s246
    %s250 = sphi 0, %s249
    %s266 = sphi 0, %s250
    %s272 = sphi 0, %s274
    %s275 = sphi 0, %s272
    %s276 = sphi 0, %s275
    %s292 = sphi 0, %s276
    %s298 = sphi 0, %s300
    %s301 = sphi 0, %s298
    %s302 = sphi 0, %s301
    %s318 = sphi 0, %s302
    %s324 = sphi 0, %s326
    %s327 = sphi 0, %s324
    %s328 = sphi 0, %s327
    %s344 = sphi 0, %s328
    %s350 = sphi 0, %s352
    %s353 = sphi 0, %s350
    %s354 = sphi 0, %s353
    %s370 = sphi 0, %s354
    %s376 = sphi 0, %s378
    %s379 = sphi 0, %s376
    %s380 = sphi 0, %s379
    %s396 = sphi 0, %s380
    %s402 = sphi 0, %s404
    %s405 = sphi 0, %s402
    %s406 = sphi 0, %s405
    %s422 = sphi 0, %s406
    %s426 = sphi 0, %s426
    %s428 = sphi 0, %s426
    %s429 = sphi 0, %s428
    %s443 = sphi 0, %s429
  $region4: #{full_bert_forward.2} parent=0 // loop_header_branch
    %25 = sbr.rel (%p23) target = $region8
  $region5: #{full_bert_forward.2} parent=0 // loop_body
    %s27 = ssub.s32 %s22, 1
    %s28 = ssub.s32 %s22, 2
    %s29 = sadd.s32 %s22, 1
    %s31 = sadd.s32 %s30, 1
    %p34 = scmp.eq.s32.totalorder %s22, 1
    %p35 = scmp.ne.s32.totalorder %s30, %s32
    %p36 = scmp.eq.s32.totalorder %s22, 0
    %p37 = por %p35, %p36
    %p38 = scmp.ne.s32.totalorder %s30, %s32
    %p39 = scmp.eq.s32.totalorder %s27, 1
    %p40 = por %p38, %p39
    %p41 = scmp.ne.s32.totalorder %s32, %s33
    %p42 = scmp.eq.s32.totalorder %s27, 0
    %p43 = por %p41, %p42
    %p44 = scmp.ne.s32.totalorder %s32, %s33
    %p45 = scmp.eq.s32.totalorder %s28, 1
    %p46 = por %p44, %p45
    %p48 = scmp.ne.s32.totalorder %s33, %s47
    %p49 = scmp.eq.s32.totalorder %s28, 0
    %p50 = por %p48, %p49
    %s52 = sadd.s32 %s51, 1
    %p55 = scmp.eq.s32.totalorder %s22, 1
    %p56 = scmp.ne.s32.totalorder %s51, %s53
    %p57 = scmp.eq.s32.totalorder %s22, 0
    %p58 = por %p56, %p57
    %p59 = scmp.ne.s32.totalorder %s51, %s53
    %p60 = scmp.eq.s32.totalorder %s27, 1
    %p61 = por %p59, %p60
    %p62 = scmp.ne.s32.totalorder %s53, %s54
    %p63 = scmp.eq.s32.totalorder %s27, 0
    %p64 = por %p62, %p63
    %p65 = scmp.ne.s32.totalorder %s53, %s54
    %p66 = scmp.eq.s32.totalorder %s28, 1
    %p67 = por %p65, %p66
    %p69 = scmp.ne.s32.totalorder %s54, %s68
    %p70 = scmp.eq.s32.totalorder %s28, 0
    %p71 = por %p69, %p70
    %s73 = sadd.s32 %s72, 1
    %p76 = scmp.eq.s32.totalorder %s22, 1
    %p77 = scmp.ne.s32.totalorder %s72, %s74
    %p78 = scmp.eq.s32.totalorder %s22, 0
    %p79 = por %p77, %p78
    %p80 = scmp.ne.s32.totalorder %s72, %s74
    %p81 = scmp.eq.s32.totalorder %s27, 1
    %p82 = por %p80, %p81
    %p83 = scmp.ne.s32.totalorder %s74, %s75
    %p84 = scmp.eq.s32.totalorder %s27, 0
    %p85 = por %p83, %p84
    %p86 = scmp.ne.s32.totalorder %s74, %s75
    %p87 = scmp.eq.s32.totalorder %s28, 1
    %p88 = por %p86, %p87
    %p90 = scmp.ne.s32.totalorder %s75, %s89
    %p91 = scmp.eq.s32.totalorder %s28, 0
    %p92 = por %p90, %p91
    %s94 = sadd.s32 %s93, 1
    %p97 = scmp.eq.s32.totalorder %s22, 1
    %p98 = scmp.ne.s32.totalorder %s93, %s95
    %p99 = scmp.eq.s32.totalorder %s22, 0
    %p100 = por %p98, %p99
    %p101 = scmp.ne.s32.totalorder %s93, %s95
    %p102 = scmp.eq.s32.totalorder %s27, 1
    %p103 = por %p101, %p102
    %p104 = scmp.ne.s32.totalorder %s95, %s96
    %p105 = scmp.eq.s32.totalorder %s27, 0
    %p106 = por %p104, %p105
    %p107 = scmp.ne.s32.totalorder %s95, %s96
    %p108 = scmp.eq.s32.totalorder %s28, 1
    %p109 = por %p107, %p108
    %p111 = scmp.ne.s32.totalorder %s96, %s110
    %p112 = scmp.eq.s32.totalorder %s28, 0
    %p113 = por %p111, %p112
    %s114 = ssub.s32 %s22, %s29
    %p115 = scmp.eq.s32.totalorder %s114, 0
    %s117 = sadd.s32 %s116, 1
    %s118 = scalar_select %p115, %s116, %s117
    %p121 = pneg %p115
    %p122 = scmp.eq.s32.totalorder %s22, 1
    %p123 = por %p121, %p122
    %p124 = scmp.ne.s32.totalorder %s116, %s119
    %p125 = scmp.eq.s32.totalorder %s22, 0
    %p126 = por %p124, %p125
    %p127 = scmp.ne.s32.totalorder %s116, %s119
    %p128 = scmp.eq.s32.totalorder %s27, 1
    %p129 = por %p127, %p128
    %p130 = scmp.ne.s32.totalorder %s119, %s120
    %p131 = scmp.eq.s32.totalorder %s27, 0
    %p132 = por %p130, %p131
    %p133 = scmp.ne.s32.totalorder %s119, %s120
    %p134 = scmp.eq.s32.totalorder %s28, 1
    %p135 = por %p133, %p134
    %p137 = scmp.ne.s32.totalorder %s120, %s136
    %p138 = scmp.eq.s32.totalorder %s28, 0
    %p139 = por %p137, %p138
    %s140 = ssub.s32 %s22, %s29
    %p141 = scmp.eq.s32.totalorder %s140, 0
    %s143 = sadd.s32 %s142, 1
    %s144 = scalar_select %p141, %s142, %s143
    %p147 = pneg %p141
    %p148 = scmp.eq.s32.totalorder %s22, 1
    %p149 = por %p147, %p148
    %p150 = scmp.ne.s32.totalorder %s142, %s145
    %p151 = scmp.eq.s32.totalorder %s22, 0
    %p152 = por %p150, %p151
    %p153 = scmp.ne.s32.totalorder %s142, %s145
    %p154 = scmp.eq.s32.totalorder %s27, 1
    %p155 = por %p153, %p154
    %p156 = scmp.ne.s32.totalorder %s145, %s146
    %p157 = scmp.eq.s32.totalorder %s27, 0
    %p158 = por %p156, %p157
    %p159 = scmp.ne.s32.totalorder %s145, %s146
    %p160 = scmp.eq.s32.totalorder %s28, 1
    %p161 = por %p159, %p160
    %p163 = scmp.ne.s32.totalorder %s146, %s162
    %p164 = scmp.eq.s32.totalorder %s28, 0
    %p165 = por %p163, %p164
    %s166 = ssub.s32 %s22, %s29
    %p167 = scmp.eq.s32.totalorder %s166, 0
    %s169 = sadd.s32 %s168, 1
    %s170 = scalar_select %p167, %s168, %s169
    %p173 = pneg %p167
    %p174 = scmp.eq.s32.totalorder %s22, 1
    %p175 = por %p173, %p174
    %p176 = scmp.ne.s32.totalorder %s168, %s171
    %p177 = scmp.eq.s32.totalorder %s22, 0
    %p178 = por %p176, %p177
    %p179 = scmp.ne.s32.totalorder %s168, %s171
    %p180 = scmp.eq.s32.totalorder %s27, 1
    %p181 = por %p179, %p180
    %p182 = scmp.ne.s32.totalorder %s171, %s172
    %p183 = scmp.eq.s32.totalorder %s27, 0
    %p184 = por %p182, %p183
    %p185 = scmp.ne.s32.totalorder %s171, %s172
    %p186 = scmp.eq.s32.totalorder %s28, 1
    %p187 = por %p185, %p186
    %p189 = scmp.ne.s32.totalorder %s172, %s188
    %p190 = scmp.eq.s32.totalorder %s28, 0
    %p191 = por %p189, %p190
    %s192 = ssub.s32 %s22, %s29
    %p193 = scmp.eq.s32.totalorder %s192, 0
    %s195 = sadd.s32 %s194, 1
    %s196 = scalar_select %p193, %s194, %s195
    %p199 = pneg %p193
    %p200 = scmp.eq.s32.totalorder %s22, 1
    %p201 = por %p199, %p200
    %p202 = scmp.ne.s32.totalorder %s194, %s197
    %p203 = scmp.eq.s32.totalorder %s22, 0
    %p204 = por %p202, %p203
    %p205 = scmp.ne.s32.totalorder %s194, %s197
    %p206 = scmp.eq.s32.totalorder %s27, 1
    %p207 = por %p205, %p206
    %p208 = scmp.ne.s32.totalorder %s197, %s198
    %p209 = scmp.eq.s32.totalorder %s27, 0
    %p210 = por %p208, %p209
    %p211 = scmp.ne.s32.totalorder %s197, %s198
    %p212 = scmp.eq.s32.totalorder %s28, 1
    %p213 = por %p211, %p212
    %p215 = scmp.ne.s32.totalorder %s198, %s214
    %p216 = scmp.eq.s32.totalorder %s28, 0
    %p217 = por %p215, %p216
    %s218 = ssub.s32 %s22, %s29
    %p219 = scmp.eq.s32.totalorder %s218, 0
    %s221 = sadd.s32 %s220, 1
    %s222 = scalar_select %p219, %s220, %s221
    %p225 = pneg %p219
    %p226 = scmp.eq.s32.totalorder %s22, 1
    %p227 = por %p225, %p226
    %p228 = scmp.ne.s32.totalorder %s220, %s223
    %p229 = scmp.eq.s32.totalorder %s22, 0
    %p230 = por %p228, %p229
    %p231 = scmp.ne.s32.totalorder %s220, %s223
    %p232 = scmp.eq.s32.totalorder %s27, 1
    %p233 = por %p231, %p232
    %p234 = scmp.ne.s32.totalorder %s223, %s224
    %p235 = scmp.eq.s32.totalorder %s27, 0
    %p236 = por %p234, %p235
    %p237 = scmp.ne.s32.totalorder %s223, %s224
    %p238 = scmp.eq.s32.totalorder %s28, 1
    %p239 = por %p237, %p238
    %p241 = scmp.ne.s32.totalorder %s224, %s240
    %p242 = scmp.eq.s32.totalorder %s28, 0
    %p243 = por %p241, %p242
    %s244 = ssub.s32 %s22, %s29
    %p245 = scmp.eq.s32.totalorder %s244, 0
    %s247 = sadd.s32 %s246, 1
    %s248 = scalar_select %p245, %s246, %s247
    %p251 = pneg %p245
    %p252 = scmp.eq.s32.totalorder %s22, 1
    %p253 = por %p251, %p252
    %p254 = scmp.ne.s32.totalorder %s246, %s249
    %p255 = scmp.eq.s32.totalorder %s22, 0
    %p256 = por %p254, %p255
    %p257 = scmp.ne.s32.totalorder %s246, %s249
    %p258 = scmp.eq.s32.totalorder %s27, 1
    %p259 = por %p257, %p258
    %p260 = scmp.ne.s32.totalorder %s249, %s250
    %p261 = scmp.eq.s32.totalorder %s27, 0
    %p262 = por %p260, %p261
    %p263 = scmp.ne.s32.totalorder %s249, %s250
    %p264 = scmp.eq.s32.totalorder %s28, 1
    %p265 = por %p263, %p264
    %p267 = scmp.ne.s32.totalorder %s250, %s266
    %p268 = scmp.eq.s32.totalorder %s28, 0
    %p269 = por %p267, %p268
    %s270 = ssub.s32 %s22, %s29
    %p271 = scmp.eq.s32.totalorder %s270, 0
    %s273 = sadd.s32 %s272, 1
    %s274 = scalar_select %p271, %s272, %s273
    %p277 = pneg %p271
    %p278 = scmp.eq.s32.totalorder %s22, 1
    %p279 = por %p277, %p278
    %p280 = scmp.ne.s32.totalorder %s272, %s275
    %p281 = scmp.eq.s32.totalorder %s22, 0
    %p282 = por %p280, %p281
    %p283 = scmp.ne.s32.totalorder %s272, %s275
    %p284 = scmp.eq.s32.totalorder %s27, 1
    %p285 = por %p283, %p284
    %p286 = scmp.ne.s32.totalorder %s275, %s276
    %p287 = scmp.eq.s32.totalorder %s27, 0
    %p288 = por %p286, %p287
    %p289 = scmp.ne.s32.totalorder %s275, %s276
    %p290 = scmp.eq.s32.totalorder %s28, 1
    %p291 = por %p289, %p290
    %p293 = scmp.ne.s32.totalorder %s276, %s292
    %p294 = scmp.eq.s32.totalorder %s28, 0
    %p295 = por %p293, %p294
    %s296 = ssub.s32 %s22, %s29
    %p297 = scmp.eq.s32.totalorder %s296, 0
    %s299 = sadd.s32 %s298, 1
    %s300 = scalar_select %p297, %s298, %s299
    %p303 = pneg %p297
    %p304 = scmp.eq.s32.totalorder %s22, 1
    %p305 = por %p303, %p304
    %p306 = scmp.ne.s32.totalorder %s298, %s301
    %p307 = scmp.eq.s32.totalorder %s22, 0
    %p308 = por %p306, %p307
    %p309 = scmp.ne.s32.totalorder %s298, %s301
    %p310 = scmp.eq.s32.totalorder %s27, 1
    %p311 = por %p309, %p310
    %p312 = scmp.ne.s32.totalorder %s301, %s302
    %p313 = scmp.eq.s32.totalorder %s27, 0
    %p314 = por %p312, %p313
    %p315 = scmp.ne.s32.totalorder %s301, %s302
    %p316 = scmp.eq.s32.totalorder %s28, 1
    %p317 = por %p315, %p316
    %p319 = scmp.ne.s32.totalorder %s302, %s318
    %p320 = scmp.eq.s32.totalorder %s28, 0
    %p321 = por %p319, %p320
    %s322 = ssub.s32 %s22, %s29
    %p323 = scmp.eq.s32.totalorder %s322, 0
    %s325 = sadd.s32 %s324, 1
    %s326 = scalar_select %p323, %s324, %s325
    %p329 = pneg %p323
    %p330 = scmp.eq.s32.totalorder %s22, 1
    %p331 = por %p329, %p330
    %p332 = scmp.ne.s32.totalorder %s324, %s327
    %p333 = scmp.eq.s32.totalorder %s22, 0
    %p334 = por %p332, %p333
    %p335 = scmp.ne.s32.totalorder %s324, %s327
    %p336 = scmp.eq.s32.totalorder %s27, 1
    %p337 = por %p335, %p336
    %p338 = scmp.ne.s32.totalorder %s327, %s328
    %p339 = scmp.eq.s32.totalorder %s27, 0
    %p340 = por %p338, %p339
    %p341 = scmp.ne.s32.totalorder %s327, %s328
    %p342 = scmp.eq.s32.totalorder %s28, 1
    %p343 = por %p341, %p342
    %p345 = scmp.ne.s32.totalorder %s328, %s344
    %p346 = scmp.eq.s32.totalorder %s28, 0
    %p347 = por %p345, %p346
    %s348 = ssub.s32 %s22, %s29
    %p349 = scmp.eq.s32.totalorder %s348, 0
    %s351 = sadd.s32 %s350, 1
    %s352 = scalar_select %p349, %s350, %s351
    %p355 = pneg %p349
    %p356 = scmp.eq.s32.totalorder %s22, 1
    %p357 = por %p355, %p356
    %p358 = scmp.ne.s32.totalorder %s350, %s353
    %p359 = scmp.eq.s32.totalorder %s22, 0
    %p360 = por %p358, %p359
    %p361 = scmp.ne.s32.totalorder %s350, %s353
    %p362 = scmp.eq.s32.totalorder %s27, 1
    %p363 = por %p361, %p362
    %p364 = scmp.ne.s32.totalorder %s353, %s354
    %p365 = scmp.eq.s32.totalorder %s27, 0
    %p366 = por %p364, %p365
    %p367 = scmp.ne.s32.totalorder %s353, %s354
    %p368 = scmp.eq.s32.totalorder %s28, 1
    %p369 = por %p367, %p368
    %p371 = scmp.ne.s32.totalorder %s354, %s370
    %p372 = scmp.eq.s32.totalorder %s28, 0
    %p373 = por %p371, %p372
    %s374 = ssub.s32 %s22, %s29
    %p375 = scmp.eq.s32.totalorder %s374, 0
    %s377 = sadd.s32 %s376, 1
    %s378 = scalar_select %p375, %s376, %s377
    %p381 = pneg %p375
    %p382 = scmp.eq.s32.totalorder %s22, 1
    %p383 = por %p381, %p382
    %p384 = scmp.ne.s32.totalorder %s376, %s379
    %p385 = scmp.eq.s32.totalorder %s22, 0
    %p386 = por %p384, %p385
    %p387 = scmp.ne.s32.totalorder %s376, %s379
    %p388 = scmp.eq.s32.totalorder %s27, 1
    %p389 = por %p387, %p388
    %p390 = scmp.ne.s32.totalorder %s379, %s380
    %p391 = scmp.eq.s32.totalorder %s27, 0
    %p392 = por %p390, %p391
    %p393 = scmp.ne.s32.totalorder %s379, %s380
    %p394 = scmp.eq.s32.totalorder %s28, 1
    %p395 = por %p393, %p394
    %p397 = scmp.ne.s32.totalorder %s380, %s396
    %p398 = scmp.eq.s32.totalorder %s28, 0
    %p399 = por %p397, %p398
    %s400 = ssub.s32 %s22, %s29
    %p401 = scmp.eq.s32.totalorder %s400, 0
    %s403 = sadd.s32 %s402, 1
    %s404 = scalar_select %p401, %s402, %s403
    %p407 = pneg %p401
    %p408 = scmp.eq.s32.totalorder %s22, 1
    %p409 = por %p407, %p408
    %p410 = scmp.ne.s32.totalorder %s402, %s405
    %p411 = scmp.eq.s32.totalorder %s22, 0
    %p412 = por %p410, %p411
    %p413 = scmp.ne.s32.totalorder %s402, %s405
    %p414 = scmp.eq.s32.totalorder %s27, 1
    %p415 = por %p413, %p414
    %p416 = scmp.ne.s32.totalorder %s405, %s406
    %p417 = scmp.eq.s32.totalorder %s27, 0
    %p418 = por %p416, %p417
    %p419 = scmp.ne.s32.totalorder %s405, %s406
    %p420 = scmp.eq.s32.totalorder %s28, 1
    %p421 = por %p419, %p420
    %p423 = scmp.ne.s32.totalorder %s406, %s422
    %p424 = scmp.eq.s32.totalorder %s28, 0
    %p425 = por %p423, %p424
    %s427 = sadd.s32 %s426, 1
    %p430 = scmp.eq.s32.totalorder %s22, 1
    %p431 = scmp.ne.s32.totalorder %s426, %s428
    %p432 = scmp.eq.s32.totalorder %s22, 0
    %p433 = por %p431, %p432
    %p434 = scmp.ne.s32.totalorder %s426, %s428
    %p435 = scmp.eq.s32.totalorder %s27, 1
    %p436 = por %p434, %p435
    %p437 = scmp.ne.s32.totalorder %s428, %s429
    %p438 = scmp.eq.s32.totalorder %s27, 0
    %p439 = por %p437, %p438
    %p440 = scmp.ne.s32.totalorder %s428, %s429
    %p441 = scmp.eq.s32.totalorder %s28, 1
    %p442 = por %p440, %p441
    %p444 = scmp.ne.s32.totalorder %s429, %s443
    %p445 = scmp.eq.s32.totalorder %s28, 0
    %p446 = por %p444, %p445
    %p447 = scmp.le.s32.totalorder 1, %s22
    %p448 = scmp.lt.s32.totalorder %s22, 3
    %p449 = pnand %p447, %p448
    %p450 = pneg %p449
    // Predicated region
    $region9: #{full_bert_forward.2} parent=5 // pred_check
      _
    $region10: #{full_bert_forward.2} parent=5 // pred_check_branch
      %452 = sbr.rel (%p449) target = $region12
    $region11: #{full_bert_forward.2} parent=5 // pred_region
      %s453 = ssub.s32 %s22, 1
      // Predicated region
      $region13: #{full_bert_forward.2} parent=11 // pred_check
        %p454 = pneg %p43
      $region14: #{full_bert_forward.2} parent=11 // pred_check_branch
        %456 = sbr.rel (%p454) target = $region16
      $region15: #{full_bert_forward.2} parent=11 // pred_region
        _
      $region16: #{full_bert_forward.2} parent=11 // pred_fallthru
        _
      // Predicated region
      $region17: #{full_bert_forward.2} parent=11 // pred_check
        %p457 = pneg %p64
      $region18: #{full_bert_forward.2} parent=11 // pred_check_branch
        %459 = sbr.rel (%p457) target = $region20
      $region19: #{full_bert_forward.2} parent=11 // pred_region
        _
      $region20: #{full_bert_forward.2} parent=11 // pred_fallthru
        _
      // Predicated region
      $region21: #{full_bert_forward.2} parent=11 // pred_check
        %p460 = pneg %p85
      $region22: #{full_bert_forward.2} parent=11 // pred_check_branch
        %462 = sbr.rel (%p460) target = $region24
      $region23: #{full_bert_forward.2} parent=11 // pred_region
        _
      $region24: #{full_bert_forward.2} parent=11 // pred_fallthru
        _
      // Predicated region
      $region25: #{full_bert_forward.2} parent=11 // pred_check
        %p463 = pneg %p106
      $region26: #{full_bert_forward.2} parent=11 // pred_check_branch
        %465 = sbr.rel (%p463) target = $region28
      $region27: #{full_bert_forward.2} parent=11 // pred_region
        _
      $region28: #{full_bert_forward.2} parent=11 // pred_fallthru
        _
    $region12: #{full_bert_forward.2} parent=5 // pred_fallthru
      _
    %p466 = scmp.lt.s32.totalorder %s22, 2
    // Predicated region
    $region29: #{full_bert_forward.2} parent=5 // pred_check
      %p467 = pneg %p466
    $region30: #{full_bert_forward.2} parent=5 // pred_check_branch
      %469 = sbr.rel (%p467) target = $region32
    $region31: #{full_bert_forward.2} parent=5 // pred_region
      // Predicated region
      $region33: #{full_bert_forward.2} parent=31 // pred_check
        %p470 = pneg %p126
      $region34: #{full_bert_forward.2} parent=31 // pred_check_branch
        %472 = sbr.rel (%p470) target = $region36
      $region35: #{full_bert_forward.2} parent=31 // pred_region
        %p473 = scmp.lt.s32.totalorder %s22, 1
        %s474 = scalar_select %p473, %s22, 1
        %s475 = smul.addr %s474, 4
        %s476 = smul.addr %s475, 8
        %s477 = scalar_lea.vmem %s4, %s476
      $region36: #{full_bert_forward.2} parent=31 // pred_fallthru
        _
      // Predicated region
      $region37: #{full_bert_forward.2} parent=31 // pred_check
        %p478 = pneg %p152
      $region38: #{full_bert_forward.2} parent=31 // pred_check_branch
        %480 = sbr.rel (%p478) target = $region40
      $region39: #{full_bert_forward.2} parent=31 // pred_region
        %p481 = scmp.lt.s32.totalorder %s22, 1
        %s482 = scalar_select %p481, %s22, 1
        %s483 = scalar_lea.vmem %s5, %s482
      $region40: #{full_bert_forward.2} parent=31 // pred_fallthru
        _
      // Predicated region
      $region41: #{full_bert_forward.2} parent=31 // pred_check
        %p484 = pneg %p178
      $region42: #{full_bert_forward.2} parent=31 // pred_check_branch
        %486 = sbr.rel (%p484) target = $region44
      $region43: #{full_bert_forward.2} parent=31 // pred_region
        %p487 = scmp.lt.s32.totalorder %s22, 1
        %s488 = scalar_select %p487, %s22, 1
        %s489 = smul.addr %s488, 4
        %s490 = smul.addr %s489, 8
        %s491 = scalar_lea.vmem %s6, %s490
      $region44: #{full_bert_forward.2} parent=31 // pred_fallthru
        _
      // Predicated region
      $region45: #{full_bert_forward.2} parent=31 // pred_check
        %p492 = pneg %p204
      $region46: #{full_bert_forward.2} parent=31 // pred_check_branch
        %494 = sbr.rel (%p492) target = $region48
      $region47: #{full_bert_forward.2} parent=31 // pred_region
        %p495 = scmp.lt.s32.totalorder %s22, 1
        %s496 = scalar_select %p495, %s22, 1
        %s497 = scalar_lea.vmem %s7, %s496
      $region48: #{full_bert_forward.2} parent=31 // pred_fallthru
        _
      // Predicated region
      $region49: #{full_bert_forward.2} parent=31 // pred_check
        %p498 = pneg %p230
      $region50: #{full_bert_forward.2} parent=31 // pred_check_branch
        %500 = sbr.rel (%p498) target = $region52
      $region51: #{full_bert_forward.2} parent=31 // pred_region
        %p501 = scmp.lt.s32.totalorder %s22, 1
        %s502 = scalar_select %p501, %s22, 1
        %s503 = scalar_lea.vmem %s8, %s502
      $region52: #{full_bert_forward.2} parent=31 // pred_fallthru
        _
      // Predicated region
      $region53: #{full_bert_forward.2} parent=31 // pred_check
        %p504 = pneg %p256
      $region54: #{full_bert_forward.2} parent=31 // pred_check_branch
        %506 = sbr.rel (%p504) target = $region56
      $region55: #{full_bert_forward.2} parent=31 // pred_region
        %p507 = scmp.lt.s32.totalorder %s22, 1
        %s508 = scalar_select %p507, %s22, 1
        %s509 = scalar_lea.vmem %s9, %s508
      $region56: #{full_bert_forward.2} parent=31 // pred_fallthru
        _
      // Predicated region
      $region57: #{full_bert_forward.2} parent=31 // pred_check
        %p510 = pneg %p282
      $region58: #{full_bert_forward.2} parent=31 // pred_check_branch
        %512 = sbr.rel (%p510) target = $region60
      $region59: #{full_bert_forward.2} parent=31 // pred_region
        %p513 = scmp.lt.s32.totalorder %s22, 1
        %s514 = scalar_select %p513, %s22, 1
        %s515 = smul.addr %s514, 4
        %s516 = smul.addr %s515, 8
        %s517 = scalar_lea.vmem %s10, %s516
      $region60: #{full_bert_forward.2} parent=31 // pred_fallthru
        _
      // Predicated region
      $region61: #{full_bert_forward.2} parent=31 // pred_check
        %p518 = pneg %p308
      $region62: #{full_bert_forward.2} parent=31 // pred_check_branch
        %520 = sbr.rel (%p518) target = $region64
      $region63: #{full_bert_forward.2} parent=31 // pred_region
        %p521 = scmp.lt.s32.totalorder %s22, 1
        %s522 = scalar_select %p521, %s22, 1
        %s523 = scalar_lea.vmem %s11, %s522
      $region64: #{full_bert_forward.2} parent=31 // pred_fallthru
        _
      // Predicated region
      $region65: #{full_bert_forward.2} parent=31 // pred_check
        %p524 = pneg %p334
      $region66: #{full_bert_forward.2} parent=31 // pred_check_branch
        %526 = sbr.rel (%p524) target = $region68
      $region67: #{full_bert_forward.2} parent=31 // pred_region
        %p527 = scmp.lt.s32.totalorder %s22, 1
        %s528 = scalar_select %p527, %s22, 1
        %s529 = smul.addr %s528, 16
        %s530 = smul.addr %s529, 8
        %s531 = scalar_lea.vmem %s12, %s530
      $region68: #{full_bert_forward.2} parent=31 // pred_fallthru
        _
      // Predicated region
      $region69: #{full_bert_forward.2} parent=31 // pred_check
        %p532 = pneg %p360
      $region70: #{full_bert_forward.2} parent=31 // pred_check_branch
        %534 = sbr.rel (%p532) target = $region72
      $region71: #{full_bert_forward.2} parent=31 // pred_region
        %p535 = scmp.lt.s32.totalorder %s22, 1
        %s536 = scalar_select %p535, %s22, 1
        %s537 = scalar_lea.vmem %s13, %s536
      $region72: #{full_bert_forward.2} parent=31 // pred_fallthru
        _
      // Predicated region
      $region73: #{full_bert_forward.2} parent=31 // pred_check
        %p538 = pneg %p386
      $region74: #{full_bert_forward.2} parent=31 // pred_check_branch
        %540 = sbr.rel (%p538) target = $region76
      $region75: #{full_bert_forward.2} parent=31 // pred_region
        %p541 = scmp.lt.s32.totalorder %s22, 1
        %s542 = scalar_select %p541, %s22, 1
        %s543 = scalar_lea.vmem %s14, %s542
      $region76: #{full_bert_forward.2} parent=31 // pred_fallthru
        _
      // Predicated region
      $region77: #{full_bert_forward.2} parent=31 // pred_check
        %p544 = pneg %p412
      $region78: #{full_bert_forward.2} parent=31 // pred_check_branch
        %546 = sbr.rel (%p544) target = $region80
      $region79: #{full_bert_forward.2} parent=31 // pred_region
        %p547 = scmp.lt.s32.totalorder %s22, 1
        %s548 = scalar_select %p547, %s22, 1
        %s549 = scalar_lea.vmem %s15, %s548
      $region80: #{full_bert_forward.2} parent=31 // pred_fallthru
        _
    $region32: #{full_bert_forward.2} parent=5 // pred_fallthru
      _
    %p550 = scmp.le.s32.totalorder 1, %s22
    %p551 = scmp.lt.s32.totalorder %s22, 3
    %p552 = pnand %p550, %p551
    %p553 = pneg %p552
    // Predicated region
    $region81: #{full_bert_forward.2} parent=5 // pred_check
      _
    $region82: #{full_bert_forward.2} parent=5 // pred_check_branch
      %555 = sbr.rel (%p552) target = $region84
    $region83: #{full_bert_forward.2} parent=5 // pred_region
      %s556 = ssub.s32 %s22, 1
      %p557 = pneg %p43
      %p558 = pneg %p40
      %p559 = pneg %p64
      %p560 = pneg %p61
      %p561 = pneg %p85
      %p562 = pneg %p82
      %p563 = pneg %p106
      %p564 = pneg %p103
      %p565 = scmp.lt.s32.totalorder %s27, 1
      %s566 = scalar_select %p565, %s27, 1
      %s567 = smul.addr %s566, 4
      %s568 = smul.addr %s567, 8
      %s569 = scalar_lea.vmem %s4, %s568
      %p570 = pneg %p132
      %p571 = pneg %p129
      %p572 = scmp.lt.s32.totalorder %s27, 1
      %s573 = scalar_select %p572, %s27, 1
      %s574 = scalar_lea.vmem %s5, %s573
      %p575 = pneg %p158
      %p576 = pneg %p155
      %p577 = scmp.lt.s32.totalorder %s27, 1
      %s578 = scalar_select %p577, %s27, 1
      %s579 = smul.addr %s578, 4
      %s580 = smul.addr %s579, 8
      %s581 = scalar_lea.vmem %s6, %s580
      %p582 = pneg %p184
      %p583 = pneg %p181
      %p584 = scmp.lt.s32.totalorder %s27, 1
      %s585 = scalar_select %p584, %s27, 1
      %s586 = scalar_lea.vmem %s7, %s585
      %p587 = pneg %p210
      %p588 = pneg %p207
      %p589 = scmp.lt.s32.totalorder %s27, 1
      %s590 = scalar_select %p589, %s27, 1
      %s591 = scalar_lea.vmem %s8, %s590
      %p592 = pneg %p236
      %p593 = pneg %p233
      %p594 = scmp.lt.s32.totalorder %s27, 1
      %s595 = scalar_select %p594, %s27, 1
      %s596 = scalar_lea.vmem %s9, %s595
      %p597 = pneg %p262
      %p598 = pneg %p259
      %p599 = scmp.lt.s32.totalorder %s27, 1
      %s600 = scalar_select %p599, %s27, 1
      %s601 = smul.addr %s600, 4
      %s602 = smul.addr %s601, 8
      %s603 = scalar_lea.vmem %s10, %s602
      %p604 = pneg %p288
      %p605 = pneg %p285
      %p606 = scmp.lt.s32.totalorder %s27, 1
      %s607 = scalar_select %p606, %s27, 1
      %s608 = scalar_lea.vmem %s11, %s607
      %p609 = pneg %p314
      %p610 = pneg %p311
      %p611 = scmp.lt.s32.totalorder %s27, 1
      %s612 = scalar_select %p611, %s27, 1
      %s613 = smul.addr %s612, 16
      %s614 = smul.addr %s613, 8
      %s615 = scalar_lea.vmem %s12, %s614
      %p616 = pneg %p340
      %p617 = pneg %p337
      %p618 = scmp.lt.s32.totalorder %s27, 1
      %s619 = scalar_select %p618, %s27, 1
      %s620 = scalar_lea.vmem %s13, %s619
      %p621 = pneg %p366
      %p622 = pneg %p363
      %p623 = scmp.lt.s32.totalorder %s27, 1
      %s624 = scalar_select %p623, %s27, 1
      %s625 = scalar_lea.vmem %s14, %s624
      %p626 = pneg %p392
      %p627 = pneg %p389
      %p628 = scmp.lt.s32.totalorder %s27, 1
      %s629 = scalar_select %p628, %s27, 1
      %s630 = scalar_lea.vmem %s15, %s629
      %p631 = pneg %p418
      %p632 = pneg %p415
      %p633 = pneg %p439
      %p634 = pneg %p436
      %p635 = scmp.lt.s32.totalorder %s27, 1
      %s636 = scalar_select %p635, %s27, 1
      %s637 = smul.addr %s636, 4
      %s638 = smul.addr %s637, 8
      %s639 = scalar_lea.vmem %s4, %s638
      %p640 = scmp.lt.s32.totalorder %s27, 1
      %s641 = scalar_select %p640, %s27, 1
      %s642 = scalar_lea.vmem %s5, %s641
      %p643 = scmp.lt.s32.totalorder %s27, 1
      %s644 = scalar_select %p643, %s27, 1
      %s645 = smul.addr %s644, 4
      %s646 = smul.addr %s645, 8
      %s647 = scalar_lea.vmem %s6, %s646
      %p648 = scmp.lt.s32.totalorder %s27, 1
      %s649 = scalar_select %p648, %s27, 1
      %s650 = scalar_lea.vmem %s7, %s649
      %p651 = scmp.lt.s32.totalorder %s27, 1
      %s652 = scalar_select %p651, %s27, 1
      %s653 = scalar_lea.vmem %s8, %s652
      %p654 = scmp.lt.s32.totalorder %s27, 1
      %s655 = scalar_select %p654, %s27, 1
      %s656 = scalar_lea.vmem %s9, %s655
      %p657 = scmp.lt.s32.totalorder %s27, 1
      %s658 = scalar_select %p657, %s27, 1
      %s659 = smul.addr %s658, 4
      %s660 = smul.addr %s659, 8
      %s661 = scalar_lea.vmem %s10, %s660
      %p662 = scmp.lt.s32.totalorder %s27, 1
      %s663 = scalar_select %p662, %s27, 1
      %s664 = scalar_lea.vmem %s11, %s663
      %p665 = scmp.lt.s32.totalorder %s27, 1
      %s666 = scalar_select %p665, %s27, 1
      %s667 = smul.addr %s666, 16
      %s668 = smul.addr %s667, 8
      %s669 = scalar_lea.vmem %s12, %s668
      %p670 = scmp.lt.s32.totalorder %s27, 1
      %s671 = scalar_select %p670, %s27, 1
      %s672 = scalar_lea.vmem %s13, %s671
      %p673 = scmp.lt.s32.totalorder %s27, 1
      %s674 = scalar_select %p673, %s27, 1
      %s675 = scalar_lea.vmem %s14, %s674
      %p676 = scmp.lt.s32.totalorder %s27, 1
      %s677 = scalar_select %p676, %s27, 1
      %s678 = scalar_lea.vmem %s15, %s677
      %p679 = scmp.eq.s32.totalorder %s27, 0
      // Predicated region
      $region85: #{full_bert_forward.2} parent=83 // pred_check
        %p680 = pneg %p679
      $region86: #{full_bert_forward.2} parent=83 // pred_check_branch
        %682 = sbr.rel (%p680) target = $region88
      $region87: #{full_bert_forward.2} parent=83 // pred_region
        %v683 = vld [vmem:[%s0] sm:$0xff]
        %v684 = vld [vmem:[%s0 + $0x8] sm:$0xff]
        %v685 = vld [vmem:[%s2] sm:$0x1]
        %v686 = vld [vmem:[%s3] sm:$0x1]
        %vm687 = vcmask 261120
        %v688 = vsel %vm687, %v683, 0.0
        %689 = vadd.xlane.f32.xlu0 %v688
        %v690 = vpop.xlane.xlu0 %689
        %v691 = vsel %vm687, %v684, 0.0
        %692 = vadd.xlane.f32.xlu0 %v691
        %v693 = vpop.xlane.xlu0 %692
        %v694 = vrcp.pop 32.0
        %v695 = vmul.f32 %v690, %v694
        %v696 = vmul.f32 %v693, %v694
        %v697 = vsub.f32 %v683, %v695
        %v698 = vsub.f32 %v684, %v696
        %v699 = vmul.f32 %v697, %v697
        %v700 = vmul.f32 %v698, %v698
        %v701 = vsel %vm687, %v699, 0.0
        %702 = vadd.xlane.f32.xlu0 %v701
        %v703 = vpop.xlane.xlu0 %702
        %v704 = vsel %vm687, %v700, 0.0
        %705 = vadd.xlane.f32.xlu0 %v704
        %v706 = vpop.xlane.xlu0 %705
        %v707 = vmul.f32 %v703, %v694
        %v708 = vmul.f32 %v706, %v694
        %v709 = vadd.f32 %v707, 1e-12
        %v710 = vadd.f32 %v708, 1e-12
        %v711 = vrsqrt.pop %v709
        %v712 = vrsqrt.pop %v710
        %v713 = vmul.f32 %v697, %v711
        %v714 = vmul.f32 %v698, %v712
        %v716 = vlaneseq
        %v717 = vshrl.u32 %v716, 7
        %v718 = vsub.s32 0, %v717
        %v719 = vrot.slane %v685, %v718
        %v721 = vmul.f32 %v713, %v719
        %v722 = vmul.f32 %v714, %v719
        %v724 = vlaneseq
        %v725 = vshrl.u32 %v724, 7
        %v726 = vsub.s32 0, %v725
        %v727 = vrot.slane %v686, %v726
        %v729 = vadd.f32 %v721, %v727
        %v730 = vadd.f32 %v722, %v727
        %731 = vst.msk [vmem:[%s16] sm:$0xff] %vm687, %v729
        %732 = vst.msk [vmem:[%s16 + $0x8] sm:$0xff] %vm687, %v730
      $region88: #{full_bert_forward.2} parent=83 // pred_fallthru
        _
      %v733 = vld [vmem:[%s16] sm:$0xff]
      %v734 = vld [vmem:[%s16 + $0x8] sm:$0xff]
      %v735 = vld [vmem:[%s639] sm:$0xff]
      %v736 = vld [vmem:[%s639 + $0x8] sm:$0xff]
      %v737 = vld [vmem:[%s639 + $0x10] sm:$0xff]
      %v738 = vld [vmem:[%s639 + $0x18] sm:$0xff]
      %v739 = vld [vmem:[%s642] sm:$0x1]
      %v741 = vlaneseq
      %v742 = vshrl.u32 %v741, 7
      %v743 = vsub.s32 0, %v742
      %v744 = vrot.slane %v739, %v743
      %vm746 = vcmask 261120
      %v748 = vsel %vm746, %v733, 0
      %v751 = vsel %vm746, %v734, 0
      %753 = vmatprep.subr.mxu0 0.0
      %754 = vmatpush1.msra.mxu0 %v735
      %755 = vmatprep.subr.mxu0 0.0
      %756 = vmatpush1.msra.mxu0 %v736
      %757 = vmatprep.subr.mxu0 0.0
      %758 = vmatpush1.msra.mxu0 %v737
      %759 = vmatprep.subr.mxu0 0.0
      %760 = vmatpush1.msra.mxu0 %v738
      %761 = vmatprep.subr.mxu0 0.0
      %762 = vmatpush1.msra.mxu0 0.0
      %763 = vmatprep.subr.mxu0 0.0
      %764 = vmatpush1.msra.mxu0 0.0
      %765 = vmatprep.subr.mxu0 0.0
      %766 = vmatpush1.msra.mxu0 0.0
      %767 = vmatprep.subr.mxu0 0.0
      %768 = vmatpush1.msra.mxu0 0.0
      %769 = vmatprep.subr.mxu0 0.0
      %770 = vmatpush1.msra.mxu0 0.0
      %771 = vmatprep.subr.mxu0 0.0
      %772 = vmatpush1.msra.mxu0 0.0
      %773 = vmatprep.subr.mxu0 0.0
      %774 = vmatpush1.msra.mxu0 0.0
      %775 = vmatprep.subr.mxu0 0.0
      %776 = vmatpush1.msra.mxu0 0.0
      %777 = vmatprep.subr.mxu0 0.0
      %778 = vmatpush1.msra.mxu0 0.0
      %779 = vmatprep.subr.mxu0 0.0
      %780 = vmatpush1.msra.mxu0 0.0
      %781 = vmatprep.subr.mxu0 0.0
      %782 = vmatpush1.msra.mxu0 0.0
      %783 = vmatprep.subr.mxu0 0.0
      %784 = vmatpush1.msra.mxu0 0.0
      %785 = vmatprep.subr.mxu0 0.0
      %786 = vmatpush1.msra.mxu0 0.0
      %787 = vmatprep.subr.mxu0 0.0
      %788 = vmatpush1.msra.mxu0 0.0
      %789 = vmatprep.subr.mxu0 0.0
      %790 = vmatpush1.msra.mxu0 0.0
      %791 = vmatprep.subr.mxu0 0.0
      %792 = vmatpush1.msra.mxu0 0.0
      %793 = vmatprep.subr.mxu0 0.0
      %794 = vmatpush1.msra.mxu0 0.0
      %795 = vmatprep.subr.mxu0 0.0
      %796 = vmatpush1.msra.mxu0 0.0
      %797 = vmatprep.subr.mxu0 0.0
      %798 = vmatpush1.msra.mxu0 0.0
      %799 = vmatprep.subr.mxu0 0.0
      %800 = vmatpush1.msra.mxu0 0.0
      %801 = vmatprep.subr.mxu0 0.0
      %802 = vmatpush1.msra.mxu0 0.0
      %803 = vmatprep.subr.mxu0 0.0
      %804 = vmatpush1.msra.mxu0 0.0
      %805 = vmatprep.subr.mxu0 0.0
      %806 = vmatpush1.msra.mxu0 0.0
      %807 = vmatprep.subr.mxu0 0.0
      %808 = vmatpush1.msra.mxu0 0.0
      %809 = vmatprep.subr.mxu0 0.0
      %810 = vmatpush1.msra.mxu0 0.0
      %811 = vmatprep.subr.mxu0 0.0
      %812 = vmatpush1.msra.mxu0 0.0
      %813 = vmatprep.subr.mxu0 0.0
      %814 = vmatpush1.msra.mxu0 0.0
      %815 = vmatprep.subr.mxu0 0.0
      %816 = vmatpush1.msra.mxu0 0.0
      %817 = vmatprep.mubr.f32.mxu0 0.0
      %818 = vmatmul.mubr.f32.gmra.mrb[0].mxu0 %v748
      %v819 = vpop.f32.mrb[0].mxu0
      %v820 = vadd.f32 %v744, %v819
      %v821 = vpop.f32.mrb[0].mxu0
      %822 = vmatprep.mubr.f32.mxu0 0.0
      %823 = vmatmul.mubr.f32.gmra.mrb[0].mxu0 %v751
      %v824 = vpop.f32.mrb[0].mxu0
      %v825 = vadd.f32 %v744, %v824
      %v826 = vpop.f32.mrb[0].mxu0
      %827 = vdwg.mxu0
      %v828 = vld [vmem:[%s1] sm:$0x1]
      %v829 = vld [vmem:[%s1 + $0x1] sm:$0x1]
      %v830 = vmul.f32 %v820, 0.35355338
      %v831 = vmul.f32 %v825, 0.35355338
      %833 = vrot.lane.b32.xlu0 %v820, 96
      %v834 = vpop.permute.xlu0 %833
      %vm835 = vcmask 64512
      %v837 = vsel %vm835, %v830, 0
      %v839 = vsel %vm835, %v834, 0
      %841 = vmatprep.subr.mxu0 0.0
      %842 = vmatpush1.xpose.msra.mxu0 %v839
      %843 = vmatprep.subr.mxu0 0.0
      %844 = vmatpush1.xpose.msra.mxu0 0.0
      %845 = vmatprep.subr.mxu0 0.0
      %846 = vmatpush1.xpose.msra.mxu0 0.0
      %847 = vmatprep.subr.mxu0 0.0
      %848 = vmatpush1.xpose.msra.mxu0 0.0
      %849 = vmatprep.subr.mxu0 0.0
      %850 = vmatpush1.xpose.msra.mxu0 0.0
      %851 = vmatprep.subr.mxu0 0.0
      %852 = vmatpush1.xpose.msra.mxu0 0.0
      %853 = vmatprep.subr.mxu0 0.0
      %854 = vmatpush1.xpose.msra.mxu0 0.0
      %855 = vmatprep.subr.mxu0 0.0
      %856 = vmatpush1.xpose.msra.mxu0 0.0
      %857 = vmatprep.subr.mxu0 0.0
      %858 = vmatpush1.xpose.msra.mxu0 0.0
      %859 = vmatprep.subr.mxu0 0.0
      %860 = vmatpush1.xpose.msra.mxu0 0.0
      %861 = vmatprep.subr.mxu0 0.0
      %862 = vmatpush1.xpose.msra.mxu0 0.0
      %863 = vmatprep.subr.mxu0 0.0
      %864 = vmatpush1.xpose.msra.mxu0 0.0
      %865 = vmatprep.subr.mxu0 0.0
      %866 = vmatpush1.xpose.msra.mxu0 0.0
      %867 = vmatprep.subr.mxu0 0.0
      %868 = vmatpush1.xpose.msra.mxu0 0.0
      %869 = vmatprep.subr.mxu0 0.0
      %870 = vmatpush1.xpose.msra.mxu0 0.0
      %871 = vmatprep.subr.mxu0 0.0
      %872 = vmatpush1.xpose.msra.mxu0 0.0
      %873 = vmatprep.subr.mxu0 0.0
      %874 = vmatpush1.xpose.msra.mxu0 0.0
      %875 = vmatprep.subr.mxu0 0.0
      %876 = vmatpush1.xpose.msra.mxu0 0.0
      %877 = vmatprep.subr.mxu0 0.0
      %878 = vmatpush1.xpose.msra.mxu0 0.0
      %879 = vmatprep.subr.mxu0 0.0
      %880 = vmatpush1.xpose.msra.mxu0 0.0
      %881 = vmatprep.subr.mxu0 0.0
      %882 = vmatpush1.xpose.msra.mxu0 0.0
      %883 = vmatprep.subr.mxu0 0.0
      %884 = vmatpush1.xpose.msra.mxu0 0.0
      %885 = vmatprep.subr.mxu0 0.0
      %886 = vmatpush1.xpose.msra.mxu0 0.0
      %887 = vmatprep.subr.mxu0 0.0
      %888 = vmatpush1.xpose.msra.mxu0 0.0
      %889 = vmatprep.subr.mxu0 0.0
      %890 = vmatpush1.xpose.msra.mxu0 0.0
      %891 = vmatprep.subr.mxu0 0.0
      %892 = vmatpush1.xpose.msra.mxu0 0.0
      %893 = vmatprep.subr.mxu0 0.0
      %894 = vmatpush1.xpose.msra.mxu0 0.0
      %895 = vmatprep.subr.mxu0 0.0
      %896 = vmatpush1.xpose.msra.mxu0 0.0
      %897 = vmatprep.subr.mxu0 0.0
      %898 = vmatpush1.xpose.msra.mxu0 0.0
      %899 = vmatprep.subr.mxu0 0.0
      %900 = vmatpush1.xpose.msra.mxu0 0.0
      %901 = vmatprep.subr.mxu0 0.0
      %902 = vmatpush1.xpose.msra.mxu0 0.0
      %903 = vmatprep.subr.mxu0 0.0
      %904 = vmatpush1.xpose.msra.mxu0 0.0
      %905 = vmatprep.mubr.f32.mxu0 0.0
      %906 = vmatmul.mubr.f32.gmra.mrb[0].mxu0 %v837
      %v907 = vpop.f32.mrb[0].mxu0
      %v908 = vadd.f32 0.0, %v907
      %v909 = vpop.f32.mrb[0].mxu0
      %910 = vdwg.mxu0
      %912 = vrot.lane.b32.xlu0 %v825, 96
      %v913 = vpop.permute.xlu0 %912
      %v915 = vsel %vm835, %v831, 0
      %v917 = vsel %vm835, %v913, 0
      %919 = vmatprep.subr.mxu0 0.0
      %920 = vmatpush1.xpose.msra.mxu0 %v917
      %921 = vmatprep.subr.mxu0 0.0
      %922 = vmatpush1.xpose.msra.mxu0 0.0
      %923 = vmatprep.subr.mxu0 0.0
      %924 = vmatpush1.xpose.msra.mxu0 0.0
      %925 = vmatprep.subr.mxu0 0.0
      %926 = vmatpush1.xpose.msra.mxu0 0.0
      %927 = vmatprep.subr.mxu0 0.0
      %928 = vmatpush1.xpose.msra.mxu0 0.0
      %929 = vmatprep.subr.mxu0 0.0
      %930 = vmatpush1.xpose.msra.mxu0 0.0
      %931 = vmatprep.subr.mxu0 0.0
      %932 = vmatpush1.xpose.msra.mxu0 0.0
      %933 = vmatprep.subr.mxu0 0.0
      %934 = vmatpush1.xpose.msra.mxu0 0.0
      %935 = vmatprep.subr.mxu0 0.0
      %936 = vmatpush1.xpose.msra.mxu0 0.0
      %937 = vmatprep.subr.mxu0 0.0
      %938 = vmatpush1.xpose.msra.mxu0 0.0
      %939 = vmatprep.subr.mxu0 0.0
      %940 = vmatpush1.xpose.msra.mxu0 0.0
      %941 = vmatprep.subr.mxu0 0.0
      %942 = vmatpush1.xpose.msra.mxu0 0.0
      %943 = vmatprep.subr.mxu0 0.0
      %944 = vmatpush1.xpose.msra.mxu0 0.0
      %945 = vmatprep.subr.mxu0 0.0
      %946 = vmatpush1.xpose.msra.mxu0 0.0
      %947 = vmatprep.subr.mxu0 0.0
      %948 = vmatpush1.xpose.msra.mxu0 0.0
      %949 = vmatprep.subr.mxu0 0.0
      %950 = vmatpush1.xpose.msra.mxu0 0.0
      %951 = vmatprep.subr.mxu0 0.0
      %952 = vmatpush1.xpose.msra.mxu0 0.0
      %953 = vmatprep.subr.mxu0 0.0
      %954 = vmatpush1.xpose.msra.mxu0 0.0
      %955 = vmatprep.subr.mxu0 0.0
      %956 = vmatpush1.xpose.msra.mxu0 0.0
      %957 = vmatprep.subr.mxu0 0.0
      %958 = vmatpush1.xpose.msra.mxu0 0.0
      %959 = vmatprep.subr.mxu0 0.0
      %960 = vmatpush1.xpose.msra.mxu0 0.0
      %961 = vmatprep.subr.mxu0 0.0
      %962 = vmatpush1.xpose.msra.mxu0 0.0
      %963 = vmatprep.subr.mxu0 0.0
      %964 = vmatpush1.xpose.msra.mxu0 0.0
      %965 = vmatprep.subr.mxu0 0.0
      %966 = vmatpush1.xpose.msra.mxu0 0.0
      %967 = vmatprep.subr.mxu0 0.0
      %968 = vmatpush1.xpose.msra.mxu0 0.0
      %969 = vmatprep.subr.mxu0 0.0
      %970 = vmatpush1.xpose.msra.mxu0 0.0
      %971 = vmatprep.subr.mxu0 0.0
      %972 = vmatpush1.xpose.msra.mxu0 0.0
      %973 = vmatprep.subr.mxu0 0.0
      %974 = vmatpush1.xpose.msra.mxu0 0.0
      %975 = vmatprep.subr.mxu0 0.0
      %976 = vmatpush1.xpose.msra.mxu0 0.0
      %977 = vmatprep.subr.mxu0 0.0
      %978 = vmatpush1.xpose.msra.mxu0 0.0
      %979 = vmatprep.subr.mxu0 0.0
      %980 = vmatpush1.xpose.msra.mxu0 0.0
      %981 = vmatprep.subr.mxu0 0.0
      %982 = vmatpush1.xpose.msra.mxu0 0.0
      %983 = vmatprep.mubr.f32.mxu0 0.0
      %984 = vmatmul.mubr.f32.gmra.mrb[0].mxu0 %v915
      %v985 = vpop.f32.mrb[0].mxu0
      %v986 = vadd.f32 0.0, %v985
      %v987 = vpop.f32.mrb[0].mxu0
      %988 = vdwg.mxu0
      %vm989 = vcmp.eq.f32.partialorder %v828, 0.0
      %vm990 = vcmp.eq.f32.partialorder %v829, 0.0
      %v991 = vsel %vm989, 1, 0
      %v992 = vsel %vm990, 1, 0
      %v993 = vlaneseq
      %v994 = vshrl.u32 %v993, 7
      %v995 = vsub.s32 0, %v994
      %v996 = vrot.slane %v991, %v995
      %v997 = vlaneseq
      %v998 = vshrl.u32 %v997, 7
      %v999 = vsub.s32 0, %v998
      %v1000 = vrot.slane %v992, %v999
      %vm1001 = vcmp.eq.s32.totalorder %v996, 1
      %vm1002 = vcmp.eq.s32.totalorder %v1000, 1
      %v1003 = vsel %vm1001, -3.4028235e+38, %v908
      %v1004 = vsel %vm1002, -3.4028235e+38, %v986
      %v1005 = vsel %vm835, %v1003, -inf
      %1006 = vmax.xlane.f32.xlu0 %v1005
      %v1007 = vpop.xlane.xlu0 %1006
      %v1008 = vsel %vm835, %v1004, -inf
      %1009 = vmax.xlane.f32.xlu0 %v1008
      %v1010 = vpop.xlane.xlu0 %1009
      %v1011 = vsub.f32 %v1003, %v1007
      %v1012 = vsub.f32 %v1004, %v1010
      %v1013 = vmul.f32 %v1011, 1.442695
      %v1014 = vpow.pop %v1013
      %v1015 = vmul.f32 %v1012, 1.442695
      %v1016 = vpow.pop %v1015
      %v1017 = vsel %vm835, %v1014, 0.0
      %1018 = vadd.xlane.f32.xlu0 %v1017
      %v1019 = vpop.xlane.xlu0 %1018
      %v1020 = vsel %vm835, %v1016, 0.0
      %1021 = vadd.xlane.f32.xlu0 %v1020
      %v1022 = vpop.xlane.xlu0 %1021
      %v1023 = vrcp.pop %v1019
      %v1024 = vmul.f32 %v1014, %v1023
      %v1025 = vrcp.pop %v1022
      %v1026 = vmul.f32 %v1016, %v1025
      %1027 = vrot.lane.b32.xlu0 %v820, 64
      %v1028 = vpop.permute.xlu0 %1027
      %v1031 = vsel %vm835, %v1024, 0
      %1033 = vmatprep.subr.mxu0 0.0
      %1034 = vmatpush1.msra.mxu0 %v1028
      %1035 = vmatprep.subr.mxu0 0.0
      %1036 = vmatpush1.msra.mxu0 0.0
      %1037 = vmatprep.subr.mxu0 0.0
      %1038 = vmatpush1.msra.mxu0 0.0
      %1039 = vmatprep.subr.mxu0 0.0
      %1040 = vmatpush1.msra.mxu0 0.0
      %1041 = vmatprep.subr.mxu0 0.0
      %1042 = vmatpush1.msra.mxu0 0.0
      %1043 = vmatprep.subr.mxu0 0.0
      %1044 = vmatpush1.msra.mxu0 0.0
      %1045 = vmatprep.subr.mxu0 0.0
      %1046 = vmatpush1.msra.mxu0 0.0
      %1047 = vmatprep.subr.mxu0 0.0
      %1048 = vmatpush1.msra.mxu0 0.0
      %1049 = vmatprep.subr.mxu0 0.0
      %1050 = vmatpush1.msra.mxu0 0.0
      %1051 = vmatprep.subr.mxu0 0.0
      %1052 = vmatpush1.msra.mxu0 0.0
      %1053 = vmatprep.subr.mxu0 0.0
      %1054 = vmatpush1.msra.mxu0 0.0
      %1055 = vmatprep.subr.mxu0 0.0
      %1056 = vmatpush1.msra.mxu0 0.0
      %1057 = vmatprep.subr.mxu0 0.0
      %1058 = vmatpush1.msra.mxu0 0.0
      %1059 = vmatprep.subr.mxu0 0.0
      %1060 = vmatpush1.msra.mxu0 0.0
      %1061 = vmatprep.subr.mxu0 0.0
      %1062 = vmatpush1.msra.mxu0 0.0
      %1063 = vmatprep.subr.mxu0 0.0
      %1064 = vmatpush1.msra.mxu0 0.0
      %1065 = vmatprep.subr.mxu0 0.0
      %1066 = vmatpush1.msra.mxu0 0.0
      %1067 = vmatprep.subr.mxu0 0.0
      %1068 = vmatpush1.msra.mxu0 0.0
      %1069 = vmatprep.subr.mxu0 0.0
      %1070 = vmatpush1.msra.mxu0 0.0
      %1071 = vmatprep.subr.mxu0 0.0
      %1072 = vmatpush1.msra.mxu0 0.0
      %1073 = vmatprep.subr.mxu0 0.0
      %1074 = vmatpush1.msra.mxu0 0.0
      %1075 = vmatprep.subr.mxu0 0.0
      %1076 = vmatpush1.msra.mxu0 0.0
      %1077 = vmatprep.subr.mxu0 0.0
      %1078 = vmatpush1.msra.mxu0 0.0
      %1079 = vmatprep.subr.mxu0 0.0
      %1080 = vmatpush1.msra.mxu0 0.0
      %1081 = vmatprep.subr.mxu0 0.0
      %1082 = vmatpush1.msra.mxu0 0.0
      %1083 = vmatprep.subr.mxu0 0.0
      %1084 = vmatpush1.msra.mxu0 0.0
      %1085 = vmatprep.subr.mxu0 0.0
      %1086 = vmatpush1.msra.mxu0 0.0
      %1087 = vmatprep.subr.mxu0 0.0
      %1088 = vmatpush1.msra.mxu0 0.0
      %1089 = vmatprep.subr.mxu0 0.0
      %1090 = vmatpush1.msra.mxu0 0.0
      %1091 = vmatprep.subr.mxu0 0.0
      %1092 = vmatpush1.msra.mxu0 0.0
      %1093 = vmatprep.subr.mxu0 0.0
      %1094 = vmatpush1.msra.mxu0 0.0
      %1095 = vmatprep.subr.mxu0 0.0
      %1096 = vmatpush1.msra.mxu0 0.0
      %1097 = vmatprep.mubr.f32.mxu0 0.0
      %1098 = vmatmul.mubr.f32.gmra.mrb[0].mxu0 %v1031
      %v1099 = vpop.f32.mrb[0].mxu0
      %v1100 = vadd.f32 0.0, %v1099
      %v1101 = vpop.f32.mrb[0].mxu0
      %1102 = vdwg.mxu0
      %1103 = vrot.lane.b32.xlu0 %v825, 64
      %v1104 = vpop.permute.xlu0 %1103
      %v1107 = vsel %vm835, %v1026, 0
      %1109 = vmatprep.subr.mxu0 0.0
      %1110 = vmatpush1.msra.mxu0 %v1104
      %1111 = vmatprep.subr.mxu0 0.0
      %1112 = vmatpush1.msra.mxu0 0.0
      %1113 = vmatprep.subr.mxu0 0.0
      %1114 = vmatpush1.msra.mxu0 0.0
      %1115 = vmatprep.subr.mxu0 0.0
      %1116 = vmatpush1.msra.mxu0 0.0
      %1117 = vmatprep.subr.mxu0 0.0
      %1118 = vmatpush1.msra.mxu0 0.0
      %1119 = vmatprep.subr.mxu0 0.0
      %1120 = vmatpush1.msra.mxu0 0.0
      %1121 = vmatprep.subr.mxu0 0.0
      %1122 = vmatpush1.msra.mxu0 0.0
      %1123 = vmatprep.subr.mxu0 0.0
      %1124 = vmatpush1.msra.mxu0 0.0
      %1125 = vmatprep.subr.mxu0 0.0
      %1126 = vmatpush1.msra.mxu0 0.0
      %1127 = vmatprep.subr.mxu0 0.0
      %1128 = vmatpush1.msra.mxu0 0.0
      %1129 = vmatprep.subr.mxu0 0.0
      %1130 = vmatpush1.msra.mxu0 0.0
      %1131 = vmatprep.subr.mxu0 0.0
      %1132 = vmatpush1.msra.mxu0 0.0
      %1133 = vmatprep.subr.mxu0 0.0
      %1134 = vmatpush1.msra.mxu0 0.0
      %1135 = vmatprep.subr.mxu0 0.0
      %1136 = vmatpush1.msra.mxu0 0.0
      %1137 = vmatprep.subr.mxu0 0.0
      %1138 = vmatpush1.msra.mxu0 0.0
      %1139 = vmatprep.subr.mxu0 0.0
      %1140 = vmatpush1.msra.mxu0 0.0
      %1141 = vmatprep.subr.mxu0 0.0
      %1142 = vmatpush1.msra.mxu0 0.0
      %1143 = vmatprep.subr.mxu0 0.0
      %1144 = vmatpush1.msra.mxu0 0.0
      %1145 = vmatprep.subr.mxu0 0.0
      %1146 = vmatpush1.msra.mxu0 0.0
      %1147 = vmatprep.subr.mxu0 0.0
      %1148 = vmatpush1.msra.mxu0 0.0
      %1149 = vmatprep.subr.mxu0 0.0
      %1150 = vmatpush1.msra.mxu0 0.0
      %1151 = vmatprep.subr.mxu0 0.0
      %1152 = vmatpush1.msra.mxu0 0.0
      %1153 = vmatprep.subr.mxu0 0.0
      %1154 = vmatpush1.msra.mxu0 0.0
      %1155 = vmatprep.subr.mxu0 0.0
      %1156 = vmatpush1.msra.mxu0 0.0
      %1157 = vmatprep.subr.mxu0 0.0
      %1158 = vmatpush1.msra.mxu0 0.0
      %1159 = vmatprep.subr.mxu0 0.0
      %1160 = vmatpush1.msra.mxu0 0.0
      %1161 = vmatprep.subr.mxu0 0.0
      %1162 = vmatpush1.msra.mxu0 0.0
      %1163 = vmatprep.subr.mxu0 0.0
      %1164 = vmatpush1.msra.mxu0 0.0
      %1165 = vmatprep.subr.mxu0 0.0
      %1166 = vmatpush1.msra.mxu0 0.0
      %1167 = vmatprep.subr.mxu0 0.0
      %1168 = vmatpush1.msra.mxu0 0.0
      %1169 = vmatprep.subr.mxu0 0.0
      %1170 = vmatpush1.msra.mxu0 0.0
      %1171 = vmatprep.subr.mxu0 0.0
      %1172 = vmatpush1.msra.mxu0 0.0
      %1173 = vmatprep.mubr.f32.mxu0 0.0
      %1174 = vmatmul.mubr.f32.gmra.mrb[0].mxu0 %v1107
      %v1175 = vpop.f32.mrb[0].mxu0
      %v1176 = vadd.f32 0.0, %v1175
      %v1177 = vpop.f32.mrb[0].mxu0
      %1178 = vdwg.mxu0
      %1179 = vrot.lane.b32.xlu0 %v830, 120
      %v1180 = vpop.permute.xlu0 %1179
      %1181 = vrot.lane.b32.xlu0 %v820, 88
      %v1182 = vpop.permute.xlu0 %1181
      %v1183 = vsel %vm835, %v1180, 0
      %v1185 = vsel %vm835, %v1182, 0
      %1187 = vmatprep.subr.mxu0 0.0
      %1188 = vmatpush1.xpose.msra.mxu0 %v1185
      %1189 = vmatprep.subr.mxu0 0.0
      %1190 = vmatpush1.xpose.msra.mxu0 0.0
      %1191 = vmatprep.subr.mxu0 0.0
      %1192 = vmatpush1.xpose.msra.mxu0 0.0
      %1193 = vmatprep.subr.mxu0 0.0
      %1194 = vmatpush1.xpose.msra.mxu0 0.0
      %1195 = vmatprep.subr.mxu0 0.0
      %1196 = vmatpush1.xpose.msra.mxu0 0.0
      %1197 = vmatprep.subr.mxu0 0.0
      %1198 = vmatpush1.xpose.msra.mxu0 0.0
      %1199 = vmatprep.subr.mxu0 0.0
      %1200 = vmatpush1.xpose.msra.mxu0 0.0
      %1201 = vmatprep.subr.mxu0 0.0
      %1202 = vmatpush1.xpose.msra.mxu0 0.0
      %1203 = vmatprep.subr.mxu0 0.0
      %1204 = vmatpush1.xpose.msra.mxu0 0.0
      %1205 = vmatprep.subr.mxu0 0.0
      %1206 = vmatpush1.xpose.msra.mxu0 0.0
      %1207 = vmatprep.subr.mxu0 0.0
      %1208 = vmatpush1.xpose.msra.mxu0 0.0
      %1209 = vmatprep.subr.mxu0 0.0
      %1210 = vmatpush1.xpose.msra.mxu0 0.0
      %1211 = vmatprep.subr.mxu0 0.0
      %1212 = vmatpush1.xpose.msra.mxu0 0.0
      %1213 = vmatprep.subr.mxu0 0.0
      %1214 = vmatpush1.xpose.msra.mxu0 0.0
      %1215 = vmatprep.subr.mxu0 0.0
      %1216 = vmatpush1.xpose.msra.mxu0 0.0
      %1217 = vmatprep.subr.mxu0 0.0
      %1218 = vmatpush1.xpose.msra.mxu0 0.0
      %1219 = vmatprep.subr.mxu0 0.0
      %1220 = vmatpush1.xpose.msra.mxu0 0.0
      %1221 = vmatprep.subr.mxu0 0.0
      %1222 = vmatpush1.xpose.msra.mxu0 0.0
      %1223 = vmatprep.subr.mxu0 0.0
      %1224 = vmatpush1.xpose.msra.mxu0 0.0
      %1225 = vmatprep.subr.mxu0 0.0
      %1226 = vmatpush1.xpose.msra.mxu0 0.0
      %1227 = vmatprep.subr.mxu0 0.0
      %1228 = vmatpush1.xpose.msra.mxu0 0.0
      %1229 = vmatprep.subr.mxu0 0.0
      %1230 = vmatpush1.xpose.msra.mxu0 0.0
      %1231 = vmatprep.subr.mxu0 0.0
      %1232 = vmatpush1.xpose.msra.mxu0 0.0
      %1233 = vmatprep.subr.mxu0 0.0
      %1234 = vmatpush1.xpose.msra.mxu0 0.0
      %1235 = vmatprep.subr.mxu0 0.0
      %1236 = vmatpush1.xpose.msra.mxu0 0.0
      %1237 = vmatprep.subr.mxu0 0.0
      %1238 = vmatpush1.xpose.msra.mxu0 0.0
      %1239 = vmatprep.subr.mxu0 0.0
      %1240 = vmatpush1.xpose.msra.mxu0 0.0
      %1241 = vmatprep.subr.mxu0 0.0
      %1242 = vmatpush1.xpose.msra.mxu0 0.0
      %1243 = vmatprep.subr.mxu0 0.0
      %1244 = vmatpush1.xpose.msra.mxu0 0.0
      %1245 = vmatprep.subr.mxu0 0.0
      %1246 = vmatpush1.xpose.msra.mxu0 0.0
      %1247 = vmatprep.subr.mxu0 0.0
      %1248 = vmatpush1.xpose.msra.mxu0 0.0
      %1249 = vmatprep.subr.mxu0 0.0
      %1250 = vmatpush1.xpose.msra.mxu0 0.0
      %1251 = vmatprep.mubr.f32.mxu0 0.0
      %1252 = vmatmul.mubr.f32.gmra.mrb[0].mxu0 %v1183
      %v1253 = vpop.f32.mrb[0].mxu0
      %v1254 = vadd.f32 0.0, %v1253
      %v1255 = vpop.f32.mrb[0].mxu0
      %1256 = vdwg.mxu0
      %1257 = vrot.lane.b32.xlu0 %v831, 120
      %v1258 = vpop.permute.xlu0 %1257
      %1259 = vrot.lane.b32.xlu0 %v825, 88
      %v1260 = vpop.permute.xlu0 %1259
      %v1261 = vsel %vm835, %v1258, 0
      %v1263 = vsel %vm835, %v1260, 0
      %1265 = vmatprep.subr.mxu0 0.0
      %1266 = vmatpush1.xpose.msra.mxu0 %v1263
      %1267 = vmatprep.subr.mxu0 0.0
      %1268 = vmatpush1.xpose.msra.mxu0 0.0
      %1269 = vmatprep.subr.mxu0 0.0
      %1270 = vmatpush1.xpose.msra.mxu0 0.0
      %1271 = vmatprep.subr.mxu0 0.0
      %1272 = vmatpush1.xpose.msra.mxu0 0.0
      %1273 = vmatprep.subr.mxu0 0.0
      %1274 = vmatpush1.xpose.msra.mxu0 0.0
      %1275 = vmatprep.subr.mxu0 0.0
      %1276 = vmatpush1.xpose.msra.mxu0 0.0
      %1277 = vmatprep.subr.mxu0 0.0
      %1278 = vmatpush1.xpose.msra.mxu0 0.0
      %1279 = vmatprep.subr.mxu0 0.0
      %1280 = vmatpush1.xpose.msra.mxu0 0.0
      %1281 = vmatprep.subr.mxu0 0.0
      %1282 = vmatpush1.xpose.msra.mxu0 0.0
      %1283 = vmatprep.subr.mxu0 0.0
      %1284 = vmatpush1.xpose.msra.mxu0 0.0
      %1285 = vmatprep.subr.mxu0 0.0
      %1286 = vmatpush1.xpose.msra.mxu0 0.0
      %1287 = vmatprep.subr.mxu0 0.0
      %1288 = vmatpush1.xpose.msra.mxu0 0.0
      %1289 = vmatprep.subr.mxu0 0.0
      %1290 = vmatpush1.xpose.msra.mxu0 0.0
      %1291 = vmatprep.subr.mxu0 0.0
      %1292 = vmatpush1.xpose.msra.mxu0 0.0
      %1293 = vmatprep.subr.mxu0 0.0
      %1294 = vmatpush1.xpose.msra.mxu0 0.0
      %1295 = vmatprep.subr.mxu0 0.0
      %1296 = vmatpush1.xpose.msra.mxu0 0.0
      %1297 = vmatprep.subr.mxu0 0.0
      %1298 = vmatpush1.xpose.msra.mxu0 0.0
      %1299 = vmatprep.subr.mxu0 0.0
      %1300 = vmatpush1.xpose.msra.mxu0 0.0
      %1301 = vmatprep.subr.mxu0 0.0
      %1302 = vmatpush1.xpose.msra.mxu0 0.0
      %1303 = vmatprep.subr.mxu0 0.0
      %1304 = vmatpush1.xpose.msra.mxu0 0.0
      %1305 = vmatprep.subr.mxu0 0.0
      %1306 = vmatpush1.xpose.msra.mxu0 0.0
      %1307 = vmatprep.subr.mxu0 0.0
      %1308 = vmatpush1.xpose.msra.mxu0 0.0
      %1309 = vmatprep.subr.mxu0 0.0
      %1310 = vmatpush1.xpose.msra.mxu0 0.0
      %1311 = vmatprep.subr.mxu0 0.0
      %1312 = vmatpush1.xpose.msra.mxu0 0.0
      %1313 = vmatprep.subr.mxu0 0.0
      %1314 = vmatpush1.xpose.msra.mxu0 0.0
      %1315 = vmatprep.subr.mxu0 0.0
      %1316 = vmatpush1.xpose.msra.mxu0 0.0
      %1317 = vmatprep.subr.mxu0 0.0
      %1318 = vmatpush1.xpose.msra.mxu0 0.0
      %1319 = vmatprep.subr.mxu0 0.0
      %1320 = vmatpush1.xpose.msra.mxu0 0.0
      %1321 = vmatprep.subr.mxu0 0.0
      %1322 = vmatpush1.xpose.msra.mxu0 0.0
      %1323 = vmatprep.subr.mxu0 0.0
      %1324 = vmatpush1.xpose.msra.mxu0 0.0
      %1325 = vmatprep.subr.mxu0 0.0
      %1326 = vmatpush1.xpose.msra.mxu0 0.0
      %1327 = vmatprep.subr.mxu0 0.0
      %1328 = vmatpush1.xpose.msra.mxu0 0.0
      %1329 = vmatprep.mubr.f32.mxu0 0.0
      %1330 = vmatmul.mubr.f32.gmra.mrb[0].mxu0 %v1261
      %v1331 = vpop.f32.mrb[0].mxu0
      %v1332 = vadd.f32 0.0, %v1331
      %v1333 = vpop.f32.mrb[0].mxu0
      %1334 = vdwg.mxu0
      %v1335 = vsel %vm1001, -3.4028235e+38, %v1254
      %v1336 = vsel %vm1002, -3.4028235e+38, %v1332
      %v1337 = vsel %vm835, %v1335, -inf
      %1338 = vmax.xlane.f32.xlu0 %v1337
      %v1339 = vpop.xlane.xlu0 %1338
      %v1340 = vsel %vm835, %v1336, -inf
      %1341 = vmax.xlane.f32.xlu0 %v1340
      %v1342 = vpop.xlane.xlu0 %1341
      %v1343 = vsub.f32 %v1335, %v1339
      %v1344 = vsub.f32 %v1336, %v1342
      %v1345 = vmul.f32 %v1343, 1.442695
      %v1346 = vpow.pop %v1345
      %v1347 = vmul.f32 %v1344, 1.442695
      %v1348 = vpow.pop %v1347
      %v1349 = vsel %vm835, %v1346, 0.0
      %1350 = vadd.xlane.f32.xlu0 %v1349
      %v1351 = vpop.xlane.xlu0 %1350
      %v1352 = vsel %vm835, %v1348, 0.0
      %1353 = vadd.xlane.f32.xlu0 %v1352
      %v1354 = vpop.xlane.xlu0 %1353
      %v1355 = vrcp.pop %v1351
      %v1356 = vmul.f32 %v1346, %v1355
      %v1357 = vrcp.pop %v1354
      %v1358 = vmul.f32 %v1348, %v1357
      %1359 = vrot.lane.b32.xlu0 %v820, 56
      %v1360 = vpop.permute.xlu0 %1359
      %v1363 = vsel %vm835, %v1356, 0
      %1365 = vmatprep.subr.mxu0 0.0
      %1366 = vmatpush1.msra.mxu0 %v1360
      %1367 = vmatprep.subr.mxu0 0.0
      %1368 = vmatpush1.msra.mxu0 0.0
      %1369 = vmatprep.subr.mxu0 0.0
      %1370 = vmatpush1.msra.mxu0 0.0
      %1371 = vmatprep.subr.mxu0 0.0
      %1372 = vmatpush1.msra.mxu0 0.0
      %1373 = vmatprep.subr.mxu0 0.0
      %1374 = vmatpush1.msra.mxu0 0.0
      %1375 = vmatprep.subr.mxu0 0.0
      %1376 = vmatpush1.msra.mxu0 0.0
      %1377 = vmatprep.subr.mxu0 0.0
      %1378 = vmatpush1.msra.mxu0 0.0
      %1379 = vmatprep.subr.mxu0 0.0
      %1380 = vmatpush1.msra.mxu0 0.0
      %1381 = vmatprep.subr.mxu0 0.0
      %1382 = vmatpush1.msra.mxu0 0.0
      %1383 = vmatprep.subr.mxu0 0.0
      %1384 = vmatpush1.msra.mxu0 0.0
      %1385 = vmatprep.subr.mxu0 0.0
      %1386 = vmatpush1.msra.mxu0 0.0
      %1387 = vmatprep.subr.mxu0 0.0
      %1388 = vmatpush1.msra.mxu0 0.0
      %1389 = vmatprep.subr.mxu0 0.0
      %1390 = vmatpush1.msra.mxu0 0.0
      %1391 = vmatprep.subr.mxu0 0.0
      %1392 = vmatpush1.msra.mxu0 0.0
      %1393 = vmatprep.subr.mxu0 0.0
      %1394 = vmatpush1.msra.mxu0 0.0
      %1395 = vmatprep.subr.mxu0 0.0
      %1396 = vmatpush1.msra.mxu0 0.0
      %1397 = vmatprep.subr.mxu0 0.0
      %1398 = vmatpush1.msra.mxu0 0.0
      %1399 = vmatprep.subr.mxu0 0.0
      %1400 = vmatpush1.msra.mxu0 0.0
      %1401 = vmatprep.subr.mxu0 0.0
      %1402 = vmatpush1.msra.mxu0 0.0
      %1403 = vmatprep.subr.mxu0 0.0
      %1404 = vmatpush1.msra.mxu0 0.0
      %1405 = vmatprep.subr.mxu0 0.0
      %1406 = vmatpush1.msra.mxu0 0.0
      %1407 = vmatprep.subr.mxu0 0.0
      %1408 = vmatpush1.msra.mxu0 0.0
      %1409 = vmatprep.subr.mxu0 0.0
      %1410 = vmatpush1.msra.mxu0 0.0
      %1411 = vmatprep.subr.mxu0 0.0
      %1412 = vmatpush1.msra.mxu0 0.0
      %1413 = vmatprep.subr.mxu0 0.0
      %1414 = vmatpush1.msra.mxu0 0.0
      %1415 = vmatprep.subr.mxu0 0.0
      %1416 = vmatpush1.msra.mxu0 0.0
      %1417 = vmatprep.subr.mxu0 0.0
      %1418 = vmatpush1.msra.mxu0 0.0
      %1419 = vmatprep.subr.mxu0 0.0
      %1420 = vmatpush1.msra.mxu0 0.0
      %1421 = vmatprep.subr.mxu0 0.0
      %1422 = vmatpush1.msra.mxu0 0.0
      %1423 = vmatprep.subr.mxu0 0.0
      %1424 = vmatpush1.msra.mxu0 0.0
      %1425 = vmatprep.subr.mxu0 0.0
      %1426 = vmatpush1.msra.mxu0 0.0
      %1427 = vmatprep.subr.mxu0 0.0
      %1428 = vmatpush1.msra.mxu0 0.0
      %1429 = vmatprep.mubr.f32.mxu0 0.0
      %1430 = vmatmul.mubr.f32.gmra.mrb[0].mxu0 %v1363
      %v1431 = vpop.f32.mrb[0].mxu0
      %v1432 = vadd.f32 0.0, %v1431
      %v1433 = vpop.f32.mrb[0].mxu0
      %1434 = vdwg.mxu0
      %1435 = vrot.lane.b32.xlu0 %v825, 56
      %v1436 = vpop.permute.xlu0 %1435
      %v1439 = vsel %vm835, %v1358, 0
      %1441 = vmatprep.subr.mxu0 0.0
      %1442 = vmatpush1.msra.mxu0 %v1436
      %1443 = vmatprep.subr.mxu0 0.0
      %1444 = vmatpush1.msra.mxu0 0.0
      %1445 = vmatprep.subr.mxu0 0.0
      %1446 = vmatpush1.msra.mxu0 0.0
      %1447 = vmatprep.subr.mxu0 0.0
      %1448 = vmatpush1.msra.mxu0 0.0
      %1449 = vmatprep.subr.mxu0 0.0
      %1450 = vmatpush1.msra.mxu0 0.0
      %1451 = vmatprep.subr.mxu0 0.0
      %1452 = vmatpush1.msra.mxu0 0.0
      %1453 = vmatprep.subr.mxu0 0.0
      %1454 = vmatpush1.msra.mxu0 0.0
      %1455 = vmatprep.subr.mxu0 0.0
      %1456 = vmatpush1.msra.mxu0 0.0
      %1457 = vmatprep.subr.mxu0 0.0
      %1458 = vmatpush1.msra.mxu0 0.0
      %1459 = vmatprep.subr.mxu0 0.0
      %1460 = vmatpush1.msra.mxu0 0.0
      %1461 = vmatprep.subr.mxu0 0.0
      %1462 = vmatpush1.msra.mxu0 0.0
      %1463 = vmatprep.subr.mxu0 0.0
      %1464 = vmatpush1.msra.mxu0 0.0
      %1465 = vmatprep.subr.mxu0 0.0
      %1466 = vmatpush1.msra.mxu0 0.0
      %1467 = vmatprep.subr.mxu0 0.0
      %1468 = vmatpush1.msra.mxu0 0.0
      %1469 = vmatprep.subr.mxu0 0.0
      %1470 = vmatpush1.msra.mxu0 0.0
      %1471 = vmatprep.subr.mxu0 0.0
      %1472 = vmatpush1.msra.mxu0 0.0
      %1473 = vmatprep.subr.mxu0 0.0
      %1474 = vmatpush1.msra.mxu0 0.0
      %1475 = vmatprep.subr.mxu0 0.0
      %1476 = vmatpush1.msra.mxu0 0.0
      %1477 = vmatprep.subr.mxu0 0.0
      %1478 = vmatpush1.msra.mxu0 0.0
      %1479 = vmatprep.subr.mxu0 0.0
      %1480 = vmatpush1.msra.mxu0 0.0
      %1481 = vmatprep.subr.mxu0 0.0
      %1482 = vmatpush1.msra.mxu0 0.0
      %1483 = vmatprep.subr.mxu0 0.0
      %1484 = vmatpush1.msra.mxu0 0.0
      %1485 = vmatprep.subr.mxu0 0.0
      %1486 = vmatpush1.msra.mxu0 0.0
      %1487 = vmatprep.subr.mxu0 0.0
      %1488 = vmatpush1.msra.mxu0 0.0
      %1489 = vmatprep.subr.mxu0 0.0
      %1490 = vmatpush1.msra.mxu0 0.0
      %1491 = vmatprep.subr.mxu0 0.0
      %1492 = vmatpush1.msra.mxu0 0.0
      %1493 = vmatprep.subr.mxu0 0.0
      %1494 = vmatpush1.msra.mxu0 0.0
      %1495 = vmatprep.subr.mxu0 0.0
      %1496 = vmatpush1.msra.mxu0 0.0
      %1497 = vmatprep.subr.mxu0 0.0
      %1498 = vmatpush1.msra.mxu0 0.0
      %1499 = vmatprep.subr.mxu0 0.0
      %1500 = vmatpush1.msra.mxu0 0.0
      %1501 = vmatprep.subr.mxu0 0.0
      %1502 = vmatpush1.msra.mxu0 0.0
      %1503 = vmatprep.subr.mxu0 0.0
      %1504 = vmatpush1.msra.mxu0 0.0
      %1505 = vmatprep.mubr.f32.mxu0 0.0
      %1506 = vmatmul.mubr.f32.gmra.mrb[0].mxu0 %v1439
      %v1507 = vpop.f32.mrb[0].mxu0
      %v1508 = vadd.f32 0.0, %v1507
      %v1509 = vpop.f32.mrb[0].mxu0
      %1510 = vdwg.mxu0
      %1511 = vrot.lane.b32.xlu0 %v830, 112
      %v1512 = vpop.permute.xlu0 %1511
      %1513 = vrot.lane.b32.xlu0 %v820, 80
      %v1514 = vpop.permute.xlu0 %1513
      %v1515 = vsel %vm835, %v1512, 0
      %v1517 = vsel %vm835, %v1514, 0
      %1519 = vmatprep.subr.mxu0 0.0
      %1520 = vmatpush1.xpose.msra.mxu0 %v1517
      %1521 = vmatprep.subr.mxu0 0.0
      %1522 = vmatpush1.xpose.msra.mxu0 0.0
      %1523 = vmatprep.subr.mxu0 0.0
      %1524 = vmatpush1.xpose.msra.mxu0 0.0
      %1525 = vmatprep.subr.mxu0 0.0
      %1526 = vmatpush1.xpose.msra.mxu0 0.0
      %1527 = vmatprep.subr.mxu0 0.0
      %1528 = vmatpush1.xpose.msra.mxu0 0.0
      %1529 = vmatprep.subr.mxu0 0.0
      %1530 = vmatpush1.xpose.msra.mxu0 0.0
      %1531 = vmatprep.subr.mxu0 0.0
      %1532 = vmatpush1.xpose.msra.mxu0 0.0
      %1533 = vmatprep.subr.mxu0 0.0
      %1534 = vmatpush1.xpose.msra.mxu0 0.0
      %1535 = vmatprep.subr.mxu0 0.0
      %1536 = vmatpush1.xpose.msra.mxu0 0.0
      %1537 = vmatprep.subr.mxu0 0.0
      %1538 = vmatpush1.xpose.msra.mxu0 0.0
      %1539 = vmatprep.subr.mxu0 0.0
      %1540 = vmatpush1.xpose.msra.mxu0 0.0
      %1541 = vmatprep.subr.mxu0 0.0
      %1542 = vmatpush1.xpose.msra.mxu0 0.0
      %1543 = vmatprep.subr.mxu0 0.0
      %1544 = vmatpush1.xpose.msra.mxu0 0.0
      %1545 = vmatprep.subr.mxu0 0.0
      %1546 = vmatpush1.xpose.msra.mxu0 0.0
      %1547 = vmatprep.subr.mxu0 0.0
      %1548 = vmatpush1.xpose.msra.mxu0 0.0
      %1549 = vmatprep.subr.mxu0 0.0
      %1550 = vmatpush1.xpose.msra.mxu0 0.0
      %1551 = vmatprep.subr.mxu0 0.0
      %1552 = vmatpush1.xpose.msra.mxu0 0.0
      %1553 = vmatprep.subr.mxu0 0.0
      %1554 = vmatpush1.xpose.msra.mxu0 0.0
      %1555 = vmatprep.subr.mxu0 0.0
      %1556 = vmatpush1.xpose.msra.mxu0 0.0
      %1557 = vmatprep.subr.mxu0 0.0
      %1558 = vmatpush1.xpose.msra.mxu0 0.0
      %1559 = vmatprep.subr.mxu0 0.0
      %1560 = vmatpush1.xpose.msra.mxu0 0.0
      %1561 = vmatprep.subr.mxu0 0.0
      %1562 = vmatpush1.xpose.msra.mxu0 0.0
      %1563 = vmatprep.subr.mxu0 0.0
      %1564 = vmatpush1.xpose.msra.mxu0 0.0
      %1565 = vmatprep.subr.mxu0 0.0
      %1566 = vmatpush1.xpose.msra.mxu0 0.0
      %1567 = vmatprep.subr.mxu0 0.0
      %1568 = vmatpush1.xpose.msra.mxu0 0.0
      %1569 = vmatprep.subr.mxu0 0.0
      %1570 = vmatpush1.xpose.msra.mxu0 0.0
      %1571 = vmatprep.subr.mxu0 0.0
      %1572 = vmatpush1.xpose.msra.mxu0 0.0
      %1573 = vmatprep.subr.mxu0 0.0
      %1574 = vmatpush1.xpose.msra.mxu0 0.0
      %1575 = vmatprep.subr.mxu0 0.0
      %1576 = vmatpush1.xpose.msra.mxu0 0.0
      %1577 = vmatprep.subr.mxu0 0.0
      %1578 = vmatpush1.xpose.msra.mxu0 0.0
      %1579 = vmatprep.subr.mxu0 0.0
      %1580 = vmatpush1.xpose.msra.mxu0 0.0
      %1581 = vmatprep.subr.mxu0 0.0
      %1582 = vmatpush1.xpose.msra.mxu0 0.0
      %1583 = vmatprep.mubr.f32.mxu0 0.0
      %1584 = vmatmul.mubr.f32.gmra.mrb[0].mxu0 %v1515
      %v1585 = vpop.f32.mrb[0].mxu0
      %v1586 = vadd.f32 0.0, %v1585
      %v1587 = vpop.f32.mrb[0].mxu0
      %1588 = vdwg.mxu0
      %1589 = vrot.lane.b32.xlu0 %v831, 112
      %v1590 = vpop.permute.xlu0 %1589
      %1591 = vrot.lane.b32.xlu0 %v825, 80
      %v1592 = vpop.permute.xlu0 %1591
      %v1593 = vsel %vm835, %v1590, 0
      %v1595 = vsel %vm835, %v1592, 0
      %1597 = vmatprep.subr.mxu0 0.0
      %1598 = vmatpush1.xpose.msra.mxu0 %v1595
      %1599 = vmatprep.subr.mxu0 0.0
      %1600 = vmatpush1.xpose.msra.mxu0 0.0
      %1601 = vmatprep.subr.mxu0 0.0
      %1602 = vmatpush1.xpose.msra.mxu0 0.0
      %1603 = vmatprep.subr.mxu0 0.0
      %1604 = vmatpush1.xpose.msra.mxu0 0.0
      %1605 = vmatprep.subr.mxu0 0.0
      %1606 = vmatpush1.xpose.msra.mxu0 0.0
      %1607 = vmatprep.subr.mxu0 0.0
      %1608 = vmatpush1.xpose.msra.mxu0 0.0
      %1609 = vmatprep.subr.mxu0 0.0
      %1610 = vmatpush1.xpose.msra.mxu0 0.0
      %1611 = vmatprep.subr.mxu0 0.0
      %1612 = vmatpush1.xpose.msra.mxu0 0.0
      %1613 = vmatprep.subr.mxu0 0.0
      %1614 = vmatpush1.xpose.msra.mxu0 0.0
      %1615 = vmatprep.subr.mxu0 0.0
      %1616 = vmatpush1.xpose.msra.mxu0 0.0
      %1617 = vmatprep.subr.mxu0 0.0
      %1618 = vmatpush1.xpose.msra.mxu0 0.0
      %1619 = vmatprep.subr.mxu0 0.0
      %1620 = vmatpush1.xpose.msra.mxu0 0.0
      %1621 = vmatprep.subr.mxu0 0.0
      %1622 = vmatpush1.xpose.msra.mxu0 0.0
      %1623 = vmatprep.subr.mxu0 0.0
      %1624 = vmatpush1.xpose.msra.mxu0 0.0
      %1625 = vmatprep.subr.mxu0 0.0
      %1626 = vmatpush1.xpose.msra.mxu0 0.0
      %1627 = vmatprep.subr.mxu0 0.0
      %1628 = vmatpush1.xpose.msra.mxu0 0.0
      %1629 = vmatprep.subr.mxu0 0.0
      %1630 = vmatpush1.xpose.msra.mxu0 0.0
      %1631 = vmatprep.subr.mxu0 0.0
      %1632 = vmatpush1.xpose.msra.mxu0 0.0
      %1633 = vmatprep.subr.mxu0 0.0
      %1634 = vmatpush1.xpose.msra.mxu0 0.0
      %1635 = vmatprep.subr.mxu0 0.0
      %1636 = vmatpush1.xpose.msra.mxu0 0.0
      %1637 = vmatprep.subr.mxu0 0.0
      %1638 = vmatpush1.xpose.msra.mxu0 0.0
      %1639 = vmatprep.subr.mxu0 0.0
      %1640 = vmatpush1.xpose.msra.mxu0 0.0
      %1641 = vmatprep.subr.mxu0 0.0
      %1642 = vmatpush1.xpose.msra.mxu0 0.0
      %1643 = vmatprep.subr.mxu0 0.0
      %1644 = vmatpush1.xpose.msra.mxu0 0.0
      %1645 = vmatprep.subr.mxu0 0.0
      %1646 = vmatpush1.xpose.msra.mxu0 0.0
      %1647 = vmatprep.subr.mxu0 0.0
      %1648 = vmatpush1.xpose.msra.mxu0 0.0
      %1649 = vmatprep.subr.mxu0 0.0
      %1650 = vmatpush1.xpose.msra.mxu0 0.0
      %1651 = vmatprep.subr.mxu0 0.0
      %1652 = vmatpush1.xpose.msra.mxu0 0.0
      %1653 = vmatprep.subr.mxu0 0.0
      %1654 = vmatpush1.xpose.msra.mxu0 0.0
      %1655 = vmatprep.subr.mxu0 0.0
      %1656 = vmatpush1.xpose.msra.mxu0 0.0
      %1657 = vmatprep.subr.mxu0 0.0
      %1658 = vmatpush1.xpose.msra.mxu0 0.0
      %1659 = vmatprep.subr.mxu0 0.0
      %1660 = vmatpush1.xpose.msra.mxu0 0.0
      %1661 = vmatprep.mubr.f32.mxu0 0.0
      %1662 = vmatmul.mubr.f32.gmra.mrb[0].mxu0 %v1593
      %v1663 = vpop.f32.mrb[0].mxu0
      %v1664 = vadd.f32 0.0, %v1663
      %v1665 = vpop.f32.mrb[0].mxu0
      %1666 = vdwg.mxu0
      %v1667 = vsel %vm1001, -3.4028235e+38, %v1586
      %v1668 = vsel %vm1002, -3.4028235e+38, %v1664
      %v1669 = vsel %vm835, %v1667, -inf
      %1670 = vmax.xlane.f32.xlu0 %v1669
      %v1671 = vpop.xlane.xlu0 %1670
      %v1672 = vsel %vm835, %v1668, -inf
      %1673 = vmax.xlane.f32.xlu0 %v1672
      %v1674 = vpop.xlane.xlu0 %1673
      %v1675 = vsub.f32 %v1667, %v1671
      %v1676 = vsub.f32 %v1668, %v1674
      %v1677 = vmul.f32 %v1675, 1.442695
      %v1678 = vpow.pop %v1677
      %v1679 = vmul.f32 %v1676, 1.442695
      %v1680 = vpow.pop %v1679
      %v1681 = vsel %vm835, %v1678, 0.0
      %1682 = vadd.xlane.f32.xlu0 %v1681
      %v1683 = vpop.xlane.xlu0 %1682
      %v1684 = vsel %vm835, %v1680, 0.0
      %1685 = vadd.xlane.f32.xlu0 %v1684
      %v1686 = vpop.xlane.xlu0 %1685
      %v1687 = vrcp.pop %v1683
      %v1688 = vmul.f32 %v1678, %v1687
      %v1689 = vrcp.pop %v1686
      %v1690 = vmul.f32 %v1680, %v1689
      %1691 = vrot.lane.b32.xlu0 %v820, 48
      %v1692 = vpop.permute.xlu0 %1691
      %v1695 = vsel %vm835, %v1688, 0
      %1697 = vmatprep.subr.mxu0 0.0
      %1698 = vmatpush1.msra.mxu0 %v1692
      %1699 = vmatprep.subr.mxu0 0.0
      %1700 = vmatpush1.msra.mxu0 0.0
      %1701 = vmatprep.subr.mxu0 0.0
      %1702 = vmatpush1.msra.mxu0 0.0
      %1703 = vmatprep.subr.mxu0 0.0
      %1704 = vmatpush1.msra.mxu0 0.0
      %1705 = vmatprep.subr.mxu0 0.0
      %1706 = vmatpush1.msra.mxu0 0.0
      %1707 = vmatprep.subr.mxu0 0.0
      %1708 = vmatpush1.msra.mxu0 0.0
      %1709 = vmatprep.subr.mxu0 0.0
      %1710 = vmatpush1.msra.mxu0 0.0
      %1711 = vmatprep.subr.mxu0 0.0
      %1712 = vmatpush1.msra.mxu0 0.0
      %1713 = vmatprep.subr.mxu0 0.0
      %1714 = vmatpush1.msra.mxu0 0.0
      %1715 = vmatprep.subr.mxu0 0.0
      %1716 = vmatpush1.msra.mxu0 0.0
      %1717 = vmatprep.subr.mxu0 0.0
      %1718 = vmatpush1.msra.mxu0 0.0
      %1719 = vmatprep.subr.mxu0 0.0
      %1720 = vmatpush1.msra.mxu0 0.0
      %1721 = vmatprep.subr.mxu0 0.0
      %1722 = vmatpush1.msra.mxu0 0.0
      %1723 = vmatprep.subr.mxu0 0.0
      %1724 = vmatpush1.msra.mxu0 0.0
      %1725 = vmatprep.subr.mxu0 0.0
      %1726 = vmatpush1.msra.mxu0 0.0
      %1727 = vmatprep.subr.mxu0 0.0
      %1728 = vmatpush1.msra.mxu0 0.0
      %1729 = vmatprep.subr.mxu0 0.0
      %1730 = vmatpush1.msra.mxu0 0.0
      %1731 = vmatprep.subr.mxu0 0.0
      %1732 = vmatpush1.msra.mxu0 0.0
      %1733 = vmatprep.subr.mxu0 0.0
      %1734 = vmatpush1.msra.mxu0 0.0
      %1735 = vmatprep.subr.mxu0 0.0
      %1736 = vmatpush1.msra.mxu0 0.0
      %1737 = vmatprep.subr.mxu0 0.0
      %1738 = vmatpush1.msra.mxu0 0.0
      %1739 = vmatprep.subr.mxu0 0.0
      %1740 = vmatpush1.msra.mxu0 0.0
      %1741 = vmatprep.subr.mxu0 0.0
      %1742 = vmatpush1.msra.mxu0 0.0
      %1743 = vmatprep.subr.mxu0 0.0
      %1744 = vmatpush1.msra.mxu0 0.0
      %1745 = vmatprep.subr.mxu0 0.0
      %1746 = vmatpush1.msra.mxu0 0.0
      %1747 = vmatprep.subr.mxu0 0.0
      %1748 = vmatpush1.msra.mxu0 0.0
      %1749 = vmatprep.subr.mxu0 0.0
      %1750 = vmatpush1.msra.mxu0 0.0
      %1751 = vmatprep.subr.mxu0 0.0
      %1752 = vmatpush1.msra.mxu0 0.0
      %1753 = vmatprep.subr.mxu0 0.0
      %1754 = vmatpush1.msra.mxu0 0.0
      %1755 = vmatprep.subr.mxu0 0.0
      %1756 = vmatpush1.msra.mxu0 0.0
      %1757 = vmatprep.subr.mxu0 0.0
      %1758 = vmatpush1.msra.mxu0 0.0
      %1759 = vmatprep.subr.mxu0 0.0
      %1760 = vmatpush1.msra.mxu0 0.0
      %1761 = vmatprep.mubr.f32.mxu0 0.0
      %1762 = vmatmul.mubr.f32.gmra.mrb[0].mxu0 %v1695
      %v1763 = vpop.f32.mrb[0].mxu0
      %v1764 = vadd.f32 0.0, %v1763
      %v1765 = vpop.f32.mrb[0].mxu0
      %1766 = vdwg.mxu0
      %1767 = vrot.lane.b32.xlu0 %v825, 48
      %v1768 = vpop.permute.xlu0 %1767
      %v1771 = vsel %vm835, %v1690, 0
      %1773 = vmatprep.subr.mxu0 0.0
      %1774 = vmatpush1.msra.mxu0 %v1768
      %1775 = vmatprep.subr.mxu0 0.0
      %1776 = vmatpush1.msra.mxu0 0.0
      %1777 = vmatprep.subr.mxu0 0.0
      %1778 = vmatpush1.msra.mxu0 0.0
      %1779 = vmatprep.subr.mxu0 0.0
      %1780 = vmatpush1.msra.mxu0 0.0
      %1781 = vmatprep.subr.mxu0 0.0
      %1782 = vmatpush1.msra.mxu0 0.0
      %1783 = vmatprep.subr.mxu0 0.0
      %1784 = vmatpush1.msra.mxu0 0.0
      %1785 = vmatprep.subr.mxu0 0.0
      %1786 = vmatpush1.msra.mxu0 0.0
      %1787 = vmatprep.subr.mxu0 0.0
      %1788 = vmatpush1.msra.mxu0 0.0
      %1789 = vmatprep.subr.mxu0 0.0
      %1790 = vmatpush1.msra.mxu0 0.0
      %1791 = vmatprep.subr.mxu0 0.0
      %1792 = vmatpush1.msra.mxu0 0.0
      %1793 = vmatprep.subr.mxu0 0.0
      %1794 = vmatpush1.msra.mxu0 0.0
      %1795 = vmatprep.subr.mxu0 0.0
      %1796 = vmatpush1.msra.mxu0 0.0
      %1797 = vmatprep.subr.mxu0 0.0
      %1798 = vmatpush1.msra.mxu0 0.0
      %1799 = vmatprep.subr.mxu0 0.0
      %1800 = vmatpush1.msra.mxu0 0.0
      %1801 = vmatprep.subr.mxu0 0.0
      %1802 = vmatpush1.msra.mxu0 0.0
      %1803 = vmatprep.subr.mxu0 0.0
      %1804 = vmatpush1.msra.mxu0 0.0
      %1805 = vmatprep.subr.mxu0 0.0
      %1806 = vmatpush1.msra.mxu0 0.0
      %1807 = vmatprep.subr.mxu0 0.0
      %1808 = vmatpush1.msra.mxu0 0.0
      %1809 = vmatprep.subr.mxu0 0.0
      %1810 = vmatpush1.msra.mxu0 0.0
      %1811 = vmatprep.subr.mxu0 0.0
      %1812 = vmatpush1.msra.mxu0 0.0
      %1813 = vmatprep.subr.mxu0 0.0
      %1814 = vmatpush1.msra.mxu0 0.0
      %1815 = vmatprep.subr.mxu0 0.0
      %1816 = vmatpush1.msra.mxu0 0.0
      %1817 = vmatprep.subr.mxu0 0.0
      %1818 = vmatpush1.msra.mxu0 0.0
      %1819 = vmatprep.subr.mxu0 0.0
      %1820 = vmatpush1.msra.mxu0 0.0
      %1821 = vmatprep.subr.mxu0 0.0
      %1822 = vmatpush1.msra.mxu0 0.0
      %1823 = vmatprep.subr.mxu0 0.0
      %1824 = vmatpush1.msra.mxu0 0.0
      %1825 = vmatprep.subr.mxu0 0.0
      %1826 = vmatpush1.msra.mxu0 0.0
      %1827 = vmatprep.subr.mxu0 0.0
      %1828 = vmatpush1.msra.mxu0 0.0
      %1829 = vmatprep.subr.mxu0 0.0
      %1830 = vmatpush1.msra.mxu0 0.0
      %1831 = vmatprep.subr.mxu0 0.0
      %1832 = vmatpush1.msra.mxu0 0.0
      %1833 = vmatprep.subr.mxu0 0.0
      %1834 = vmatpush1.msra.mxu0 0.0
      %1835 = vmatprep.subr.mxu0 0.0
      %1836 = vmatpush1.msra.mxu0 0.0
      %1837 = vmatprep.mubr.f32.mxu0 0.0
      %1838 = vmatmul.mubr.f32.gmra.mrb[0].mxu0 %v1771
      %v1839 = vpop.f32.mrb[0].mxu0
      %v1840 = vadd.f32 0.0, %v1839
      %v1841 = vpop.f32.mrb[0].mxu0
      %1842 = vdwg.mxu0
      %1843 = vrot.lane.b32.xlu0 %v830, 104
      %v1844 = vpop.permute.xlu0 %1843
      %1845 = vrot.lane.b32.xlu0 %v820, 72
      %v1846 = vpop.permute.xlu0 %1845
      %v1847 = vsel %vm835, %v1844, 0
      %v1849 = vsel %vm835, %v1846, 0
      %1851 = vmatprep.subr.mxu0 0.0
      %1852 = vmatpush1.xpose.msra.mxu0 %v1849
      %1853 = vmatprep.subr.mxu0 0.0
      %1854 = vmatpush1.xpose.msra.mxu0 0.0
      %1855 = vmatprep.subr.mxu0 0.0
      %1856 = vmatpush1.xpose.msra.mxu0 0.0
      %1857 = vmatprep.subr.mxu0 0.0
      %1858 = vmatpush1.xpose.msra.mxu0 0.0
      %1859 = vmatprep.subr.mxu0 0.0
      %1860 = vmatpush1.xpose.msra.mxu0 0.0
      %1861 = vmatprep.subr.mxu0 0.0
      %1862 = vmatpush1.xpose.msra.mxu0 0.0
      %1863 = vmatprep.subr.mxu0 0.0
      %1864 = vmatpush1.xpose.msra.mxu0 0.0
      %1865 = vmatprep.subr.mxu0 0.0
      %1866 = vmatpush1.xpose.msra.mxu0 0.0
      %1867 = vmatprep.subr.mxu0 0.0
      %1868 = vmatpush1.xpose.msra.mxu0 0.0
      %1869 = vmatprep.subr.mxu0 0.0
      %1870 = vmatpush1.xpose.msra.mxu0 0.0
      %1871 = vmatprep.subr.mxu0 0.0
      %1872 = vmatpush1.xpose.msra.mxu0 0.0
      %1873 = vmatprep.subr.mxu0 0.0
      %1874 = vmatpush1.xpose.msra.mxu0 0.0
      %1875 = vmatprep.subr.mxu0 0.0
      %1876 = vmatpush1.xpose.msra.mxu0 0.0
      %1877 = vmatprep.subr.mxu0 0.0
      %1878 = vmatpush1.xpose.msra.mxu0 0.0
      %1879 = vmatprep.subr.mxu0 0.0
      %1880 = vmatpush1.xpose.msra.mxu0 0.0
      %1881 = vmatprep.subr.mxu0 0.0
      %1882 = vmatpush1.xpose.msra.mxu0 0.0
      %1883 = vmatprep.subr.mxu0 0.0
      %1884 = vmatpush1.xpose.msra.mxu0 0.0
      %1885 = vmatprep.subr.mxu0 0.0
      %1886 = vmatpush1.xpose.msra.mxu0 0.0
      %1887 = vmatprep.subr.mxu0 0.0
      %1888 = vmatpush1.xpose.msra.mxu0 0.0
      %1889 = vmatprep.subr.mxu0 0.0
      %1890 = vmatpush1.xpose.msra.mxu0 0.0
      %1891 = vmatprep.subr.mxu0 0.0
      %1892 = vmatpush1.xpose.msra.mxu0 0.0
      %1893 = vmatprep.subr.mxu0 0.0
      %1894 = vmatpush1.xpose.msra.mxu0 0.0
      %1895 = vmatprep.subr.mxu0 0.0
      %1896 = vmatpush1.xpose.msra.mxu0 0.0
      %1897 = vmatprep.subr.mxu0 0.0
      %1898 = vmatpush1.xpose.msra.mxu0 0.0
      %1899 = vmatprep.subr.mxu0 0.0
      %1900 = vmatpush1.xpose.msra.mxu0 0.0
      %1901 = vmatprep.subr.mxu0 0.0
      %1902 = vmatpush1.xpose.msra.mxu0 0.0
      %1903 = vmatprep.subr.mxu0 0.0
      %1904 = vmatpush1.xpose.msra.mxu0 0.0
      %1905 = vmatprep.subr.mxu0 0.0
      %1906 = vmatpush1.xpose.msra.mxu0 0.0
      %1907 = vmatprep.subr.mxu0 0.0
      %1908 = vmatpush1.xpose.msra.mxu0 0.0
      %1909 = vmatprep.subr.mxu0 0.0
      %1910 = vmatpush1.xpose.msra.mxu0 0.0
      %1911 = vmatprep.subr.mxu0 0.0
      %1912 = vmatpush1.xpose.msra.mxu0 0.0
      %1913 = vmatprep.subr.mxu0 0.0
      %1914 = vmatpush1.xpose.msra.mxu0 0.0
      %1915 = vmatprep.mubr.f32.mxu0 0.0
      %1916 = vmatmul.mubr.f32.gmra.mrb[0].mxu0 %v1847
      %v1917 = vpop.f32.mrb[0].mxu0
      %v1918 = vadd.f32 0.0, %v1917
      %v1919 = vpop.f32.mrb[0].mxu0
      %1920 = vdwg.mxu0
      %1921 = vrot.lane.b32.xlu0 %v831, 104
      %v1922 = vpop.permute.xlu0 %1921
      %1923 = vrot.lane.b32.xlu0 %v825, 72
      %v1924 = vpop.permute.xlu0 %1923
      %v1925 = vsel %vm835, %v1922, 0
      %v1927 = vsel %vm835, %v1924, 0
      %1929 = vmatprep.subr.mxu0 0.0
      %1930 = vmatpush1.xpose.msra.mxu0 %v1927
      %1931 = vmatprep.subr.mxu0 0.0
      %1932 = vmatpush1.xpose.msra.mxu0 0.0
      %1933 = vmatprep.subr.mxu0 0.0
      %1934 = vmatpush1.xpose.msra.mxu0 0.0
      %1935 = vmatprep.subr.mxu0 0.0
      %1936 = vmatpush1.xpose.msra.mxu0 0.0
      %1937 = vmatprep.subr.mxu0 0.0
      %1938 = vmatpush1.xpose.msra.mxu0 0.0
      %1939 = vmatprep.subr.mxu0 0.0
      %1940 = vmatpush1.xpose.msra.mxu0 0.0
      %1941 = vmatprep.subr.mxu0 0.0
      %1942 = vmatpush1.xpose.msra.mxu0 0.0
      %1943 = vmatprep.subr.mxu0 0.0
      %1944 = vmatpush1.xpose.msra.mxu0 0.0
      %1945 = vmatprep.subr.mxu0 0.0
      %1946 = vmatpush1.xpose.msra.mxu0 0.0
      %1947 = vmatprep.subr.mxu0 0.0
      %1948 = vmatpush1.xpose.msra.mxu0 0.0
      %1949 = vmatprep.subr.mxu0 0.0
      %1950 = vmatpush1.xpose.msra.mxu0 0.0
      %1951 = vmatprep.subr.mxu0 0.0
      %1952 = vmatpush1.xpose.msra.mxu0 0.0
      %1953 = vmatprep.subr.mxu0 0.0
      %1954 = vmatpush1.xpose.msra.mxu0 0.0
      %1955 = vmatprep.subr.mxu0 0.0
      %1956 = vmatpush1.xpose.msra.mxu0 0.0
      %1957 = vmatprep.subr.mxu0 0.0
      %1958 = vmatpush1.xpose.msra.mxu0 0.0
      %1959 = vmatprep.subr.mxu0 0.0
      %1960 = vmatpush1.xpose.msra.mxu0 0.0
      %1961 = vmatprep.subr.mxu0 0.0
      %1962 = vmatpush1.xpose.msra.mxu0 0.0
      %1963 = vmatprep.subr.mxu0 0.0
      %1964 = vmatpush1.xpose.msra.mxu0 0.0
      %1965 = vmatprep.subr.mxu0 0.0
      %1966 = vmatpush1.xpose.msra.mxu0 0.0
      %1967 = vmatprep.subr.mxu0 0.0
      %1968 = vmatpush1.xpose.msra.mxu0 0.0
      %1969 = vmatprep.subr.mxu0 0.0
      %1970 = vmatpush1.xpose.msra.mxu0 0.0
      %1971 = vmatprep.subr.mxu0 0.0
      %1972 = vmatpush1.xpose.msra.mxu0 0.0
      %1973 = vmatprep.subr.mxu0 0.0
      %1974 = vmatpush1.xpose.msra.mxu0 0.0
      %1975 = vmatprep.subr.mxu0 0.0
      %1976 = vmatpush1.xpose.msra.mxu0 0.0
      %1977 = vmatprep.subr.mxu0 0.0
      %1978 = vmatpush1.xpose.msra.mxu0 0.0
      %1979 = vmatprep.subr.mxu0 0.0
      %1980 = vmatpush1.xpose.msra.mxu0 0.0
      %1981 = vmatprep.subr.mxu0 0.0
      %1982 = vmatpush1.xpose.msra.mxu0 0.0
      %1983 = vmatprep.subr.mxu0 0.0
      %1984 = vmatpush1.xpose.msra.mxu0 0.0
      %1985 = vmatprep.subr.mxu0 0.0
      %1986 = vmatpush1.xpose.msra.mxu0 0.0
      %1987 = vmatprep.subr.mxu0 0.0
      %1988 = vmatpush1.xpose.msra.mxu0 0.0
      %1989 = vmatprep.subr.mxu0 0.0
      %1990 = vmatpush1.xpose.msra.mxu0 0.0
      %1991 = vmatprep.subr.mxu0 0.0
      %1992 = vmatpush1.xpose.msra.mxu0 0.0
      %1993 = vmatprep.mubr.f32.mxu0 0.0
      %1994 = vmatmul.mubr.f32.gmra.mrb[0].mxu0 %v1925
      %v1995 = vpop.f32.mrb[0].mxu0
      %v1996 = vadd.f32 0.0, %v1995
      %v1997 = vpop.f32.mrb[0].mxu0
      %1998 = vdwg.mxu0
      %v1999 = vsel %vm1001, -3.4028235e+38, %v1918
      %v2000 = vsel %vm1002, -3.4028235e+38, %v1996
      %v2001 = vsel %vm835, %v1999, -inf
      %2002 = vmax.xlane.f32.xlu0 %v2001
      %v2003 = vpop.xlane.xlu0 %2002
      %v2004 = vsel %vm835, %v2000, -inf
      %2005 = vmax.xlane.f32.xlu0 %v2004
      %v2006 = vpop.xlane.xlu0 %2005
      %v2007 = vsub.f32 %v1999, %v2003
      %v2008 = vsub.f32 %v2000, %v2006
      %v2009 = vmul.f32 %v2007, 1.442695
      %v2010 = vpow.pop %v2009
      %v2011 = vmul.f32 %v2008, 1.442695
      %v2012 = vpow.pop %v2011
      %v2013 = vsel %vm835, %v2010, 0.0
      %2014 = vadd.xlane.f32.xlu0 %v2013
      %v2015 = vpop.xlane.xlu0 %2014
      %v2016 = vsel %vm835, %v2012, 0.0
      %2017 = vadd.xlane.f32.xlu0 %v2016
      %v2018 = vpop.xlane.xlu0 %2017
      %v2019 = vrcp.pop %v2015
      %v2020 = vmul.f32 %v2010, %v2019
      %v2021 = vrcp.pop %v2018
      %v2022 = vmul.f32 %v2012, %v2021
      %2023 = vrot.lane.b32.xlu0 %v820, 40
      %v2024 = vpop.permute.xlu0 %2023
      %v2027 = vsel %vm835, %v2020, 0
      %2029 = vmatprep.subr.mxu0 0.0
      %2030 = vmatpush1.msra.mxu0 %v2024
      %2031 = vmatprep.subr.mxu0 0.0
      %2032 = vmatpush1.msra.mxu0 0.0
      %2033 = vmatprep.subr.mxu0 0.0
      %2034 = vmatpush1.msra.mxu0 0.0
      %2035 = vmatprep.subr.mxu0 0.0
      %2036 = vmatpush1.msra.mxu0 0.0
      %2037 = vmatprep.subr.mxu0 0.0
      %2038 = vmatpush1.msra.mxu0 0.0
      %2039 = vmatprep.subr.mxu0 0.0
      %2040 = vmatpush1.msra.mxu0 0.0
      %2041 = vmatprep.subr.mxu0 0.0
      %2042 = vmatpush1.msra.mxu0 0.0
      %2043 = vmatprep.subr.mxu0 0.0
      %2044 = vmatpush1.msra.mxu0 0.0
      %2045 = vmatprep.subr.mxu0 0.0
      %2046 = vmatpush1.msra.mxu0 0.0
      %2047 = vmatprep.subr.mxu0 0.0
      %2048 = vmatpush1.msra.mxu0 0.0
      %2049 = vmatprep.subr.mxu0 0.0
      %2050 = vmatpush1.msra.mxu0 0.0
      %2051 = vmatprep.subr.mxu0 0.0
      %2052 = vmatpush1.msra.mxu0 0.0
      %2053 = vmatprep.subr.mxu0 0.0
      %2054 = vmatpush1.msra.mxu0 0.0
      %2055 = vmatprep.subr.mxu0 0.0
      %2056 = vmatpush1.msra.mxu0 0.0
      %2057 = vmatprep.subr.mxu0 0.0
      %2058 = vmatpush1.msra.mxu0 0.0
      %2059 = vmatprep.subr.mxu0 0.0
      %2060 = vmatpush1.msra.mxu0 0.0
      %2061 = vmatprep.subr.mxu0 0.0
      %2062 = vmatpush1.msra.mxu0 0.0
      %2063 = vmatprep.subr.mxu0 0.0
      %2064 = vmatpush1.msra.mxu0 0.0
      %2065 = vmatprep.subr.mxu0 0.0
      %2066 = vmatpush1.msra.mxu0 0.0
      %2067 = vmatprep.subr.mxu0 0.0
      %2068 = vmatpush1.msra.mxu0 0.0
      %2069 = vmatprep.subr.mxu0 0.0
      %2070 = vmatpush1.msra.mxu0 0.0
      %2071 = vmatprep.subr.mxu0 0.0
      %2072 = vmatpush1.msra.mxu0 0.0
      %2073 = vmatprep.subr.mxu0 0.0
      %2074 = vmatpush1.msra.mxu0 0.0
      %2075 = vmatprep.subr.mxu0 0.0
      %2076 = vmatpush1.msra.mxu0 0.0
      %2077 = vmatprep.subr.mxu0 0.0
      %2078 = vmatpush1.msra.mxu0 0.0
      %2079 = vmatprep.subr.mxu0 0.0
      %2080 = vmatpush1.msra.mxu0 0.0
      %2081 = vmatprep.subr.mxu0 0.0
      %2082 = vmatpush1.msra.mxu0 0.0
      %2083 = vmatprep.subr.mxu0 0.0
      %2084 = vmatpush1.msra.mxu0 0.0
      %2085 = vmatprep.subr.mxu0 0.0
      %2086 = vmatpush1.msra.mxu0 0.0
      %2087 = vmatprep.subr.mxu0 0.0
      %2088 = vmatpush1.msra.mxu0 0.0
      %2089 = vmatprep.subr.mxu0 0.0
      %2090 = vmatpush1.msra.mxu0 0.0
      %2091 = vmatprep.subr.mxu0 0.0
      %2092 = vmatpush1.msra.mxu0 0.0
      %2093 = vmatprep.mubr.f32.mxu0 0.0
      %2094 = vmatmul.mubr.f32.gmra.mrb[0].mxu0 %v2027
      %v2095 = vpop.f32.mrb[0].mxu0
      %v2096 = vadd.f32 0.0, %v2095
      %v2097 = vpop.f32.mrb[0].mxu0
      %2098 = vdwg.mxu0
      %2099 = vrot.lane.b32.xlu0 %v825, 40
      %v2100 = vpop.permute.xlu0 %2099
      %v2103 = vsel %vm835, %v2022, 0
      %2105 = vmatprep.subr.mxu0 0.0
      %2106 = vmatpush1.msra.mxu0 %v2100
      %2107 = vmatprep.subr.mxu0 0.0
      %2108 = vmatpush1.msra.mxu0 0.0
      %2109 = vmatprep.subr.mxu0 0.0
      %2110 = vmatpush1.msra.mxu0 0.0
      %2111 = vmatprep.subr.mxu0 0.0
      %2112 = vmatpush1.msra.mxu0 0.0
      %2113 = vmatprep.subr.mxu0 0.0
      %2114 = vmatpush1.msra.mxu0 0.0
      %2115 = vmatprep.subr.mxu0 0.0
      %2116 = vmatpush1.msra.mxu0 0.0
      %2117 = vmatprep.subr.mxu0 0.0
      %2118 = vmatpush1.msra.mxu0 0.0
      %2119 = vmatprep.subr.mxu0 0.0
      %2120 = vmatpush1.msra.mxu0 0.0
      %2121 = vmatprep.subr.mxu0 0.0
      %2122 = vmatpush1.msra.mxu0 0.0
      %2123 = vmatprep.subr.mxu0 0.0
      %2124 = vmatpush1.msra.mxu0 0.0
      %2125 = vmatprep.subr.mxu0 0.0
      %2126 = vmatpush1.msra.mxu0 0.0
      %2127 = vmatprep.subr.mxu0 0.0
      %2128 = vmatpush1.msra.mxu0 0.0
      %2129 = vmatprep.subr.mxu0 0.0
      %2130 = vmatpush1.msra.mxu0 0.0
      %2131 = vmatprep.subr.mxu0 0.0
      %2132 = vmatpush1.msra.mxu0 0.0
      %2133 = vmatprep.subr.mxu0 0.0
      %2134 = vmatpush1.msra.mxu0 0.0
      %2135 = vmatprep.subr.mxu0 0.0
      %2136 = vmatpush1.msra.mxu0 0.0
      %2137 = vmatprep.subr.mxu0 0.0
      %2138 = vmatpush1.msra.mxu0 0.0
      %2139 = vmatprep.subr.mxu0 0.0
      %2140 = vmatpush1.msra.mxu0 0.0
      %2141 = vmatprep.subr.mxu0 0.0
      %2142 = vmatpush1.msra.mxu0 0.0
      %2143 = vmatprep.subr.mxu0 0.0
      %2144 = vmatpush1.msra.mxu0 0.0
      %2145 = vmatprep.subr.mxu0 0.0
      %2146 = vmatpush1.msra.mxu0 0.0
      %2147 = vmatprep.subr.mxu0 0.0
      %2148 = vmatpush1.msra.mxu0 0.0
      %2149 = vmatprep.subr.mxu0 0.0
      %2150 = vmatpush1.msra.mxu0 0.0
      %2151 = vmatprep.subr.mxu0 0.0
      %2152 = vmatpush1.msra.mxu0 0.0
      %2153 = vmatprep.subr.mxu0 0.0
      %2154 = vmatpush1.msra.mxu0 0.0
      %2155 = vmatprep.subr.mxu0 0.0
      %2156 = vmatpush1.msra.mxu0 0.0
      %2157 = vmatprep.subr.mxu0 0.0
      %2158 = vmatpush1.msra.mxu0 0.0
      %2159 = vmatprep.subr.mxu0 0.0
      %2160 = vmatpush1.msra.mxu0 0.0
      %2161 = vmatprep.subr.mxu0 0.0
      %2162 = vmatpush1.msra.mxu0 0.0
      %2163 = vmatprep.subr.mxu0 0.0
      %2164 = vmatpush1.msra.mxu0 0.0
      %2165 = vmatprep.subr.mxu0 0.0
      %2166 = vmatpush1.msra.mxu0 0.0
      %2167 = vmatprep.subr.mxu0 0.0
      %2168 = vmatpush1.msra.mxu0 0.0
      %2169 = vmatprep.mubr.f32.mxu0 0.0
      %2170 = vmatmul.mubr.f32.gmra.mrb[0].mxu0 %v2103
      %v2171 = vpop.f32.mrb[0].mxu0
      %v2172 = vadd.f32 0.0, %v2171
      %v2173 = vpop.f32.mrb[0].mxu0
      %2174 = vdwg.mxu0
      %2177 = vrot.lane.b32.xlu0 %v1432, 8
      %v2178 = vpop.permute.xlu0 %2177
      %2179 = vrot.lane.b32.xlu0 %v1508, 8
      %v2180 = vpop.permute.xlu0 %2179
      %2185 = vrot.lane.b32.xlu0 %v1764, 16
      %v2186 = vpop.permute.xlu0 %2185
      %2187 = vrot.lane.b32.xlu0 %v1840, 16
      %v2188 = vpop.permute.xlu0 %2187
      %2193 = vrot.lane.b32.xlu0 %v2096, 24
      %v2194 = vpop.permute.xlu0 %2193
      %2195 = vrot.lane.b32.xlu0 %v2172, 24
      %v2196 = vpop.permute.xlu0 %2195
      %v2199 = vsel %vm835, %v1100, %v2178
      %v2200 = vsel %vm835, %v1176, %v2180
      %vm2201 = vcmask 130048
      %v2202 = vsel %vm2201, %v2199, %v2186
      %v2203 = vsel %vm2201, %v2200, %v2188
      %vm2204 = vcmask 195584
      %v2205 = vsel %vm2204, %v2202, %v2194
      %v2206 = vsel %vm2204, %v2203, %v2196
      %v2207 = vld [vmem:[%s647] sm:$0xff]
      %v2208 = vld [vmem:[%s647 + $0x8] sm:$0xff]
      %v2209 = vld [vmem:[%s647 + $0x10] sm:$0xff]
      %v2210 = vld [vmem:[%s647 + $0x18] sm:$0xff]
      %v2211 = vld [vmem:[%s650] sm:$0x1]
      %v2213 = vlaneseq
      %v2214 = vshrl.u32 %v2213, 7
      %v2215 = vsub.s32 0, %v2214
      %v2216 = vrot.slane %v2211, %v2215
      %v2219 = vsel %vm746, %v2205, 0
      %v2222 = vsel %vm746, %v2206, 0
      %2224 = vmatprep.subr.mxu0 0.0
      %2225 = vmatpush1.msra.mxu0 %v2207
      %2226 = vmatprep.subr.mxu0 0.0
      %2227 = vmatpush1.msra.mxu0 %v2208
      %2228 = vmatprep.subr.mxu0 0.0
      %2229 = vmatpush1.msra.mxu0 %v2209
      %2230 = vmatprep.subr.mxu0 0.0
      %2231 = vmatpush1.msra.mxu0 %v2210
      %2232 = vmatprep.subr.mxu0 0.0
      %2233 = vmatpush1.msra.mxu0 0.0
      %2234 = vmatprep.subr.mxu0 0.0
      %2235 = vmatpush1.msra.mxu0 0.0
      %2236 = vmatprep.subr.mxu0 0.0
      %2237 = vmatpush1.msra.mxu0 0.0
      %2238 = vmatprep.subr.mxu0 0.0
      %2239 = vmatpush1.msra.mxu0 0.0
      %2240 = vmatprep.subr.mxu0 0.0
      %2241 = vmatpush1.msra.mxu0 0.0
      %2242 = vmatprep.subr.mxu0 0.0
      %2243 = vmatpush1.msra.mxu0 0.0
      %2244 = vmatprep.subr.mxu0 0.0
      %2245 = vmatpush1.msra.mxu0 0.0
      %2246 = vmatprep.subr.mxu0 0.0
      %2247 = vmatpush1.msra.mxu0 0.0
      %2248 = vmatprep.subr.mxu0 0.0
      %2249 = vmatpush1.msra.mxu0 0.0
      %2250 = vmatprep.subr.mxu0 0.0
      %2251 = vmatpush1.msra.mxu0 0.0
      %2252 = vmatprep.subr.mxu0 0.0
      %2253 = vmatpush1.msra.mxu0 0.0
      %2254 = vmatprep.subr.mxu0 0.0
      %2255 = vmatpush1.msra.mxu0 0.0
      %2256 = vmatprep.subr.mxu0 0.0
      %2257 = vmatpush1.msra.mxu0 0.0
      %2258 = vmatprep.subr.mxu0 0.0
      %2259 = vmatpush1.msra.mxu0 0.0
      %2260 = vmatprep.subr.mxu0 0.0
      %2261 = vmatpush1.msra.mxu0 0.0
      %2262 = vmatprep.subr.mxu0 0.0
      %2263 = vmatpush1.msra.mxu0 0.0
      %2264 = vmatprep.subr.mxu0 0.0
      %2265 = vmatpush1.msra.mxu0 0.0
      %2266 = vmatprep.subr.mxu0 0.0
      %2267 = vmatpush1.msra.mxu0 0.0
      %2268 = vmatprep.subr.mxu0 0.0
      %2269 = vmatpush1.msra.mxu0 0.0
      %2270 = vmatprep.subr.mxu0 0.0
      %2271 = vmatpush1.msra.mxu0 0.0
      %2272 = vmatprep.subr.mxu0 0.0
      %2273 = vmatpush1.msra.mxu0 0.0
      %2274 = vmatprep.subr.mxu0 0.0
      %2275 = vmatpush1.msra.mxu0 0.0
      %2276 = vmatprep.subr.mxu0 0.0
      %2277 = vmatpush1.msra.mxu0 0.0
      %2278 = vmatprep.subr.mxu0 0.0
      %2279 = vmatpush1.msra.mxu0 0.0
      %2280 = vmatprep.subr.mxu0 0.0
      %2281 = vmatpush1.msra.mxu0 0.0
      %2282 = vmatprep.subr.mxu0 0.0
      %2283 = vmatpush1.msra.mxu0 0.0
      %2284 = vmatprep.subr.mxu0 0.0
      %2285 = vmatpush1.msra.mxu0 0.0
      %2286 = vmatprep.subr.mxu0 0.0
      %2287 = vmatpush1.msra.mxu0 0.0
      %2288 = vmatprep.mubr.f32.mxu0 0.0
      %2289 = vmatmul.mubr.f32.gmra.mrb[0].mxu0 %v2219
      %v2290 = vpop.f32.mrb[0].mxu0
      %v2291 = vadd.f32 %v2216, %v2290
      %v2292 = vpop.f32.mrb[0].mxu0
      %2293 = vmatprep.mubr.f32.mxu0 0.0
      %2294 = vmatmul.mubr.f32.gmra.mrb[0].mxu0 %v2222
      %v2295 = vpop.f32.mrb[0].mxu0
      %v2296 = vadd.f32 %v2216, %v2295
      %v2297 = vpop.f32.mrb[0].mxu0
      %2298 = vdwg.mxu0
      %v2299 = vadd.f32 %v733, %v2291
      %v2300 = vadd.f32 %v734, %v2296
      %v2301 = vld [vmem:[%s653] sm:$0x1]
      %v2302 = vld [vmem:[%s656] sm:$0x1]
      %v2303 = vsel %vm746, %v2299, 0.0
      %2304 = vadd.xlane.f32.xlu0 %v2303
      %v2305 = vpop.xlane.xlu0 %2304
      %v2306 = vsel %vm746, %v2300, 0.0
      %2307 = vadd.xlane.f32.xlu0 %v2306
      %v2308 = vpop.xlane.xlu0 %2307
      %v2309 = vrcp.pop 32.0
      %v2310 = vmul.f32 %v2305, %v2309
      %v2311 = vmul.f32 %v2308, %v2309
      %v2312 = vsub.f32 %v2299, %v2310
      %v2313 = vsub.f32 %v2300, %v2311
      %v2314 = vmul.f32 %v2312, %v2312
      %v2315 = vmul.f32 %v2313, %v2313
      %v2316 = vsel %vm746, %v2314, 0.0
      %2317 = vadd.xlane.f32.xlu0 %v2316
      %v2318 = vpop.xlane.xlu0 %2317
      %v2319 = vsel %vm746, %v2315, 0.0
      %2320 = vadd.xlane.f32.xlu0 %v2319
      %v2321 = vpop.xlane.xlu0 %2320
      %v2322 = vmul.f32 %v2318, %v2309
      %v2323 = vmul.f32 %v2321, %v2309
      %v2324 = vadd.f32 %v2322, 1e-12
      %v2325 = vadd.f32 %v2323, 1e-12
      %v2326 = vrsqrt.pop %v2324
      %v2327 = vrsqrt.pop %v2325
      %v2328 = vmul.f32 %v2312, %v2326
      %v2329 = vmul.f32 %v2313, %v2327
      %v2331 = vlaneseq
      %v2332 = vshrl.u32 %v2331, 7
      %v2333 = vsub.s32 0, %v2332
      %v2334 = vrot.slane %v2301, %v2333
      %v2336 = vmul.f32 %v2328, %v2334
      %v2337 = vmul.f32 %v2329, %v2334
      %v2339 = vlaneseq
      %v2340 = vshrl.u32 %v2339, 7
      %v2341 = vsub.s32 0, %v2340
      %v2342 = vrot.slane %v2302, %v2341
      %v2344 = vadd.f32 %v2336, %v2342
      %v2345 = vadd.f32 %v2337, %v2342
      %v2346 = vld [vmem:[%s661] sm:$0xff]
      %v2347 = vld [vmem:[%s661 + $0x8] sm:$0xff]
      %v2348 = vld [vmem:[%s661 + $0x10] sm:$0xff]
      %v2349 = vld [vmem:[%s661 + $0x18] sm:$0xff]
      %v2350 = vld [vmem:[%s664] sm:$0x1]
      %v2352 = vlaneseq
      %v2353 = vshrl.u32 %v2352, 7
      %v2354 = vsub.s32 0, %v2353
      %v2355 = vrot.slane %v2350, %v2354
      %v2358 = vsel %vm746, %v2344, 0
      %v2361 = vsel %vm746, %v2345, 0
      %2363 = vmatprep.subr.mxu0 0.0
      %2364 = vmatpush1.msra.mxu0 %v2346
      %2365 = vmatprep.subr.mxu0 0.0
      %2366 = vmatpush1.msra.mxu0 %v2347
      %2367 = vmatprep.subr.mxu0 0.0
      %2368 = vmatpush1.msra.mxu0 %v2348
      %2369 = vmatprep.subr.mxu0 0.0
      %2370 = vmatpush1.msra.mxu0 %v2349
      %2371 = vmatprep.subr.mxu0 0.0
      %2372 = vmatpush1.msra.mxu0 0.0
      %2373 = vmatprep.subr.mxu0 0.0
      %2374 = vmatpush1.msra.mxu0 0.0
      %2375 = vmatprep.subr.mxu0 0.0
      %2376 = vmatpush1.msra.mxu0 0.0
      %2377 = vmatprep.subr.mxu0 0.0
      %2378 = vmatpush1.msra.mxu0 0.0
      %2379 = vmatprep.subr.mxu0 0.0
      %2380 = vmatpush1.msra.mxu0 0.0
      %2381 = vmatprep.subr.mxu0 0.0
      %2382 = vmatpush1.msra.mxu0 0.0
      %2383 = vmatprep.subr.mxu0 0.0
      %2384 = vmatpush1.msra.mxu0 0.0
      %2385 = vmatprep.subr.mxu0 0.0
      %2386 = vmatpush1.msra.mxu0 0.0
      %2387 = vmatprep.subr.mxu0 0.0
      %2388 = vmatpush1.msra.mxu0 0.0
      %2389 = vmatprep.subr.mxu0 0.0
      %2390 = vmatpush1.msra.mxu0 0.0
      %2391 = vmatprep.subr.mxu0 0.0
      %2392 = vmatpush1.msra.mxu0 0.0
      %2393 = vmatprep.subr.mxu0 0.0
      %2394 = vmatpush1.msra.mxu0 0.0
      %2395 = vmatprep.subr.mxu0 0.0
      %2396 = vmatpush1.msra.mxu0 0.0
      %2397 = vmatprep.subr.mxu0 0.0
      %2398 = vmatpush1.msra.mxu0 0.0
      %2399 = vmatprep.subr.mxu0 0.0
      %2400 = vmatpush1.msra.mxu0 0.0
      %2401 = vmatprep.subr.mxu0 0.0
      %2402 = vmatpush1.msra.mxu0 0.0
      %2403 = vmatprep.subr.mxu0 0.0
      %2404 = vmatpush1.msra.mxu0 0.0
      %2405 = vmatprep.subr.mxu0 0.0
      %2406 = vmatpush1.msra.mxu0 0.0
      %2407 = vmatprep.subr.mxu0 0.0
      %2408 = vmatpush1.msra.mxu0 0.0
      %2409 = vmatprep.subr.mxu0 0.0
      %2410 = vmatpush1.msra.mxu0 0.0
      %2411 = vmatprep.subr.mxu0 0.0
      %2412 = vmatpush1.msra.mxu0 0.0
      %2413 = vmatprep.subr.mxu0 0.0
      %2414 = vmatpush1.msra.mxu0 0.0
      %2415 = vmatprep.subr.mxu0 0.0
      %2416 = vmatpush1.msra.mxu0 0.0
      %2417 = vmatprep.subr.mxu0 0.0
      %2418 = vmatpush1.msra.mxu0 0.0
      %2419 = vmatprep.subr.mxu0 0.0
      %2420 = vmatpush1.msra.mxu0 0.0
      %2421 = vmatprep.subr.mxu0 0.0
      %2422 = vmatpush1.msra.mxu0 0.0
      %2423 = vmatprep.subr.mxu0 0.0
      %2424 = vmatpush1.msra.mxu0 0.0
      %2425 = vmatprep.subr.mxu0 0.0
      %2426 = vmatpush1.msra.mxu0 0.0
      %2427 = vmatprep.mubr.f32.mxu0 0.0
      %2428 = vmatmul.mubr.f32.gmra.mrb[0].mxu0 %v2358
      %v2429 = vpop.f32.mrb[0].mxu0
      %v2430 = vadd.f32 %v2355, %v2429
      %v2431 = vpop.f32.mrb[0].mxu0
      %2432 = vmatprep.mubr.f32.mxu0 0.0
      %2433 = vmatmul.mubr.f32.gmra.mrb[0].mxu0 %v2361
      %v2434 = vpop.f32.mrb[0].mxu0
      %v2435 = vadd.f32 %v2355, %v2434
      %v2436 = vpop.f32.mrb[0].mxu0
      %2437 = vdwg.mxu0
      %v2438 = vmul.f32 %v2430, 0.5
      %v2439 = vmul.f32 %v2435, 0.5
      %v2440 = vrcp.pop 1.4142135
      %v2441 = vmul.f32 %v2430, %v2440
      %v2442 = vmul.f32 %v2435, %v2440
      %v2443 = verf.f32.pop %v2441
      %v2444 = verf.f32.pop %v2442
      %v2445 = vadd.f32 %v2443, 1.0
      %v2446 = vadd.f32 %v2444, 1.0
      %v2447 = vmul.f32 %v2438, %v2445
      %v2448 = vmul.f32 %v2439, %v2446
      %v2449 = vld [vmem:[%s669] sm:$0xff]
      %v2450 = vld [vmem:[%s669 + $0x8] sm:$0xff]
      %v2451 = vld [vmem:[%s669 + $0x10] sm:$0xff]
      %v2452 = vld [vmem:[%s669 + $0x18] sm:$0xff]
      %v2453 = vld [vmem:[%s669 + $0x20] sm:$0xff]
      %v2454 = vld [vmem:[%s669 + $0x28] sm:$0xff]
      %v2455 = vld [vmem:[%s669 + $0x30] sm:$0xff]
      %v2456 = vld [vmem:[%s669 + $0x38] sm:$0xff]
      %v2457 = vld [vmem:[%s669 + $0x40] sm:$0xff]
      %v2458 = vld [vmem:[%s669 + $0x48] sm:$0xff]
      %v2459 = vld [vmem:[%s669 + $0x50] sm:$0xff]
      %v2460 = vld [vmem:[%s669 + $0x58] sm:$0xff]
      %v2461 = vld [vmem:[%s669 + $0x60] sm:$0xff]
      %v2462 = vld [vmem:[%s669 + $0x68] sm:$0xff]
      %v2463 = vld [vmem:[%s669 + $0x70] sm:$0xff]
      %v2464 = vld [vmem:[%s669 + $0x78] sm:$0xff]
      %v2465 = vld [vmem:[%s672] sm:$0x1]
      %v2467 = vlaneseq
      %v2468 = vshrl.u32 %v2467, 7
      %v2469 = vsub.s32 0, %v2468
      %v2470 = vrot.slane %v2465, %v2469
      %2472 = vmatprep.subr.mxu0 0.0
      %2473 = vmatpush1.msra.mxu0 %v2449
      %2474 = vmatprep.subr.mxu0 0.0
      %2475 = vmatpush1.msra.mxu0 %v2450
      %2476 = vmatprep.subr.mxu0 0.0
      %2477 = vmatpush1.msra.mxu0 %v2451
      %2478 = vmatprep.subr.mxu0 0.0
      %2479 = vmatpush1.msra.mxu0 %v2452
      %2480 = vmatprep.subr.mxu0 0.0
      %2481 = vmatpush1.msra.mxu0 %v2453
      %2482 = vmatprep.subr.mxu0 0.0
      %2483 = vmatpush1.msra.mxu0 %v2454
      %2484 = vmatprep.subr.mxu0 0.0
      %2485 = vmatpush1.msra.mxu0 %v2455
      %2486 = vmatprep.subr.mxu0 0.0
      %2487 = vmatpush1.msra.mxu0 %v2456
      %2488 = vmatprep.subr.mxu0 0.0
      %2489 = vmatpush1.msra.mxu0 %v2457
      %2490 = vmatprep.subr.mxu0 0.0
      %2491 = vmatpush1.msra.mxu0 %v2458
      %2492 = vmatprep.subr.mxu0 0.0
      %2493 = vmatpush1.msra.mxu0 %v2459
      %2494 = vmatprep.subr.mxu0 0.0
      %2495 = vmatpush1.msra.mxu0 %v2460
      %2496 = vmatprep.subr.mxu0 0.0
      %2497 = vmatpush1.msra.mxu0 %v2461
      %2498 = vmatprep.subr.mxu0 0.0
      %2499 = vmatpush1.msra.mxu0 %v2462
      %2500 = vmatprep.subr.mxu0 0.0
      %2501 = vmatpush1.msra.mxu0 %v2463
      %2502 = vmatprep.subr.mxu0 0.0
      %2503 = vmatpush1.msra.mxu0 %v2464
      %2504 = vmatprep.subr.mxu0 0.0
      %2505 = vmatpush1.msra.mxu0 0.0
      %2506 = vmatprep.subr.mxu0 0.0
      %2507 = vmatpush1.msra.mxu0 0.0
      %2508 = vmatprep.subr.mxu0 0.0
      %2509 = vmatpush1.msra.mxu0 0.0
      %2510 = vmatprep.subr.mxu0 0.0
      %2511 = vmatpush1.msra.mxu0 0.0
      %2512 = vmatprep.subr.mxu0 0.0
      %2513 = vmatpush1.msra.mxu0 0.0
      %2514 = vmatprep.subr.mxu0 0.0
      %2515 = vmatpush1.msra.mxu0 0.0
      %2516 = vmatprep.subr.mxu0 0.0
      %2517 = vmatpush1.msra.mxu0 0.0
      %2518 = vmatprep.subr.mxu0 0.0
      %2519 = vmatpush1.msra.mxu0 0.0
      %2520 = vmatprep.subr.mxu0 0.0
      %2521 = vmatpush1.msra.mxu0 0.0
      %2522 = vmatprep.subr.mxu0 0.0
      %2523 = vmatpush1.msra.mxu0 0.0
      %2524 = vmatprep.subr.mxu0 0.0
      %2525 = vmatpush1.msra.mxu0 0.0
      %2526 = vmatprep.subr.mxu0 0.0
      %2527 = vmatpush1.msra.mxu0 0.0
      %2528 = vmatprep.subr.mxu0 0.0
      %2529 = vmatpush1.msra.mxu0 0.0
      %2530 = vmatprep.subr.mxu0 0.0
      %2531 = vmatpush1.msra.mxu0 0.0
      %2532 = vmatprep.subr.mxu0 0.0
      %2533 = vmatpush1.msra.mxu0 0.0
      %2534 = vmatprep.subr.mxu0 0.0
      %2535 = vmatpush1.msra.mxu0 0.0
      %2536 = vmatprep.mubr.f32.mxu0 0.0
      %2537 = vmatmul.mubr.f32.gmra.mrb[0].mxu0 %v2447
      %v2538 = vpop.f32.mrb[0].mxu0
      %v2539 = vadd.f32 %v2470, %v2538
      %v2540 = vpop.f32.mrb[0].mxu0
      %2541 = vmatprep.mubr.f32.mxu0 0.0
      %2542 = vmatmul.mubr.f32.gmra.mrb[0].mxu0 %v2448
      %v2543 = vpop.f32.mrb[0].mxu0
      %v2544 = vadd.f32 %v2470, %v2543
      %v2545 = vpop.f32.mrb[0].mxu0
      %2546 = vdwg.mxu0
      %v2547 = vadd.f32 %v2344, %v2539
      %v2548 = vadd.f32 %v2345, %v2544
      %v2549 = vld [vmem:[%s675] sm:$0x1]
      %v2550 = vld [vmem:[%s678] sm:$0x1]
      %v2551 = vsel %vm746, %v2547, 0.0
      %2552 = vadd.xlane.f32.xlu0 %v2551
      %v2553 = vpop.xlane.xlu0 %2552
      %v2554 = vsel %vm746, %v2548, 0.0
      %2555 = vadd.xlane.f32.xlu0 %v2554
      %v2556 = vpop.xlane.xlu0 %2555
      %v2557 = vmul.f32 %v2553, %v2309
      %v2558 = vmul.f32 %v2556, %v2309
      %v2559 = vsub.f32 %v2547, %v2557
      %v2560 = vsub.f32 %v2548, %v2558
      %v2561 = vmul.f32 %v2559, %v2559
      %v2562 = vmul.f32 %v2560, %v2560
      %v2563 = vsel %vm746, %v2561, 0.0
      %2564 = vadd.xlane.f32.xlu0 %v2563
      %v2565 = vpop.xlane.xlu0 %2564
      %v2566 = vsel %vm746, %v2562, 0.0
      %2567 = vadd.xlane.f32.xlu0 %v2566
      %v2568 = vpop.xlane.xlu0 %2567
      %v2569 = vmul.f32 %v2565, %v2309
      %v2570 = vmul.f32 %v2568, %v2309
      %v2571 = vadd.f32 %v2569, 1e-12
      %v2572 = vadd.f32 %v2570, 1e-12
      %v2573 = vrsqrt.pop %v2571
      %v2574 = vrsqrt.pop %v2572
      %v2575 = vmul.f32 %v2559, %v2573
      %v2576 = vmul.f32 %v2560, %v2574
      %v2578 = vlaneseq
      %v2579 = vshrl.u32 %v2578, 7
      %v2580 = vsub.s32 0, %v2579
      %v2581 = vrot.slane %v2549, %v2580
      %v2583 = vmul.f32 %v2575, %v2581
      %v2584 = vmul.f32 %v2576, %v2581
      %v2586 = vlaneseq
      %v2587 = vshrl.u32 %v2586, 7
      %v2588 = vsub.s32 0, %v2587
      %v2589 = vrot.slane %v2550, %v2588
      %v2591 = vadd.f32 %v2583, %v2589
      %v2592 = vadd.f32 %v2584, %v2589
      %2593 = vst.msk [vmem:[%s16] sm:$0xff] %vm746, %v2591
      %2594 = vst.msk [vmem:[%s16 + $0x8] sm:$0xff] %vm746, %v2592
      // Predicated region
      $region89: #{full_bert_forward.2} parent=83 // pred_check
        %p2595 = pneg %p436
      $region90: #{full_bert_forward.2} parent=83 // pred_check_branch
        %2597 = sbr.rel (%p2595) target = $region92
      $region91: #{full_bert_forward.2} parent=83 // pred_region
        _
      $region92: #{full_bert_forward.2} parent=83 // pred_fallthru
        _
      // Predicated region
      $region93: #{full_bert_forward.2} parent=83 // pred_check
        %p2598 = pneg %p436
      $region94: #{full_bert_forward.2} parent=83 // pred_check_branch
        %2600 = sbr.rel (%p2598) target = $region96
      $region95: #{full_bert_forward.2} parent=83 // pred_region
        _
      $region96: #{full_bert_forward.2} parent=83 // pred_fallthru
        _
    $region84: #{full_bert_forward.2} parent=5 // pred_fallthru
      _
    %p2601 = scmp.le.s32.totalorder 2, %s22
    // Predicated region
    $region97: #{full_bert_forward.2} parent=5 // pred_check
      %p2602 = pneg %p2601
    $region98: #{full_bert_forward.2} parent=5 // pred_check_branch
      %2604 = sbr.rel (%p2602) target = $region100
    $region99: #{full_bert_forward.2} parent=5 // pred_region
      %s2605 = ssub.s32 %s22, 2
    $region100: #{full_bert_forward.2} parent=5 // pred_fallthru
      _
  $region6: #{full_bert_forward.2} parent=0 // loop_footer
    %s26 = sadd.s32 1, %s22
  $region7: #{full_bert_forward.2} parent=0 // loop_footer_branch
    %21 = sbr.rel target = $region3
  $region8: #{full_bert_forward.2} parent=0 // loop_exit
    _

</llo_original>
